<compile_context>
chip_gen: v7x
topology: tpu7x:2x2x1
jax: 0.10.0
libtpu: 0.0.40
codegen_flags: <defaults>
</compile_context>

<pallas_src>
import jax
import jax.numpy as jnp
from jax.experimental import pallas as pl
from jax.experimental.pallas import tpu as pltpu

BN_EPS = 1e-5      # nn.BatchNorm1d default eps
OUT_PAD = 128      # lane-dense output width (true output dim is 10)


def wd_kernel(feat_ref, emb_ref, hsp_ref,
              scale_ref, shift_ref,
              w1f_ref, w1e_ref, b1_ref,
              w2_ref, b2_ref, w3_ref, b3_ref,
              wo_dense_ref, wo_sparse_ref, bo_ref,
              out_ref):
    cdt = w1f_ref.dtype  # bf16 weights -> bf16 MXU operands, f32 accumulation

    # BatchNorm folded to a per-feature affine (stats hoisted to the wrapper).
    feat_n = feat_ref[...].astype(jnp.float32) * scale_ref[...] + shift_ref[...]

    # layer 1: split matmul replaces cat((features, emb_mean), dim=1) @ W1
    h = (jnp.dot(feat_n.astype(cdt), w1f_ref[...], preferred_element_type=jnp.float32)
         + jnp.dot(emb_ref[...].astype(cdt), w1e_ref[...], preferred_element_type=jnp.float32)
         + b1_ref[...])
    h = jnp.maximum(h, 0.0)
    h = jnp.maximum(
        jnp.dot(h.astype(cdt), w2_ref[...], preferred_element_type=jnp.float32) + b2_ref[...], 0.0)
    h = jnp.maximum(
        jnp.dot(h.astype(cdt), w3_ref[...], preferred_element_type=jnp.float32) + b3_ref[...], 0.0)
    # TODO(synk): torch round-trips h through float64 here; TPU has no native f64,
    # so the round-trip is kept in float32 (numerically a no-op for this graph).

    # out layer on cat(h, h_sparse) as a split matmul; columns zero-padded to 128.
    y = (jnp.dot(h.astype(cdt), wo_dense_ref[...], preferred_element_type=jnp.float32)
         + jnp.dot(hsp_ref[...].astype(cdt), wo_sparse_ref[...], preferred_element_type=jnp.float32)
         + bo_ref[...])
    out_ref[...] = y.astype(out_ref.dtype)


def _round_up(x, m):
    return (x + m - 1) // m * m


def wd_forward(params, features, h_sparse, h_idx, *, block_b=512):
    B, F = features.shape
    M = h_sparse.shape[1]
    E = params["emb"].shape[1]
    wdt = params["w1_feat"].dtype

    # --- glue (XLA): embedding gather + history mean -> lane-dense [B, E] ---
    # padding_idx=0 row of the table is zeroed, matching nn.Embedding(padding_idx=0).
    emb_mean = jnp.mean(jnp.take(params["emb"], h_idx, axis=0).astype(jnp.float32), axis=1)

    # --- glue (XLA): full-batch BN stats (training mode, biased variance),
    # folded with gamma/beta into a single scale/shift so batch tiles agree ---
    feat32 = features.astype(jnp.float32)
    mu = jnp.mean(feat32, axis=0, keepdims=True)
    var = jnp.mean((feat32 - mu) ** 2, axis=0, keepdims=True)
    scale = params["bn_gamma"] * jax.lax.rsqrt(var + BN_EPS)
    shift = params["bn_beta"] - mu * scale

    # --- batch tiling: TB multiple of 16 (bf16 sublane pack); pad rows, slice off ---
    TB = min(block_b, _round_up(B, 16))
    Bp = _round_up(B, TB)
    if Bp != B:
        pad = ((0, Bp - B), (0, 0))
        feat32 = jnp.pad(feat32, pad)
        emb_mean = jnp.pad(emb_mean, pad)
        h_sparse = jnp.pad(h_sparse, pad)
    hsp = h_sparse.astype(wdt)  # 0/1 values: exact in bf16, halves streamed bytes

    grid = (Bp // TB,)
    row_spec = lambda d: pl.BlockSpec((TB, d), lambda i: (i, 0))
    res_spec = lambda s: pl.BlockSpec(s, lambda i: (0, 0))  # resident across grid steps

    in_specs = [
        row_spec(F),               # features (streamed)
        row_spec(E),               # emb_mean (streamed)
        row_spec(M),               # h_sparse (streamed)
        res_spec((1, F)),          # bn scale
        res_spec((1, F)),          # bn shift
        res_spec((F, 1024)),       # w1_feat
        res_spec((E, 1024)),       # w1_emb
        res_spec((1, 1024)),       # b1
        res_spec((1024, 512)),     # w2
        res_spec((1, 512)),        # b2
        res_spec((512, 256)),      # w3
        res_spec((1, 256)),        # b3
        res_spec((256, OUT_PAD)),  # wo_dense  (cols zero-padded 10 -> 128)
        res_spec((M, OUT_PAD)),    # wo_sparse (cols zero-padded 10 -> 128)
        res_spec((1, OUT_PAD)),    # bo        (cols zero-padded 10 -> 128)
    ]

    flops = 2 * Bp * (F * 1024 + E * 1024 + 1024 * 512 + 512 * 256
                      + 256 * OUT_PAD + M * OUT_PAD)
    weight_bytes = sum(int(params[k].size) * params[k].dtype.itemsize
                       for k in ("w1_feat", "w1_emb", "b1", "w2", "b2",
                                 "w3", "b3", "wo_dense", "wo_sparse", "bo"))
    bytes_accessed = (feat32.size * 4 + emb_mean.size * 4
                      + hsp.size * hsp.dtype.itemsize
                      + weight_bytes + Bp * OUT_PAD * 4)

    y = pl.pallas_call(
        wd_kernel,
        out_shape=jax.ShapeDtypeStruct((Bp, OUT_PAD), jnp.float32),
        grid=grid,
        in_specs=in_specs,
        out_specs=pl.BlockSpec((TB, OUT_PAD), lambda i: (i, 0)),
        compiler_params=pltpu.CompilerParams(
            dimension_semantics=("parallel",),        # megacore / v7x dual-TC
            vmem_limit_bytes=48 * 1024 * 1024),       # fits v7x 64 MiB VMEM
        cost_estimate=pl.CostEstimate(flops=flops, transcendentals=0,
                                      bytes_accessed=bytes_accessed),
    )(feat32, emb_mean, hsp, scale, shift,
      params["w1_feat"], params["w1_emb"], params["b1"],
      params["w2"], params["b2"], params["w3"], params["b3"],
      params["wo_dense"], params["wo_sparse"], params["bo"])

    return y[:B, :10]


def init_params(key, n_features, n_movies, n_embedding, weights_dtype=jnp.bfloat16):
    """Deterministic synthetic init matching the torch module's shapes.

    Linear weights are stored [in, out] (transposed vs torch), matmul weights in
    bf16 (f32 accumulation in the kernel); out-layer columns padded 10 -> 128.
    """
    ks = jax.random.split(key, 9)

    def linear(kw, kb, fan_in, fan_out):
        bound = 1.0 / jnp.sqrt(jnp.float32(fan_in))
        w = jax.random.uniform(kw, (fan_in, fan_out), jnp.float32, -bound, bound)
        b = jax.random.uniform(kb, (1, fan_out), jnp.float32, -bound, bound)
        return w, b

    emb = jax.random.normal(ks[0], (n_movies, n_embedding), jnp.float32)
    emb = emb.at[0].set(0.0)  # padding_idx=0

    w1, b1 = linear(ks[1], ks[2], n_features + n_embedding, 1024)
    w2, b2 = linear(ks[3], ks[4], 1024, 512)
    w3, b3 = linear(ks[5], ks[6], 512, 256)
    wo, bo = linear(ks[7], ks[8], n_movies + 256, 10)  # [256+M, 10]

    def pad_cols(a, width=OUT_PAD):
        return jnp.pad(a, ((0, 0), (0, width - a.shape[1])))

    wdt = weights_dtype
    return dict(
        emb=emb,
        bn_gamma=jnp.ones((1, n_features), jnp.float32),
        bn_beta=jnp.zeros((1, n_features), jnp.float32),
        w1_feat=w1[:n_features, :].astype(wdt),   # multiplies normalized features
        w1_emb=w1[n_features:, :].astype(wdt),    # multiplies emb_mean
        b1=b1,
        w2=w2.astype(wdt), b2=b2,
        w3=w3.astype(wdt), b3=b3,
        wo_dense=pad_cols(wo[:256, :]).astype(wdt),   # multiplies 256-dim MLP output
        wo_sparse=pad_cols(wo[256:, :]).astype(wdt),  # multiplies h_sparse
        bo=pad_cols(bo),
    )


if __name__ == "__main__":
    # small shapes consistent with the module's forward
    B, F, M, H, E = 8, 88, 256, 8, 16   # batch, n_features, n_movies, max_hist, n_embedding

    key = jax.random.PRNGKey(0)
    kp, kf, ks_, ki = jax.random.split(key, 4)

    params = init_params(kp, n_features=F, n_movies=M, n_embedding=E)

    features = jax.random.normal(kf, (B, F), jnp.float32)
    h_sparse = (jax.random.uniform(ks_, (B, M)) < 0.1).astype(jnp.float32)
    h_idx = jax.random.randint(ki, (B, H), 0, M)

    out = jax.jit(wd_forward)(params, features, h_sparse, h_idx)
    jax.block_until_ready(out)
    assert out.shape == (B, 10) and out.dtype == jnp.float32
    print("KERNEL_OK")
</pallas_src>

<mosaic_0001>
module attributes {stable_mosaic.version = 11 : i64} {
  func.func @wd_kernel(%arg0: i32, %arg1: memref<16x88xf32, #tpu.memory_space<vmem>>, %arg2: memref<16x16xf32, #tpu.memory_space<vmem>>, %arg3: memref<16x256xbf16, #tpu.memory_space<vmem>>, %arg4: memref<1x88xf32, #tpu.memory_space<vmem>>, %arg5: memref<1x88xf32, #tpu.memory_space<vmem>>, %arg6: memref<88x1024xbf16, #tpu.memory_space<vmem>>, %arg7: memref<16x1024xbf16, #tpu.memory_space<vmem>>, %arg8: memref<1x1024xf32, #tpu.memory_space<vmem>>, %arg9: memref<1024x512xbf16, #tpu.memory_space<vmem>>, %arg10: memref<1x512xf32, #tpu.memory_space<vmem>>, %arg11: memref<512x256xbf16, #tpu.memory_space<vmem>>, %arg12: memref<1x256xf32, #tpu.memory_space<vmem>>, %arg13: memref<256x128xbf16, #tpu.memory_space<vmem>>, %arg14: memref<256x128xbf16, #tpu.memory_space<vmem>>, %arg15: memref<1x128xf32, #tpu.memory_space<vmem>>, %arg16: memref<16x128xf32, #tpu.memory_space<vmem>>) attributes {dimension_semantics = [#tpu.dimension_semantics<parallel>], iteration_bounds = array<i64: 1>, scalar_prefetch = 0 : i64, scratch_operands = 0 : i64, tpu.core_type = #tpu.core_type<tc>, window_params = [{transform_indices = @transform_0, window_bounds = array<i64: 16, 88>}, {transform_indices = @transform_1, window_bounds = array<i64: 16, 16>}, {transform_indices = @transform_2, window_bounds = array<i64: 16, 256>}, {pipeline_mode = #tpu.pipeline_mode<synchronous>, transform_indices = @transform_3, window_bounds = array<i64: 1, 88>}, {pipeline_mode = #tpu.pipeline_mode<synchronous>, transform_indices = @transform_4, window_bounds = array<i64: 1, 88>}, {pipeline_mode = #tpu.pipeline_mode<synchronous>, transform_indices = @transform_5, window_bounds = array<i64: 88, 1024>}, {pipeline_mode = #tpu.pipeline_mode<synchronous>, transform_indices = @transform_6, window_bounds = array<i64: 16, 1024>}, {pipeline_mode = #tpu.pipeline_mode<synchronous>, transform_indices = @transform_7, window_bounds = array<i64: 1, 1024>}, {pipeline_mode = #tpu.pipeline_mode<synchronous>, transform_indices = @transform_8, window_bounds = array<i64: 1024, 512>}, {pipeline_mode = #tpu.pipeline_mode<synchronous>, transform_indices = @transform_9, window_bounds = array<i64: 1, 512>}, {pipeline_mode = #tpu.pipeline_mode<synchronous>, transform_indices = @transform_10, window_bounds = array<i64: 512, 256>}, {pipeline_mode = #tpu.pipeline_mode<synchronous>, transform_indices = @transform_11, window_bounds = array<i64: 1, 256>}, {pipeline_mode = #tpu.pipeline_mode<synchronous>, transform_indices = @transform_12, window_bounds = array<i64: 256, 128>}, {pipeline_mode = #tpu.pipeline_mode<synchronous>, transform_indices = @transform_13, window_bounds = array<i64: 256, 128>}, {pipeline_mode = #tpu.pipeline_mode<synchronous>, transform_indices = @transform_14, window_bounds = array<i64: 1, 128>}, {transform_indices = @transform_15, window_bounds = array<i64: 16, 128>}]} {
    %c0 = arith.constant 0 : index
    %c0_0 = arith.constant 0 : index
    %0 = vector.load %arg1[%c0, %c0_0] : memref<16x88xf32, #tpu.memory_space<vmem>>, vector<16x88xf32>
    %c0_1 = arith.constant 0 : index
    %c0_2 = arith.constant 0 : index
    %1 = vector.load %arg4[%c0_1, %c0_2] : memref<1x88xf32, #tpu.memory_space<vmem>>, vector<1x88xf32>
    %2 = vector.broadcast %1 : vector<1x88xf32> to vector<16x88xf32>
    %3 = arith.mulf %0, %2 : vector<16x88xf32>
    %c0_3 = arith.constant 0 : index
    %c0_4 = arith.constant 0 : index
    %4 = vector.load %arg5[%c0_3, %c0_4] : memref<1x88xf32, #tpu.memory_space<vmem>>, vector<1x88xf32>
    %5 = vector.broadcast %4 : vector<1x88xf32> to vector<16x88xf32>
    %6 = arith.addf %3, %5 : vector<16x88xf32>
    %7 = arith.truncf %6 : vector<16x88xf32> to vector<16x88xbf16>
    %c0_5 = arith.constant 0 : index
    %c0_6 = arith.constant 0 : index
    %8 = vector.load %arg6[%c0_5, %c0_6] : memref<88x1024xbf16, #tpu.memory_space<vmem>>, vector<88x1024xbf16>
    %cst = arith.constant dense<0.000000e+00> : vector<16x1024xf32>
    %9 = tpu.matmul %7, %8, %cst {dimension_numbers = #tpu.dot_dimension_numbers<[1], [0], [0], [1], [0, 0, 1, 1], [], []>} : vector<16x88xbf16>, vector<88x1024xbf16>, vector<16x1024xf32> -> vector<16x1024xf32>
    %c0_7 = arith.constant 0 : index
    %c0_8 = arith.constant 0 : index
    %10 = vector.load %arg2[%c0_7, %c0_8] : memref<16x16xf32, #tpu.memory_space<vmem>>, vector<16x16xf32>
    %11 = arith.truncf %10 : vector<16x16xf32> to vector<16x16xbf16>
    %c0_9 = arith.constant 0 : index
    %c0_10 = arith.constant 0 : index
    %12 = vector.load %arg7[%c0_9, %c0_10] : memref<16x1024xbf16, #tpu.memory_space<vmem>>, vector<16x1024xbf16>
    %cst_11 = arith.constant dense<0.000000e+00> : vector<16x1024xf32>
    %13 = tpu.matmul %11, %12, %cst_11 {dimension_numbers = #tpu.dot_dimension_numbers<[1], [0], [0], [1], [0, 0, 1, 1], [], []>} : vector<16x16xbf16>, vector<16x1024xbf16>, vector<16x1024xf32> -> vector<16x1024xf32>
    %14 = arith.addf %9, %13 : vector<16x1024xf32>
    %c0_12 = arith.constant 0 : index
    %c0_13 = arith.constant 0 : index
    %15 = vector.load %arg8[%c0_12, %c0_13] : memref<1x1024xf32, #tpu.memory_space<vmem>>, vector<1x1024xf32>
    %16 = vector.broadcast %15 : vector<1x1024xf32> to vector<16x1024xf32>
    %17 = arith.addf %14, %16 : vector<16x1024xf32>
    %cst_14 = arith.constant 0.000000e+00 : f32
    %18 = vector.broadcast %cst_14 : f32 to vector<16x1024xf32>
    %19 = arith.maximumf %17, %18 : vector<16x1024xf32>
    %20 = arith.truncf %19 : vector<16x1024xf32> to vector<16x1024xbf16>
    %c0_15 = arith.constant 0 : index
    %c0_16 = arith.constant 0 : index
    %21 = vector.load %arg9[%c0_15, %c0_16] : memref<1024x512xbf16, #tpu.memory_space<vmem>>, vector<1024x512xbf16>
    %cst_17 = arith.constant dense<0.000000e+00> : vector<16x512xf32>
    %22 = tpu.matmul %20, %21, %cst_17 {dimension_numbers = #tpu.dot_dimension_numbers<[1], [0], [0], [1], [0, 0, 1, 1], [], []>} : vector<16x1024xbf16>, vector<1024x512xbf16>, vector<16x512xf32> -> vector<16x512xf32>
    %c0_18 = arith.constant 0 : index
    %c0_19 = arith.constant 0 : index
    %23 = vector.load %arg10[%c0_18, %c0_19] : memref<1x512xf32, #tpu.memory_space<vmem>>, vector<1x512xf32>
    %24 = vector.broadcast %23 : vector<1x512xf32> to vector<16x512xf32>
    %25 = arith.addf %22, %24 : vector<16x512xf32>
    %cst_20 = arith.constant 0.000000e+00 : f32
    %26 = vector.broadcast %cst_20 : f32 to vector<16x512xf32>
    %27 = arith.maximumf %25, %26 : vector<16x512xf32>
    %28 = arith.truncf %27 : vector<16x512xf32> to vector<16x512xbf16>
    %c0_21 = arith.constant 0 : index
    %c0_22 = arith.constant 0 : index
    %29 = vector.load %arg11[%c0_21, %c0_22] : memref<512x256xbf16, #tpu.memory_space<vmem>>, vector<512x256xbf16>
    %cst_23 = arith.constant dense<0.000000e+00> : vector<16x256xf32>
    %30 = tpu.matmul %28, %29, %cst_23 {dimension_numbers = #tpu.dot_dimension_numbers<[1], [0], [0], [1], [0, 0, 1, 1], [], []>} : vector<16x512xbf16>, vector<512x256xbf16>, vector<16x256xf32> -> vector<16x256xf32>
    %c0_24 = arith.constant 0 : index
    %c0_25 = arith.constant 0 : index
    %31 = vector.load %arg12[%c0_24, %c0_25] : memref<1x256xf32, #tpu.memory_space<vmem>>, vector<1x256xf32>
    %32 = vector.broadcast %31 : vector<1x256xf32> to vector<16x256xf32>
    %33 = arith.addf %30, %32 : vector<16x256xf32>
    %cst_26 = arith.constant 0.000000e+00 : f32
    %34 = vector.broadcast %cst_26 : f32 to vector<16x256xf32>
    %35 = arith.maximumf %33, %34 : vector<16x256xf32>
    %36 = arith.truncf %35 : vector<16x256xf32> to vector<16x256xbf16>
    %c0_27 = arith.constant 0 : index
    %c0_28 = arith.constant 0 : index
    %37 = vector.load %arg13[%c0_27, %c0_28] : memref<256x128xbf16, #tpu.memory_space<vmem>>, vector<256x128xbf16>
    %cst_29 = arith.constant dense<0.000000e+00> : vector<16x128xf32>
    %38 = tpu.matmul %36, %37, %cst_29 {dimension_numbers = #tpu.dot_dimension_numbers<[1], [0], [0], [1], [0, 0, 1, 1], [], []>} : vector<16x256xbf16>, vector<256x128xbf16>, vector<16x128xf32> -> vector<16x128xf32>
    %c0_30 = arith.constant 0 : index
    %c0_31 = arith.constant 0 : index
    %39 = vector.load %arg3[%c0_30, %c0_31] : memref<16x256xbf16, #tpu.memory_space<vmem>>, vector<16x256xbf16>
    %c0_32 = arith.constant 0 : index
    %c0_33 = arith.constant 0 : index
    %40 = vector.load %arg14[%c0_32, %c0_33] : memref<256x128xbf16, #tpu.memory_space<vmem>>, vector<256x128xbf16>
    %cst_34 = arith.constant dense<0.000000e+00> : vector<16x128xf32>
    %41 = tpu.matmul %39, %40, %cst_34 {dimension_numbers = #tpu.dot_dimension_numbers<[1], [0], [0], [1], [0, 0, 1, 1], [], []>} : vector<16x256xbf16>, vector<256x128xbf16>, vector<16x128xf32> -> vector<16x128xf32>
    %42 = arith.addf %38, %41 : vector<16x128xf32>
    %c0_35 = arith.constant 0 : index
    %c0_36 = arith.constant 0 : index
    %43 = vector.load %arg15[%c0_35, %c0_36] : memref<1x128xf32, #tpu.memory_space<vmem>>, vector<1x128xf32>
    %44 = vector.broadcast %43 : vector<1x128xf32> to vector<16x128xf32>
    %45 = arith.addf %42, %44 : vector<16x128xf32>
    %c0_37 = arith.constant 0 : index
    %c0_38 = arith.constant 0 : index
    %46 = vector.load %arg16[%c0_37, %c0_38] : memref<16x128xf32, #tpu.memory_space<vmem>>, vector<16x128xf32>
    tpu.vector_store %arg16[%c0_37, %c0_38], %45 {strides = array<i32>} : memref<16x128xf32, #tpu.memory_space<vmem>>, vector<16x128xf32>,
    return
  }
  func.func @transform_0(%arg0: i32) -> (i32, i32) {
    %c0_i32 = arith.constant 0 : i32
    %c0_i32_0 = arith.constant 0 : i32
    return %arg0, %c0_i32 : i32, i32
  }
  func.func @transform_1(%arg0: i32) -> (i32, i32) {
    %c0_i32 = arith.constant 0 : i32
    %c0_i32_0 = arith.constant 0 : i32
    return %arg0, %c0_i32 : i32, i32
  }
  func.func @transform_2(%arg0: i32) -> (i32, i32) {
    %c0_i32 = arith.constant 0 : i32
    %c0_i32_0 = arith.constant 0 : i32
    return %arg0, %c0_i32 : i32, i32
  }
  func.func @transform_3(%arg0: i32) -> (i32, i32) {
    %c0_i32 = arith.constant 0 : i32
    %c0_i32_0 = arith.constant 0 : i32
    %c0_i32_1 = arith.constant 0 : i32
    return %c0_i32, %c0_i32_0 : i32, i32
  }
  func.func @transform_4(%arg0: i32) -> (i32, i32) {
    %c0_i32 = arith.constant 0 : i32
    %c0_i32_0 = arith.constant 0 : i32
    %c0_i32_1 = arith.constant 0 : i32
    return %c0_i32, %c0_i32_0 : i32, i32
  }
  func.func @transform_5(%arg0: i32) -> (i32, i32) {
    %c0_i32 = arith.constant 0 : i32
    %c0_i32_0 = arith.constant 0 : i32
    %c0_i32_1 = arith.constant 0 : i32
    return %c0_i32, %c0_i32_0 : i32, i32
  }
  func.func @transform_6(%arg0: i32) -> (i32, i32) {
    %c0_i32 = arith.constant 0 : i32
    %c0_i32_0 = arith.constant 0 : i32
    %c0_i32_1 = arith.constant 0 : i32
    return %c0_i32, %c0_i32_0 : i32, i32
  }
  func.func @transform_7(%arg0: i32) -> (i32, i32) {
    %c0_i32 = arith.constant 0 : i32
    %c0_i32_0 = arith.constant 0 : i32
    %c0_i32_1 = arith.constant 0 : i32
    return %c0_i32, %c0_i32_0 : i32, i32
  }
  func.func @transform_8(%arg0: i32) -> (i32, i32) {
    %c0_i32 = arith.constant 0 : i32
    %c0_i32_0 = arith.constant 0 : i32
    %c0_i32_1 = arith.constant 0 : i32
    return %c0_i32, %c0_i32_0 : i32, i32
  }
  func.func @transform_9(%arg0: i32) -> (i32, i32) {
    %c0_i32 = arith.constant 0 : i32
    %c0_i32_0 = arith.constant 0 : i32
    %c0_i32_1 = arith.constant 0 : i32
    return %c0_i32, %c0_i32_0 : i32, i32
  }
  func.func @transform_10(%arg0: i32) -> (i32, i32) {
    %c0_i32 = arith.constant 0 : i32
    %c0_i32_0 = arith.constant 0 : i32
    %c0_i32_1 = arith.constant 0 : i32
    return %c0_i32, %c0_i32_0 : i32, i32
  }
  func.func @transform_11(%arg0: i32) -> (i32, i32) {
    %c0_i32 = arith.constant 0 : i32
    %c0_i32_0 = arith.constant 0 : i32
    %c0_i32_1 = arith.constant 0 : i32
    return %c0_i32, %c0_i32_0 : i32, i32
  }
  func.func @transform_12(%arg0: i32) -> (i32, i32) {
    %c0_i32 = arith.constant 0 : i32
    %c0_i32_0 = arith.constant 0 : i32
    %c0_i32_1 = arith.constant 0 : i32
    return %c0_i32, %c0_i32_0 : i32, i32
  }
  func.func @transform_13(%arg0: i32) -> (i32, i32) {
    %c0_i32 = arith.constant 0 : i32
    %c0_i32_0 = arith.constant 0 : i32
    %c0_i32_1 = arith.constant 0 : i32
    return %c0_i32, %c0_i32_0 : i32, i32
  }
  func.func @transform_14(%arg0: i32) -> (i32, i32) {
    %c0_i32 = arith.constant 0 : i32
    %c0_i32_0 = arith.constant 0 : i32
    %c0_i32_1 = arith.constant 0 : i32
    return %c0_i32, %c0_i32_0 : i32, i32
  }
  func.func @transform_15(%arg0: i32) -> (i32, i32) {
    %c0_i32 = arith.constant 0 : i32
    %c0_i32_0 = arith.constant 0 : i32
    return %arg0, %c0_i32 : i32, i32
  }
}

</mosaic_0001>

<llo_original>
// kernel: wd_forward.1
$region0: #{wd_forward.1}
  #allocation0 [shape = 'u32[]', space=smem, size = 0x4, offset = 0x4, fixed_abs, tag = 'smem constant byte address 0x4 - core index']
  #allocation1 [shape = 'u32[144,128]{1,0:T(1,128)}', space=vmem, size = 0x12000, scoped, tag = 'internal scratch']
  %s0 = inlined_call_operand.vmem [shape: f32[16,88], index: 0, kind: input, shape index: {}]
  %s1 = inlined_call_operand.vmem [shape: f32[16,16], index: 1, kind: input, shape index: {}]
  %s2 = inlined_call_operand.vmem [shape: bf16[16,256], index: 2, kind: input, shape index: {}]
  %s3 = inlined_call_operand.vmem [shape: f32[1,88], index: 3, kind: input, shape index: {}]
  %s4 = inlined_call_operand.vmem [shape: f32[1,88], index: 4, kind: input, shape index: {}]
  %s5 = inlined_call_operand.vmem [shape: bf16[88,1024], index: 5, kind: input, shape index: {}]
  %s6 = inlined_call_operand.hbm [shape: bf16[16,1024], index: 6, kind: input, shape index: {}]
  %s7 = inlined_call_operand.vmem [shape: f32[1,1024], index: 7, kind: input, shape index: {}]
  %s8 = inlined_call_operand.hbm [shape: bf16[1024,512], index: 8, kind: input, shape index: {}]
  %s9 = inlined_call_operand.vmem [shape: f32[1,512], index: 9, kind: input, shape index: {}]
  %s10 = inlined_call_operand.vmem [shape: bf16[512,256], index: 10, kind: input, shape index: {}]
  %s11 = inlined_call_operand.vmem [shape: f32[1,256], index: 11, kind: input, shape index: {}]
  %s12 = inlined_call_operand.vmem [shape: bf16[256,128], index: 12, kind: input, shape index: {}]
  %s13 = inlined_call_operand.vmem [shape: bf16[256,128], index: 13, kind: input, shape index: {}]
  %s14 = inlined_call_operand.vmem [shape: f32[1,128], index: 14, kind: input, shape index: {}]
  %s15 = inlined_call_operand.vmem [shape: f32[16,128], index: 15, kind: output, shape index: {}]
  %s16 = sld [smem:[#allocation0]]
  $region78: #{wd_forward.1} parent=0
    _
  %s18 = ssub.s32 1, %s16
  %s19 = scalar_select 0, %s18, %s16
  $region1: #{wd_forward.1} parent=0
    #allocation2 [shape = 'u8[32768]{0}', space=vmem, size = 0x8000, scoped, tag = 'input window, operand 6, single buffered']
    #allocation3 [shape = 's32[1]{0}', space=sflag, size = 0x4, scoped, tag = 'scoped memory for wd_forward.1']
    #allocation4 [shape = 'u8[1048576]{0}', space=vmem, size = 0x100000, scoped, tag = 'input window, operand 8, single buffered']
    #allocation5 [shape = 's32[1]{0}', space=sflag, size = 0x4, scoped, tag = 'scoped memory for wd_forward.1']
    %20 = vsyncpa [#allocation3], 0
    %21 = vsyncpa [#allocation5], 0
    // Predicated region
    $region2: #{wd_forward.1} parent=1 // pred_check
      _
    $region3: #{wd_forward.1} parent=1 // pred_check_branch
      %23 = sbr.rel (0) target = $region5
    $region4: #{wd_forward.1} parent=1 // pred_region
      _
    $region5: #{wd_forward.1} parent=1 // pred_fallthru
      _
    // Predicated region
    $region6: #{wd_forward.1} parent=1 // pred_check
      _
    $region7: #{wd_forward.1} parent=1 // pred_check_branch
      %25 = sbr.rel (0) target = $region9
    $region8: #{wd_forward.1} parent=1 // pred_region
      _
    $region9: #{wd_forward.1} parent=1 // pred_fallthru
      _
    // Predicated region
    $region10: #{wd_forward.1} parent=1 // pred_check
      _
    $region11: #{wd_forward.1} parent=1 // pred_check_branch
      %27 = sbr.rel (0) target = $region13
    $region12: #{wd_forward.1} parent=1 // pred_region
      _
    $region13: #{wd_forward.1} parent=1 // pred_fallthru
      _
    // Predicated region
    $region14: #{wd_forward.1} parent=1 // pred_check
      _
    $region15: #{wd_forward.1} parent=1 // pred_check_branch
      %29 = sbr.rel (0) target = $region17
    $region16: #{wd_forward.1} parent=1 // pred_region
      _
    $region17: #{wd_forward.1} parent=1 // pred_fallthru
      _
    // Predicated region
    $region18: #{wd_forward.1} parent=1 // pred_check
      _
    $region19: #{wd_forward.1} parent=1 // pred_check_branch
      %31 = sbr.rel (0) target = $region21
    $region20: #{wd_forward.1} parent=1 // pred_region
      _
    $region21: #{wd_forward.1} parent=1 // pred_fallthru
      _
    // Predicated region
    $region22: #{wd_forward.1} parent=1 // pred_check
      _
    $region23: #{wd_forward.1} parent=1 // pred_check_branch
      %33 = sbr.rel (0) target = $region25
    $region24: #{wd_forward.1} parent=1 // pred_region
      _
    $region25: #{wd_forward.1} parent=1 // pred_fallthru
      _
    // Predicated region
    $region26: #{wd_forward.1} parent=1 // pred_check
      _
    $region27: #{wd_forward.1} parent=1 // pred_check_branch
      %35 = sbr.rel (0) target = $region29
    $region28: #{wd_forward.1} parent=1 // pred_region
      %s37 = ssub.s32 1024, 1024
      %38 = vsyncadd [#allocation3], %s37
      %s39 = sshll.u32 [#allocation2], 4
      %s40 = int_to_ptr.vmem [resolvable:$true] %s39
      %45 = dma.hbm_to_vmem [thread:$0]  %s6, 1024, %s40, [#allocation3], 512, 512, 32
    $region29: #{wd_forward.1} parent=1 // pred_fallthru
      _
    // Predicated region
    $region30: #{wd_forward.1} parent=1 // pred_check
      _
    $region31: #{wd_forward.1} parent=1 // pred_check_branch
      %47 = sbr.rel (0) target = $region33
    $region32: #{wd_forward.1} parent=1 // pred_region
      _
    $region33: #{wd_forward.1} parent=1 // pred_fallthru
      _
    // Predicated region
    $region34: #{wd_forward.1} parent=1 // pred_check
      _
    $region35: #{wd_forward.1} parent=1 // pred_check_branch
      %49 = sbr.rel (0) target = $region37
    $region36: #{wd_forward.1} parent=1 // pred_region
      %s51 = ssub.s32 32768, 32768
      %52 = vsyncadd [#allocation5], %s51
      %s53 = sshll.u32 [#allocation4], 4
      %s54 = int_to_ptr.vmem [resolvable:$true] %s53
      %59 = dma.hbm_to_vmem [thread:$0]  %s8, 32768, %s54, [#allocation5], 256, 256, 16
    $region37: #{wd_forward.1} parent=1 // pred_fallthru
      _
    // Predicated region
    $region38: #{wd_forward.1} parent=1 // pred_check
      _
    $region39: #{wd_forward.1} parent=1 // pred_check_branch
      %61 = sbr.rel (0) target = $region41
    $region40: #{wd_forward.1} parent=1 // pred_region
      _
    $region41: #{wd_forward.1} parent=1 // pred_fallthru
      _
    // Predicated region
    $region42: #{wd_forward.1} parent=1 // pred_check
      _
    $region43: #{wd_forward.1} parent=1 // pred_check_branch
      %63 = sbr.rel (0) target = $region45
    $region44: #{wd_forward.1} parent=1 // pred_region
      _
    $region45: #{wd_forward.1} parent=1 // pred_fallthru
      _
    // Predicated region
    $region46: #{wd_forward.1} parent=1 // pred_check
      _
    $region47: #{wd_forward.1} parent=1 // pred_check_branch
      %65 = sbr.rel (0) target = $region49
    $region48: #{wd_forward.1} parent=1 // pred_region
      _
    $region49: #{wd_forward.1} parent=1 // pred_fallthru
      _
    // Predicated region
    $region50: #{wd_forward.1} parent=1 // pred_check
      _
    $region51: #{wd_forward.1} parent=1 // pred_check_branch
      %67 = sbr.rel (0) target = $region53
    $region52: #{wd_forward.1} parent=1 // pred_region
      _
    $region53: #{wd_forward.1} parent=1 // pred_fallthru
      _
    // Predicated region
    $region54: #{wd_forward.1} parent=1 // pred_check
      _
    $region55: #{wd_forward.1} parent=1 // pred_check_branch
      %69 = sbr.rel (0) target = $region57
    $region56: #{wd_forward.1} parent=1 // pred_region
      _
    $region57: #{wd_forward.1} parent=1 // pred_fallthru
      _
    // Predicated region
    $region58: #{wd_forward.1} parent=1 // pred_check
      _
    $region59: #{wd_forward.1} parent=1 // pred_check_branch
      %71 = sbr.rel (0) target = $region61
    $region60: #{wd_forward.1} parent=1 // pred_region
      _
    $region61: #{wd_forward.1} parent=1 // pred_fallthru
      _
    // Predicated region
    $region62: #{wd_forward.1} parent=1 // pred_check
      _
    $region63: #{wd_forward.1} parent=1 // pred_check_branch
      %73 = sbr.rel (0) target = $region65
    $region64: #{wd_forward.1} parent=1 // pred_region
      %74 = dma.done [#allocation3], 1024
    $region65: #{wd_forward.1} parent=1 // pred_fallthru
      _
    // Predicated region
    $region66: #{wd_forward.1} parent=1 // pred_check
      _
    $region67: #{wd_forward.1} parent=1 // pred_check_branch
      %76 = sbr.rel (0) target = $region69
    $region68: #{wd_forward.1} parent=1 // pred_region
      %77 = dma.done [#allocation5], 32768
    $region69: #{wd_forward.1} parent=1 // pred_fallthru
      _
    %v79 = vld [vmem:[%s0] sm:$0xff]
    %v80 = vld [vmem:[%s0 + $0x8] sm:$0xff]
    %v81 = vld [vmem:[%s3] sm:$0x1]
    %v83 = vlaneseq
    %v84 = vshrl.u32 %v83, 7
    %v85 = vsub.s32 0, %v84
    %v86 = vrot.slane %v81, %v85
    %v88 = vmul.f32 %v79, %v86
    %v89 = vmul.f32 %v80, %v86
    %v90 = vld [vmem:[%s4] sm:$0x1]
    %v92 = vlaneseq
    %v93 = vshrl.u32 %v92, 7
    %v94 = vsub.s32 0, %v93
    %v95 = vrot.slane %v90, %v94
    %v97 = vadd.f32 %v88, %v95
    %v98 = vadd.f32 %v89, %v95
    %v99 = vpack.c.bf16 %v98, %v97
    %v100 = vld [vmem:[%s5] sm:$0xff]
    %v101 = vld [vmem:[%s5 + $0x8] sm:$0xff]
    %v102 = vld [vmem:[%s5 + $0x10] sm:$0xff]
    %v103 = vld [vmem:[%s5 + $0x18] sm:$0xff]
    %v104 = vld [vmem:[%s5 + $0x20] sm:$0xff]
    %v105 = vld [vmem:[%s5 + $0x28] sm:$0xff]
    %v106 = vld [vmem:[%s5 + $0x30] sm:$0xff]
    %v107 = vld [vmem:[%s5 + $0x38] sm:$0xff]
    %v108 = vld [vmem:[%s5 + $0x40] sm:$0xff]
    %v109 = vld [vmem:[%s5 + $0x48] sm:$0xff]
    %v110 = vld [vmem:[%s5 + $0x50] sm:$0xff]
    %v111 = vld [vmem:[%s5 + $0x58] sm:$0xff]
    %v112 = vld [vmem:[%s5 + $0x60] sm:$0xff]
    %v113 = vld [vmem:[%s5 + $0x68] sm:$0xff]
    %v114 = vld [vmem:[%s5 + $0x70] sm:$0xff]
    %v115 = vld [vmem:[%s5 + $0x78] sm:$0xff]
    %v116 = vld [vmem:[%s5 + $0x80] sm:$0xff]
    %v117 = vld [vmem:[%s5 + $0x88] sm:$0xff]
    %v118 = vld [vmem:[%s5 + $0x90] sm:$0xff]
    %v119 = vld [vmem:[%s5 + $0x98] sm:$0xff]
    %v120 = vld [vmem:[%s5 + $0xa0] sm:$0xff]
    %v121 = vld [vmem:[%s5 + $0xa8] sm:$0xff]
    %v122 = vld [vmem:[%s5 + $0xb0] sm:$0xff]
    %v123 = vld [vmem:[%s5 + $0xb8] sm:$0xff]
    %v124 = vld [vmem:[%s5 + $0xc0] sm:$0xff]
    %v125 = vld [vmem:[%s5 + $0xc8] sm:$0xff]
    %v126 = vld [vmem:[%s5 + $0xd0] sm:$0xff]
    %v127 = vld [vmem:[%s5 + $0xd8] sm:$0xff]
    %v128 = vld [vmem:[%s5 + $0xe0] sm:$0xff]
    %v129 = vld [vmem:[%s5 + $0xe8] sm:$0xff]
    %v130 = vld [vmem:[%s5 + $0xf0] sm:$0xff]
    %v131 = vld [vmem:[%s5 + $0xf8] sm:$0xff]
    %v132 = vld [vmem:[%s5 + $0x100] sm:$0xff]
    %v133 = vld [vmem:[%s5 + $0x108] sm:$0xff]
    %v134 = vld [vmem:[%s5 + $0x110] sm:$0xff]
    %v135 = vld [vmem:[%s5 + $0x118] sm:$0xff]
    %v136 = vld [vmem:[%s5 + $0x120] sm:$0xff]
    %v137 = vld [vmem:[%s5 + $0x128] sm:$0xff]
    %v138 = vld [vmem:[%s5 + $0x130] sm:$0xff]
    %v139 = vld [vmem:[%s5 + $0x138] sm:$0xff]
    %v140 = vld [vmem:[%s5 + $0x140] sm:$0xff]
    %v141 = vld [vmem:[%s5 + $0x148] sm:$0xff]
    %v142 = vld [vmem:[%s5 + $0x150] sm:$0xff]
    %v143 = vld [vmem:[%s5 + $0x158] sm:$0xff]
    %v144 = vld [vmem:[%s1] sm:$0xff]
    %v145 = vld [vmem:[%s1 + $0x8] sm:$0xff]
    %v146 = vpack.c.bf16 %v145, %v144
    %v147 = vld [vmem:[#allocation2] sm:$0xff]
    %v148 = vld [vmem:[#allocation2 + $0x8] sm:$0xff]
    %v149 = vld [vmem:[#allocation2 + $0x10] sm:$0xff]
    %v150 = vld [vmem:[#allocation2 + $0x18] sm:$0xff]
    %v151 = vld [vmem:[#allocation2 + $0x20] sm:$0xff]
    %v152 = vld [vmem:[#allocation2 + $0x28] sm:$0xff]
    %v153 = vld [vmem:[#allocation2 + $0x30] sm:$0xff]
    %v154 = vld [vmem:[#allocation2 + $0x38] sm:$0xff]
    %v163 = vunpack.c.l.b16 %v147
    %v164 = vunpack.c.h.b16 %v147
    %v165 = vunpack.c.l.b16 %v148
    %v166 = vunpack.c.h.b16 %v148
    %v167 = vunpack.c.l.b16 %v149
    %v168 = vunpack.c.h.b16 %v149
    %v169 = vunpack.c.l.b16 %v150
    %v170 = vunpack.c.h.b16 %v150
    %v171 = vunpack.c.l.b16 %v151
    %v172 = vunpack.c.h.b16 %v151
    %v173 = vunpack.c.l.b16 %v152
    %v174 = vunpack.c.h.b16 %v152
    %v175 = vunpack.c.l.b16 %v153
    %v176 = vunpack.c.h.b16 %v153
    %v177 = vunpack.c.l.b16 %v154
    %v178 = vunpack.c.h.b16 %v154
    %v179 = vpack.c.b16 %v171, %v163
    %v180 = vpack.c.b16 %v172, %v164
    %v181 = vpack.c.b16 %v173, %v165
    %v182 = vpack.c.b16 %v174, %v166
    %v183 = vpack.c.b16 %v175, %v167
    %v184 = vpack.c.b16 %v176, %v168
    %v185 = vpack.c.b16 %v177, %v169
    %v186 = vpack.c.b16 %v178, %v170
    %vm195 = vcmask 130048
    %v197 = vsel %vm195, %v146, 0
    %199 = vmatprep.subr.bf16.mxu0 %v180
    %200 = vmatpush1.bf16.msra.mxu0 %v179
    %201 = vmatprep.subr.bf16.mxu0 0
    %202 = vmatpush1.bf16.msra.mxu0 0
    %203 = vmatprep.subr.bf16.mxu0 0
    %204 = vmatpush1.bf16.msra.mxu0 0
    %205 = vmatprep.subr.bf16.mxu0 0
    %206 = vmatpush1.bf16.msra.mxu0 0
    %207 = vmatprep.subr.bf16.mxu0 0
    %208 = vmatpush1.bf16.msra.mxu0 0
    %209 = vmatprep.subr.bf16.mxu0 0
    %210 = vmatpush1.bf16.msra.mxu0 0
    %211 = vmatprep.subr.bf16.mxu0 0
    %212 = vmatpush1.bf16.msra.mxu0 0
    %213 = vmatprep.subr.bf16.mxu0 0
    %214 = vmatpush1.bf16.msra.mxu0 0
    %215 = vmatprep.subr.bf16.mxu0 0
    %216 = vmatpush1.bf16.msra.mxu0 0
    %217 = vmatprep.subr.bf16.mxu0 0
    %218 = vmatpush1.bf16.msra.mxu0 0
    %219 = vmatprep.subr.bf16.mxu0 0
    %220 = vmatpush1.bf16.msra.mxu0 0
    %221 = vmatprep.subr.bf16.mxu0 0
    %222 = vmatpush1.bf16.msra.mxu0 0
    %223 = vmatprep.subr.bf16.mxu0 0
    %224 = vmatpush1.bf16.msra.mxu0 0
    %225 = vmatprep.subr.bf16.mxu0 0
    %226 = vmatpush1.bf16.msra.mxu0 0
    %227 = vmatprep.subr.bf16.mxu0 0
    %228 = vmatpush1.bf16.msra.mxu0 0
    %229 = vmatprep.subr.bf16.mxu0 0
    %230 = vmatpush1.bf16.msra.mxu0 0
    %231 = vmatprep.mubr.bf16.mxu0 0
    %232 = vmatmul.mubr.bf16.gmra.mrb[0].mxu0 %v197
    %v233 = vpop.f32.mrb[0].mxu0
    %v234 = vadd.f32 0.0, %v233
    %v235 = vpop.f32.mrb[0].mxu0
    %v236 = vadd.f32 0.0, %v235
    %v237 = vpop.f32.mrb[0].mxu0
    %v238 = vadd.f32 0.0, %v237
    %v239 = vpop.f32.mrb[0].mxu0
    %v240 = vadd.f32 0.0, %v239
    %241 = vdwg.mxu0
    %242 = vmatprep.subr.bf16.mxu0 %v182
    %243 = vmatpush1.bf16.msra.mxu0 %v181
    %244 = vmatprep.subr.bf16.mxu0 0
    %245 = vmatpush1.bf16.msra.mxu0 0
    %246 = vmatprep.subr.bf16.mxu0 0
    %247 = vmatpush1.bf16.msra.mxu0 0
    %248 = vmatprep.subr.bf16.mxu0 0
    %249 = vmatpush1.bf16.msra.mxu0 0
    %250 = vmatprep.subr.bf16.mxu0 0
    %251 = vmatpush1.bf16.msra.mxu0 0
    %252 = vmatprep.subr.bf16.mxu0 0
    %253 = vmatpush1.bf16.msra.mxu0 0
    %254 = vmatprep.subr.bf16.mxu0 0
    %255 = vmatpush1.bf16.msra.mxu0 0
    %256 = vmatprep.subr.bf16.mxu0 0
    %257 = vmatpush1.bf16.msra.mxu0 0
    %258 = vmatprep.subr.bf16.mxu0 0
    %259 = vmatpush1.bf16.msra.mxu0 0
    %260 = vmatprep.subr.bf16.mxu0 0
    %261 = vmatpush1.bf16.msra.mxu0 0
    %262 = vmatprep.subr.bf16.mxu0 0
    %263 = vmatpush1.bf16.msra.mxu0 0
    %264 = vmatprep.subr.bf16.mxu0 0
    %265 = vmatpush1.bf16.msra.mxu0 0
    %266 = vmatprep.subr.bf16.mxu0 0
    %267 = vmatpush1.bf16.msra.mxu0 0
    %268 = vmatprep.subr.bf16.mxu0 0
    %269 = vmatpush1.bf16.msra.mxu0 0
    %270 = vmatprep.subr.bf16.mxu0 0
    %271 = vmatpush1.bf16.msra.mxu0 0
    %272 = vmatprep.subr.bf16.mxu0 0
    %273 = vmatpush1.bf16.msra.mxu0 0
    %274 = vmatprep.mubr.bf16.mxu0 0
    %275 = vmatmul.mubr.bf16.gmra.mrb[0].mxu0 %v197
    %v276 = vpop.f32.mrb[0].mxu0
    %v277 = vadd.f32 0.0, %v276
    %v278 = vpop.f32.mrb[0].mxu0
    %v279 = vadd.f32 0.0, %v278
    %v280 = vpop.f32.mrb[0].mxu0
    %v281 = vadd.f32 0.0, %v280
    %v282 = vpop.f32.mrb[0].mxu0
    %v283 = vadd.f32 0.0, %v282
    %284 = vdwg.mxu0
    %285 = vmatprep.subr.bf16.mxu0 %v184
    %286 = vmatpush1.bf16.msra.mxu0 %v183
    %287 = vmatprep.subr.bf16.mxu0 0
    %288 = vmatpush1.bf16.msra.mxu0 0
    %289 = vmatprep.subr.bf16.mxu0 0
    %290 = vmatpush1.bf16.msra.mxu0 0
    %291 = vmatprep.subr.bf16.mxu0 0
    %292 = vmatpush1.bf16.msra.mxu0 0
    %293 = vmatprep.subr.bf16.mxu0 0
    %294 = vmatpush1.bf16.msra.mxu0 0
    %295 = vmatprep.subr.bf16.mxu0 0
    %296 = vmatpush1.bf16.msra.mxu0 0
    %297 = vmatprep.subr.bf16.mxu0 0
    %298 = vmatpush1.bf16.msra.mxu0 0
    %299 = vmatprep.subr.bf16.mxu0 0
    %300 = vmatpush1.bf16.msra.mxu0 0
    %301 = vmatprep.subr.bf16.mxu0 0
    %302 = vmatpush1.bf16.msra.mxu0 0
    %303 = vmatprep.subr.bf16.mxu0 0
    %304 = vmatpush1.bf16.msra.mxu0 0
    %305 = vmatprep.subr.bf16.mxu0 0
    %306 = vmatpush1.bf16.msra.mxu0 0
    %307 = vmatprep.subr.bf16.mxu0 0
    %308 = vmatpush1.bf16.msra.mxu0 0
    %309 = vmatprep.subr.bf16.mxu0 0
    %310 = vmatpush1.bf16.msra.mxu0 0
    %311 = vmatprep.subr.bf16.mxu0 0
    %312 = vmatpush1.bf16.msra.mxu0 0
    %313 = vmatprep.subr.bf16.mxu0 0
    %314 = vmatpush1.bf16.msra.mxu0 0
    %315 = vmatprep.subr.bf16.mxu0 0
    %316 = vmatpush1.bf16.msra.mxu0 0
    %317 = vmatprep.mubr.bf16.mxu0 0
    %318 = vmatmul.mubr.bf16.gmra.mrb[0].mxu0 %v197
    %v319 = vpop.f32.mrb[0].mxu0
    %v320 = vadd.f32 0.0, %v319
    %v321 = vpop.f32.mrb[0].mxu0
    %v322 = vadd.f32 0.0, %v321
    %v323 = vpop.f32.mrb[0].mxu0
    %v324 = vadd.f32 0.0, %v323
    %v325 = vpop.f32.mrb[0].mxu0
    %v326 = vadd.f32 0.0, %v325
    %327 = vdwg.mxu0
    %328 = vmatprep.subr.bf16.mxu0 %v186
    %329 = vmatpush1.bf16.msra.mxu0 %v185
    %330 = vmatprep.subr.bf16.mxu0 0
    %331 = vmatpush1.bf16.msra.mxu0 0
    %332 = vmatprep.subr.bf16.mxu0 0
    %333 = vmatpush1.bf16.msra.mxu0 0
    %334 = vmatprep.subr.bf16.mxu0 0
    %335 = vmatpush1.bf16.msra.mxu0 0
    %336 = vmatprep.subr.bf16.mxu0 0
    %337 = vmatpush1.bf16.msra.mxu0 0
    %338 = vmatprep.subr.bf16.mxu0 0
    %339 = vmatpush1.bf16.msra.mxu0 0
    %340 = vmatprep.subr.bf16.mxu0 0
    %341 = vmatpush1.bf16.msra.mxu0 0
    %342 = vmatprep.subr.bf16.mxu0 0
    %343 = vmatpush1.bf16.msra.mxu0 0
    %344 = vmatprep.subr.bf16.mxu0 0
    %345 = vmatpush1.bf16.msra.mxu0 0
    %346 = vmatprep.subr.bf16.mxu0 0
    %347 = vmatpush1.bf16.msra.mxu0 0
    %348 = vmatprep.subr.bf16.mxu0 0
    %349 = vmatpush1.bf16.msra.mxu0 0
    %350 = vmatprep.subr.bf16.mxu0 0
    %351 = vmatpush1.bf16.msra.mxu0 0
    %352 = vmatprep.subr.bf16.mxu0 0
    %353 = vmatpush1.bf16.msra.mxu0 0
    %354 = vmatprep.subr.bf16.mxu0 0
    %355 = vmatpush1.bf16.msra.mxu0 0
    %356 = vmatprep.subr.bf16.mxu0 0
    %357 = vmatpush1.bf16.msra.mxu0 0
    %358 = vmatprep.subr.bf16.mxu0 0
    %359 = vmatpush1.bf16.msra.mxu0 0
    %360 = vmatprep.mubr.bf16.mxu0 0
    %361 = vmatmul.mubr.bf16.gmra.mrb[0].mxu0 %v197
    %v362 = vpop.f32.mrb[0].mxu0
    %v363 = vadd.f32 0.0, %v362
    %v364 = vpop.f32.mrb[0].mxu0
    %v365 = vadd.f32 0.0, %v364
    %v366 = vpop.f32.mrb[0].mxu0
    %v367 = vadd.f32 0.0, %v366
    %v368 = vpop.f32.mrb[0].mxu0
    %v369 = vadd.f32 0.0, %v368
    %370 = vdwg.mxu0
    %v415 = vunpack.c.l.b16 %v100
    %v416 = vunpack.c.h.b16 %v100
    %v417 = vunpack.c.l.b16 %v101
    %v418 = vunpack.c.h.b16 %v101
    %v419 = vunpack.c.l.b16 %v102
    %v420 = vunpack.c.h.b16 %v102
    %v421 = vunpack.c.l.b16 %v103
    %v422 = vunpack.c.h.b16 %v103
    %v423 = vunpack.c.l.b16 %v104
    %v424 = vunpack.c.h.b16 %v104
    %v425 = vunpack.c.l.b16 %v105
    %v426 = vunpack.c.h.b16 %v105
    %v427 = vunpack.c.l.b16 %v106
    %v428 = vunpack.c.h.b16 %v106
    %v429 = vunpack.c.l.b16 %v107
    %v430 = vunpack.c.h.b16 %v107
    %v431 = vunpack.c.l.b16 %v108
    %v432 = vunpack.c.h.b16 %v108
    %v433 = vunpack.c.l.b16 %v109
    %v434 = vunpack.c.h.b16 %v109
    %v435 = vunpack.c.l.b16 %v110
    %v436 = vunpack.c.h.b16 %v110
    %v437 = vunpack.c.l.b16 %v111
    %v438 = vunpack.c.h.b16 %v111
    %v439 = vunpack.c.l.b16 %v112
    %v440 = vunpack.c.h.b16 %v112
    %v441 = vunpack.c.l.b16 %v113
    %v442 = vunpack.c.h.b16 %v113
    %v443 = vunpack.c.l.b16 %v114
    %v444 = vunpack.c.h.b16 %v114
    %v445 = vunpack.c.l.b16 %v115
    %v446 = vunpack.c.h.b16 %v115
    %v447 = vunpack.c.l.b16 %v116
    %v448 = vunpack.c.h.b16 %v116
    %v449 = vunpack.c.l.b16 %v117
    %v450 = vunpack.c.h.b16 %v117
    %v451 = vunpack.c.l.b16 %v118
    %v452 = vunpack.c.h.b16 %v118
    %v453 = vunpack.c.l.b16 %v119
    %v454 = vunpack.c.h.b16 %v119
    %v455 = vunpack.c.l.b16 %v120
    %v456 = vunpack.c.h.b16 %v120
    %v457 = vunpack.c.l.b16 %v121
    %v458 = vunpack.c.h.b16 %v121
    %v459 = vunpack.c.l.b16 %v122
    %v460 = vunpack.c.h.b16 %v122
    %v461 = vunpack.c.l.b16 %v123
    %v462 = vunpack.c.h.b16 %v123
    %v463 = vunpack.c.l.b16 %v124
    %v464 = vunpack.c.h.b16 %v124
    %v465 = vunpack.c.l.b16 %v125
    %v466 = vunpack.c.h.b16 %v125
    %v467 = vunpack.c.l.b16 %v126
    %v468 = vunpack.c.h.b16 %v126
    %v469 = vunpack.c.l.b16 %v127
    %v470 = vunpack.c.h.b16 %v127
    %v471 = vunpack.c.l.b16 %v128
    %v472 = vunpack.c.h.b16 %v128
    %v473 = vunpack.c.l.b16 %v129
    %v474 = vunpack.c.h.b16 %v129
    %v475 = vunpack.c.l.b16 %v130
    %v476 = vunpack.c.h.b16 %v130
    %v477 = vunpack.c.l.b16 %v131
    %v478 = vunpack.c.h.b16 %v131
    %v479 = vunpack.c.l.b16 %v132
    %v480 = vunpack.c.h.b16 %v132
    %v481 = vunpack.c.l.b16 %v133
    %v482 = vunpack.c.h.b16 %v133
    %v483 = vunpack.c.l.b16 %v134
    %v484 = vunpack.c.h.b16 %v134
    %v485 = vunpack.c.l.b16 %v135
    %v486 = vunpack.c.h.b16 %v135
    %v487 = vunpack.c.l.b16 %v136
    %v488 = vunpack.c.h.b16 %v136
    %v489 = vunpack.c.l.b16 %v137
    %v490 = vunpack.c.h.b16 %v137
    %v491 = vunpack.c.l.b16 %v138
    %v492 = vunpack.c.h.b16 %v138
    %v493 = vunpack.c.l.b16 %v139
    %v494 = vunpack.c.h.b16 %v139
    %v495 = vunpack.c.l.b16 %v140
    %v496 = vunpack.c.h.b16 %v140
    %v497 = vunpack.c.l.b16 %v141
    %v498 = vunpack.c.h.b16 %v141
    %v499 = vunpack.c.l.b16 %v142
    %v500 = vunpack.c.h.b16 %v142
    %v501 = vunpack.c.l.b16 %v143
    %v502 = vunpack.c.h.b16 %v143
    %v503 = vpack.c.b16 %v423, %v415
    %v504 = vpack.c.b16 %v424, %v416
    %v505 = vpack.c.b16 %v425, %v417
    %v506 = vpack.c.b16 %v426, %v418
    %v507 = vpack.c.b16 %v427, %v419
    %v508 = vpack.c.b16 %v428, %v420
    %v509 = vpack.c.b16 %v429, %v421
    %v510 = vpack.c.b16 %v430, %v422
    %v511 = vpack.c.b16 %v439, %v431
    %v512 = vpack.c.b16 %v440, %v432
    %v513 = vpack.c.b16 %v441, %v433
    %v514 = vpack.c.b16 %v442, %v434
    %v515 = vpack.c.b16 %v443, %v435
    %v516 = vpack.c.b16 %v444, %v436
    %v517 = vpack.c.b16 %v445, %v437
    %v518 = vpack.c.b16 %v446, %v438
    %v519 = vpack.c.b16 %v455, %v447
    %v520 = vpack.c.b16 %v456, %v448
    %v521 = vpack.c.b16 %v457, %v449
    %v522 = vpack.c.b16 %v458, %v450
    %v523 = vpack.c.b16 %v459, %v451
    %v524 = vpack.c.b16 %v460, %v452
    %v525 = vpack.c.b16 %v461, %v453
    %v526 = vpack.c.b16 %v462, %v454
    %v527 = vpack.c.b16 %v471, %v463
    %v528 = vpack.c.b16 %v472, %v464
    %v529 = vpack.c.b16 %v473, %v465
    %v530 = vpack.c.b16 %v474, %v466
    %v531 = vpack.c.b16 %v475, %v467
    %v532 = vpack.c.b16 %v476, %v468
    %v533 = vpack.c.b16 %v477, %v469
    %v534 = vpack.c.b16 %v478, %v470
    %v535 = vpack.c.b16 %v487, %v479
    %v536 = vpack.c.b16 %v488, %v480
    %v537 = vpack.c.b16 %v489, %v481
    %v538 = vpack.c.b16 %v490, %v482
    %v539 = vpack.c.b16 %v491, %v483
    %v540 = vpack.c.b16 %v492, %v484
    %v541 = vpack.c.b16 %v493, %v485
    %v542 = vpack.c.b16 %v494, %v486
    %v543 = vpack.c.b16 %v495, %v495
    %v544 = vpack.c.b16 %v496, %v496
    %v545 = vpack.c.b16 %v497, %v497
    %v546 = vpack.c.b16 %v498, %v498
    %v547 = vpack.c.b16 %v499, %v499
    %v548 = vpack.c.b16 %v500, %v500
    %v549 = vpack.c.b16 %v501, %v501
    %v550 = vpack.c.b16 %v502, %v502
    %vm591 = vcmask 719872
    %v593 = vsel %vm591, %v99, 0
    %vm595 = vcmask 1043456
    %v597 = vsel %vm595, %v543, 0
    %v600 = vsel %vm595, %v544, 0
    %v603 = vsel %vm595, %v545, 0
    %v606 = vsel %vm595, %v546, 0
    %v609 = vsel %vm595, %v547, 0
    %v612 = vsel %vm595, %v548, 0
    %v615 = vsel %vm595, %v549, 0
    %v618 = vsel %vm595, %v550, 0
    %620 = vmatprep.subr.bf16.mxu0 %v504
    %621 = vmatpush1.bf16.msra.mxu0 %v503
    %622 = vmatprep.subr.bf16.mxu0 %v512
    %623 = vmatpush1.bf16.msra.mxu0 %v511
    %624 = vmatprep.subr.bf16.mxu0 %v520
    %625 = vmatpush1.bf16.msra.mxu0 %v519
    %626 = vmatprep.subr.bf16.mxu0 %v528
    %627 = vmatpush1.bf16.msra.mxu0 %v527
    %628 = vmatprep.subr.bf16.mxu0 %v536
    %629 = vmatpush1.bf16.msra.mxu0 %v535
    %630 = vmatprep.subr.bf16.mxu0 %v600
    %631 = vmatpush1.bf16.msra.mxu0 %v597
    %632 = vmatprep.subr.bf16.mxu0 0
    %633 = vmatpush1.bf16.msra.mxu0 0
    %634 = vmatprep.subr.bf16.mxu0 0
    %635 = vmatpush1.bf16.msra.mxu0 0
    %636 = vmatprep.subr.bf16.mxu0 0
    %637 = vmatpush1.bf16.msra.mxu0 0
    %638 = vmatprep.subr.bf16.mxu0 0
    %639 = vmatpush1.bf16.msra.mxu0 0
    %640 = vmatprep.subr.bf16.mxu0 0
    %641 = vmatpush1.bf16.msra.mxu0 0
    %642 = vmatprep.subr.bf16.mxu0 0
    %643 = vmatpush1.bf16.msra.mxu0 0
    %644 = vmatprep.subr.bf16.mxu0 0
    %645 = vmatpush1.bf16.msra.mxu0 0
    %646 = vmatprep.subr.bf16.mxu0 0
    %647 = vmatpush1.bf16.msra.mxu0 0
    %648 = vmatprep.subr.bf16.mxu0 0
    %649 = vmatpush1.bf16.msra.mxu0 0
    %650 = vmatprep.subr.bf16.mxu0 0
    %651 = vmatpush1.bf16.msra.mxu0 0
    %652 = vmatprep.mubr.bf16.mxu0 0
    %653 = vmatmul.mubr.bf16.gmra.mrb[0].mxu0 %v593
    %v654 = vpop.f32.mrb[0].mxu0
    %v655 = vadd.f32 %v234, %v654
    %v656 = vpop.f32.mrb[0].mxu0
    %v657 = vadd.f32 %v236, %v656
    %v658 = vpop.f32.mrb[0].mxu0
    %v659 = vadd.f32 %v238, %v658
    %v660 = vpop.f32.mrb[0].mxu0
    %v661 = vadd.f32 %v240, %v660
    %662 = vdwg.mxu0
    %663 = vmatprep.subr.bf16.mxu0 %v506
    %664 = vmatpush1.bf16.msra.mxu0 %v505
    %665 = vmatprep.subr.bf16.mxu0 %v514
    %666 = vmatpush1.bf16.msra.mxu0 %v513
    %667 = vmatprep.subr.bf16.mxu0 %v522
    %668 = vmatpush1.bf16.msra.mxu0 %v521
    %669 = vmatprep.subr.bf16.mxu0 %v530
    %670 = vmatpush1.bf16.msra.mxu0 %v529
    %671 = vmatprep.subr.bf16.mxu0 %v538
    %672 = vmatpush1.bf16.msra.mxu0 %v537
    %673 = vmatprep.subr.bf16.mxu0 %v606
    %674 = vmatpush1.bf16.msra.mxu0 %v603
    %675 = vmatprep.subr.bf16.mxu0 0
    %676 = vmatpush1.bf16.msra.mxu0 0
    %677 = vmatprep.subr.bf16.mxu0 0
    %678 = vmatpush1.bf16.msra.mxu0 0
    %679 = vmatprep.subr.bf16.mxu0 0
    %680 = vmatpush1.bf16.msra.mxu0 0
    %681 = vmatprep.subr.bf16.mxu0 0
    %682 = vmatpush1.bf16.msra.mxu0 0
    %683 = vmatprep.subr.bf16.mxu0 0
    %684 = vmatpush1.bf16.msra.mxu0 0
    %685 = vmatprep.subr.bf16.mxu0 0
    %686 = vmatpush1.bf16.msra.mxu0 0
    %687 = vmatprep.subr.bf16.mxu0 0
    %688 = vmatpush1.bf16.msra.mxu0 0
    %689 = vmatprep.subr.bf16.mxu0 0
    %690 = vmatpush1.bf16.msra.mxu0 0
    %691 = vmatprep.subr.bf16.mxu0 0
    %692 = vmatpush1.bf16.msra.mxu0 0
    %693 = vmatprep.subr.bf16.mxu0 0
    %694 = vmatpush1.bf16.msra.mxu0 0
    %695 = vmatprep.mubr.bf16.mxu0 0
    %696 = vmatmul.mubr.bf16.gmra.mrb[0].mxu0 %v593
    %v697 = vpop.f32.mrb[0].mxu0
    %v698 = vadd.f32 %v277, %v697
    %v699 = vpop.f32.mrb[0].mxu0
    %v700 = vadd.f32 %v279, %v699
    %v701 = vpop.f32.mrb[0].mxu0
    %v702 = vadd.f32 %v281, %v701
    %v703 = vpop.f32.mrb[0].mxu0
    %v704 = vadd.f32 %v283, %v703
    %705 = vdwg.mxu0
    %706 = vmatprep.subr.bf16.mxu0 %v508
    %707 = vmatpush1.bf16.msra.mxu0 %v507
    %708 = vmatprep.subr.bf16.mxu0 %v516
    %709 = vmatpush1.bf16.msra.mxu0 %v515
    %710 = vmatprep.subr.bf16.mxu0 %v524
    %711 = vmatpush1.bf16.msra.mxu0 %v523
    %712 = vmatprep.subr.bf16.mxu0 %v532
    %713 = vmatpush1.bf16.msra.mxu0 %v531
    %714 = vmatprep.subr.bf16.mxu0 %v540
    %715 = vmatpush1.bf16.msra.mxu0 %v539
    %716 = vmatprep.subr.bf16.mxu0 %v612
    %717 = vmatpush1.bf16.msra.mxu0 %v609
    %718 = vmatprep.subr.bf16.mxu0 0
    %719 = vmatpush1.bf16.msra.mxu0 0
    %720 = vmatprep.subr.bf16.mxu0 0
    %721 = vmatpush1.bf16.msra.mxu0 0
    %722 = vmatprep.subr.bf16.mxu0 0
    %723 = vmatpush1.bf16.msra.mxu0 0
    %724 = vmatprep.subr.bf16.mxu0 0
    %725 = vmatpush1.bf16.msra.mxu0 0
    %726 = vmatprep.subr.bf16.mxu0 0
    %727 = vmatpush1.bf16.msra.mxu0 0
    %728 = vmatprep.subr.bf16.mxu0 0
    %729 = vmatpush1.bf16.msra.mxu0 0
    %730 = vmatprep.subr.bf16.mxu0 0
    %731 = vmatpush1.bf16.msra.mxu0 0
    %732 = vmatprep.subr.bf16.mxu0 0
    %733 = vmatpush1.bf16.msra.mxu0 0
    %734 = vmatprep.subr.bf16.mxu0 0
    %735 = vmatpush1.bf16.msra.mxu0 0
    %736 = vmatprep.subr.bf16.mxu0 0
    %737 = vmatpush1.bf16.msra.mxu0 0
    %738 = vmatprep.mubr.bf16.mxu0 0
    %739 = vmatmul.mubr.bf16.gmra.mrb[0].mxu0 %v593
    %v740 = vpop.f32.mrb[0].mxu0
    %v741 = vadd.f32 %v320, %v740
    %v742 = vpop.f32.mrb[0].mxu0
    %v743 = vadd.f32 %v322, %v742
    %v744 = vpop.f32.mrb[0].mxu0
    %v745 = vadd.f32 %v324, %v744
    %v746 = vpop.f32.mrb[0].mxu0
    %v747 = vadd.f32 %v326, %v746
    %748 = vdwg.mxu0
    %749 = vmatprep.subr.bf16.mxu0 %v510
    %750 = vmatpush1.bf16.msra.mxu0 %v509
    %751 = vmatprep.subr.bf16.mxu0 %v518
    %752 = vmatpush1.bf16.msra.mxu0 %v517
    %753 = vmatprep.subr.bf16.mxu0 %v526
    %754 = vmatpush1.bf16.msra.mxu0 %v525
    %755 = vmatprep.subr.bf16.mxu0 %v534
    %756 = vmatpush1.bf16.msra.mxu0 %v533
    %757 = vmatprep.subr.bf16.mxu0 %v542
    %758 = vmatpush1.bf16.msra.mxu0 %v541
    %759 = vmatprep.subr.bf16.mxu0 %v618
    %760 = vmatpush1.bf16.msra.mxu0 %v615
    %761 = vmatprep.subr.bf16.mxu0 0
    %762 = vmatpush1.bf16.msra.mxu0 0
    %763 = vmatprep.subr.bf16.mxu0 0
    %764 = vmatpush1.bf16.msra.mxu0 0
    %765 = vmatprep.subr.bf16.mxu0 0
    %766 = vmatpush1.bf16.msra.mxu0 0
    %767 = vmatprep.subr.bf16.mxu0 0
    %768 = vmatpush1.bf16.msra.mxu0 0
    %769 = vmatprep.subr.bf16.mxu0 0
    %770 = vmatpush1.bf16.msra.mxu0 0
    %771 = vmatprep.subr.bf16.mxu0 0
    %772 = vmatpush1.bf16.msra.mxu0 0
    %773 = vmatprep.subr.bf16.mxu0 0
    %774 = vmatpush1.bf16.msra.mxu0 0
    %775 = vmatprep.subr.bf16.mxu0 0
    %776 = vmatpush1.bf16.msra.mxu0 0
    %777 = vmatprep.subr.bf16.mxu0 0
    %778 = vmatpush1.bf16.msra.mxu0 0
    %779 = vmatprep.subr.bf16.mxu0 0
    %780 = vmatpush1.bf16.msra.mxu0 0
    %781 = vmatprep.mubr.bf16.mxu0 0
    %782 = vmatmul.mubr.bf16.gmra.mrb[0].mxu0 %v593
    %v783 = vpop.f32.mrb[0].mxu0
    %v784 = vadd.f32 %v363, %v783
    %v785 = vpop.f32.mrb[0].mxu0
    %v786 = vadd.f32 %v365, %v785
    %v787 = vpop.f32.mrb[0].mxu0
    %v788 = vadd.f32 %v367, %v787
    %v789 = vpop.f32.mrb[0].mxu0
    %v790 = vadd.f32 %v369, %v789
    %791 = vdwg.mxu0
    %v792 = vld [vmem:[%s7] sm:$0xff]
    %v794 = vlaneseq
    %v795 = vshrl.u32 %v794, 7
    %v796 = vsub.s32 0, %v795
    %v797 = vrot.slane %v792, %v796
    %v798 = vlaneseq
    %v799 = vshrl.u32 %v798, 7
    %v800 = vsub.s32 1, %v799
    %v801 = vrot.slane %v792, %v800
    %v802 = vlaneseq
    %v803 = vshrl.u32 %v802, 7
    %v804 = vsub.s32 2, %v803
    %v805 = vrot.slane %v792, %v804
    %v806 = vlaneseq
    %v807 = vshrl.u32 %v806, 7
    %v808 = vsub.s32 3, %v807
    %v809 = vrot.slane %v792, %v808
    %v810 = vlaneseq
    %v811 = vshrl.u32 %v810, 7
    %v812 = vsub.s32 4, %v811
    %v813 = vrot.slane %v792, %v812
    %v814 = vlaneseq
    %v815 = vshrl.u32 %v814, 7
    %v816 = vsub.s32 5, %v815
    %v817 = vrot.slane %v792, %v816
    %v818 = vlaneseq
    %v819 = vshrl.u32 %v818, 7
    %v820 = vsub.s32 6, %v819
    %v821 = vrot.slane %v792, %v820
    %v822 = vlaneseq
    %v823 = vshrl.u32 %v822, 7
    %v824 = vsub.s32 7, %v823
    %v825 = vrot.slane %v792, %v824
    %v834 = vadd.f32 %v655, %v797
    %v835 = vadd.f32 %v657, %v801
    %v836 = vadd.f32 %v698, %v805
    %v837 = vadd.f32 %v700, %v809
    %v838 = vadd.f32 %v741, %v813
    %v839 = vadd.f32 %v743, %v817
    %v840 = vadd.f32 %v784, %v821
    %v841 = vadd.f32 %v786, %v825
    %v842 = vadd.f32 %v659, %v797
    %v843 = vadd.f32 %v661, %v801
    %v844 = vadd.f32 %v702, %v805
    %v845 = vadd.f32 %v704, %v809
    %v846 = vadd.f32 %v745, %v813
    %v847 = vadd.f32 %v747, %v817
    %v848 = vadd.f32 %v788, %v821
    %v849 = vadd.f32 %v790, %v825
    %v850 = vmax.f32 %v834, 0.0
    %v851 = vmax.f32 %v835, 0.0
    %v852 = vmax.f32 %v836, 0.0
    %v853 = vmax.f32 %v837, 0.0
    %v854 = vmax.f32 %v838, 0.0
    %v855 = vmax.f32 %v839, 0.0
    %v856 = vmax.f32 %v840, 0.0
    %v857 = vmax.f32 %v841, 0.0
    %v858 = vmax.f32 %v842, 0.0
    %v859 = vmax.f32 %v843, 0.0
    %v860 = vmax.f32 %v844, 0.0
    %v861 = vmax.f32 %v845, 0.0
    %v862 = vmax.f32 %v846, 0.0
    %v863 = vmax.f32 %v847, 0.0
    %v864 = vmax.f32 %v848, 0.0
    %v865 = vmax.f32 %v849, 0.0
    %v866 = vpack.c.bf16 %v858, %v850
    %v867 = vpack.c.bf16 %v859, %v851
    %v868 = vpack.c.bf16 %v860, %v852
    %v869 = vpack.c.bf16 %v861, %v853
    %v870 = vpack.c.bf16 %v862, %v854
    %v871 = vpack.c.bf16 %v863, %v855
    %v872 = vpack.c.bf16 %v864, %v856
    %v873 = vpack.c.bf16 %v865, %v857
    %v874 = vld [vmem:[#allocation4] sm:$0xff]
    %v875 = vld [vmem:[#allocation4 + $0x8] sm:$0xff]
    %v876 = vld [vmem:[#allocation4 + $0x10] sm:$0xff]
    %v877 = vld [vmem:[#allocation4 + $0x18] sm:$0xff]
    %v878 = vld [vmem:[#allocation4 + $0x20] sm:$0xff]
    %v879 = vld [vmem:[#allocation4 + $0x28] sm:$0xff]
    %v880 = vld [vmem:[#allocation4 + $0x30] sm:$0xff]
    %v881 = vld [vmem:[#allocation4 + $0x38] sm:$0xff]
    %v882 = vld [vmem:[#allocation4 + $0x40] sm:$0xff]
    %v883 = vld [vmem:[#allocation4 + $0x48] sm:$0xff]
    %v884 = vld [vmem:[#allocation4 + $0x50] sm:$0xff]
    %v885 = vld [vmem:[#allocation4 + $0x58] sm:$0xff]
    %v886 = vld [vmem:[#allocation4 + $0x60] sm:$0xff]
    %v887 = vld [vmem:[#allocation4 + $0x68] sm:$0xff]
    %v888 = vld [vmem:[#allocation4 + $0x70] sm:$0xff]
    %v889 = vld [vmem:[#allocation4 + $0x78] sm:$0xff]
    %v890 = vld [vmem:[#allocation4 + $0x80] sm:$0xff]
    %v891 = vld [vmem:[#allocation4 + $0x88] sm:$0xff]
    %v892 = vld [vmem:[#allocation4 + $0x90] sm:$0xff]
    %v893 = vld [vmem:[#allocation4 + $0x98] sm:$0xff]
    %v894 = vld [vmem:[#allocation4 + $0xa0] sm:$0xff]
    %v895 = vld [vmem:[#allocation4 + $0xa8] sm:$0xff]
    %v896 = vld [vmem:[#allocation4 + $0xb0] sm:$0xff]
    %v897 = vld [vmem:[#allocation4 + $0xb8] sm:$0xff]
    %v898 = vld [vmem:[#allocation4 + $0xc0] sm:$0xff]
    %v899 = vld [vmem:[#allocation4 + $0xc8] sm:$0xff]
    %v900 = vld [vmem:[#allocation4 + $0xd0] sm:$0xff]
    %v901 = vld [vmem:[#allocation4 + $0xd8] sm:$0xff]
    %v902 = vld [vmem:[#allocation4 + $0xe0] sm:$0xff]
    %v903 = vld [vmem:[#allocation4 + $0xe8] sm:$0xff]
    %v904 = vld [vmem:[#allocation4 + $0xf0] sm:$0xff]
    %v905 = vld [vmem:[#allocation4 + $0xf8] sm:$0xff]
    %v906 = vld [vmem:[#allocation4 + $0x100] sm:$0xff]
    %v907 = vld [vmem:[#allocation4 + $0x108] sm:$0xff]
    %v908 = vld [vmem:[#allocation4 + $0x110] sm:$0xff]
    %v909 = vld [vmem:[#allocation4 + $0x118] sm:$0xff]
    %v910 = vld [vmem:[#allocation4 + $0x120] sm:$0xff]
    %v911 = vld [vmem:[#allocation4 + $0x128] sm:$0xff]
    %v912 = vld [vmem:[#allocation4 + $0x130] sm:$0xff]
    %v913 = vld [vmem:[#allocation4 + $0x138] sm:$0xff]
    %v914 = vld [vmem:[#allocation4 + $0x140] sm:$0xff]
    %v915 = vld [vmem:[#allocation4 + $0x148] sm:$0xff]
    %v916 = vld [vmem:[#allocation4 + $0x150] sm:$0xff]
    %v917 = vld [vmem:[#allocation4 + $0x158] sm:$0xff]
    %v918 = vld [vmem:[#allocation4 + $0x160] sm:$0xff]
    %v919 = vld [vmem:[#allocation4 + $0x168] sm:$0xff]
    %v920 = vld [vmem:[#allocation4 + $0x170] sm:$0xff]
    %v921 = vld [vmem:[#allocation4 + $0x178] sm:$0xff]
    %v922 = vld [vmem:[#allocation4 + $0x180] sm:$0xff]
    %v923 = vld [vmem:[#allocation4 + $0x188] sm:$0xff]
    %v924 = vld [vmem:[#allocation4 + $0x190] sm:$0xff]
    %v925 = vld [vmem:[#allocation4 + $0x198] sm:$0xff]
    %v926 = vld [vmem:[#allocation4 + $0x1a0] sm:$0xff]
    %v927 = vld [vmem:[#allocation4 + $0x1a8] sm:$0xff]
    %v928 = vld [vmem:[#allocation4 + $0x1b0] sm:$0xff]
    %v929 = vld [vmem:[#allocation4 + $0x1b8] sm:$0xff]
    %v930 = vld [vmem:[#allocation4 + $0x1c0] sm:$0xff]
    %v931 = vld [vmem:[#allocation4 + $0x1c8] sm:$0xff]
    %v932 = vld [vmem:[#allocation4 + $0x1d0] sm:$0xff]
    %v933 = vld [vmem:[#allocation4 + $0x1d8] sm:$0xff]
    %v934 = vld [vmem:[#allocation4 + $0x1e0] sm:$0xff]
    %v935 = vld [vmem:[#allocation4 + $0x1e8] sm:$0xff]
    %v936 = vld [vmem:[#allocation4 + $0x1f0] sm:$0xff]
    %v937 = vld [vmem:[#allocation4 + $0x1f8] sm:$0xff]
    %v938 = vld [vmem:[#allocation4 + $0x200] sm:$0xff]
    %v939 = vld [vmem:[#allocation4 + $0x208] sm:$0xff]
    %v940 = vld [vmem:[#allocation4 + $0x210] sm:$0xff]
    %v941 = vld [vmem:[#allocation4 + $0x218] sm:$0xff]
    %v942 = vld [vmem:[#allocation4 + $0x220] sm:$0xff]
    %v943 = vld [vmem:[#allocation4 + $0x228] sm:$0xff]
    %v944 = vld [vmem:[#allocation4 + $0x230] sm:$0xff]
    %v945 = vld [vmem:[#allocation4 + $0x238] sm:$0xff]
    %v946 = vld [vmem:[#allocation4 + $0x240] sm:$0xff]
    %v947 = vld [vmem:[#allocation4 + $0x248] sm:$0xff]
    %v948 = vld [vmem:[#allocation4 + $0x250] sm:$0xff]
    %v949 = vld [vmem:[#allocation4 + $0x258] sm:$0xff]
    %v950 = vld [vmem:[#allocation4 + $0x260] sm:$0xff]
    %v951 = vld [vmem:[#allocation4 + $0x268] sm:$0xff]
    %v952 = vld [vmem:[#allocation4 + $0x270] sm:$0xff]
    %v953 = vld [vmem:[#allocation4 + $0x278] sm:$0xff]
    %v954 = vld [vmem:[#allocation4 + $0x280] sm:$0xff]
    %v955 = vld [vmem:[#allocation4 + $0x288] sm:$0xff]
    %v956 = vld [vmem:[#allocation4 + $0x290] sm:$0xff]
    %v957 = vld [vmem:[#allocation4 + $0x298] sm:$0xff]
    %v958 = vld [vmem:[#allocation4 + $0x2a0] sm:$0xff]
    %v959 = vld [vmem:[#allocation4 + $0x2a8] sm:$0xff]
    %v960 = vld [vmem:[#allocation4 + $0x2b0] sm:$0xff]
    %v961 = vld [vmem:[#allocation4 + $0x2b8] sm:$0xff]
    %v962 = vld [vmem:[#allocation4 + $0x2c0] sm:$0xff]
    %v963 = vld [vmem:[#allocation4 + $0x2c8] sm:$0xff]
    %v964 = vld [vmem:[#allocation4 + $0x2d0] sm:$0xff]
    %v965 = vld [vmem:[#allocation4 + $0x2d8] sm:$0xff]
    %v966 = vld [vmem:[#allocation4 + $0x2e0] sm:$0xff]
    %v967 = vld [vmem:[#allocation4 + $0x2e8] sm:$0xff]
    %v968 = vld [vmem:[#allocation4 + $0x2f0] sm:$0xff]
    %v969 = vld [vmem:[#allocation4 + $0x2f8] sm:$0xff]
    %v970 = vld [vmem:[#allocation4 + $0x300] sm:$0xff]
    %v971 = vld [vmem:[#allocation4 + $0x308] sm:$0xff]
    %v972 = vld [vmem:[#allocation4 + $0x310] sm:$0xff]
    %v973 = vld [vmem:[#allocation4 + $0x318] sm:$0xff]
    %v974 = vld [vmem:[#allocation4 + $0x320] sm:$0xff]
    %v975 = vld [vmem:[#allocation4 + $0x328] sm:$0xff]
    %v976 = vld [vmem:[#allocation4 + $0x330] sm:$0xff]
    %v977 = vld [vmem:[#allocation4 + $0x338] sm:$0xff]
    %v978 = vld [vmem:[#allocation4 + $0x340] sm:$0xff]
    %v979 = vld [vmem:[#allocation4 + $0x348] sm:$0xff]
    %v980 = vld [vmem:[#allocation4 + $0x350] sm:$0xff]
    %v981 = vld [vmem:[#allocation4 + $0x358] sm:$0xff]
    %v982 = vld [vmem:[#allocation4 + $0x360] sm:$0xff]
    %v983 = vld [vmem:[#allocation4 + $0x368] sm:$0xff]
    %v984 = vld [vmem:[#allocation4 + $0x370] sm:$0xff]
    %v985 = vld [vmem:[#allocation4 + $0x378] sm:$0xff]
    %v986 = vld [vmem:[#allocation4 + $0x380] sm:$0xff]
    %v987 = vld [vmem:[#allocation4 + $0x388] sm:$0xff]
    %v988 = vld [vmem:[#allocation4 + $0x390] sm:$0xff]
    %v989 = vld [vmem:[#allocation4 + $0x398] sm:$0xff]
    %v990 = vld [vmem:[#allocation4 + $0x3a0] sm:$0xff]
    %v991 = vld [vmem:[#allocation4 + $0x3a8] sm:$0xff]
    %v992 = vld [vmem:[#allocation4 + $0x3b0] sm:$0xff]
    %v993 = vld [vmem:[#allocation4 + $0x3b8] sm:$0xff]
    %v994 = vld [vmem:[#allocation4 + $0x3c0] sm:$0xff]
    %v995 = vld [vmem:[#allocation4 + $0x3c8] sm:$0xff]
    %v996 = vld [vmem:[#allocation4 + $0x3d0] sm:$0xff]
    %v997 = vld [vmem:[#allocation4 + $0x3d8] sm:$0xff]
    %v998 = vld [vmem:[#allocation4 + $0x3e0] sm:$0xff]
    %v999 = vld [vmem:[#allocation4 + $0x3e8] sm:$0xff]
    %v1000 = vld [vmem:[#allocation4 + $0x3f0] sm:$0xff]
    %v1001 = vld [vmem:[#allocation4 + $0x3f8] sm:$0xff]
    %v1002 = vld [vmem:[#allocation4 + $0x400] sm:$0xff]
    %v1003 = vld [vmem:[#allocation4 + $0x408] sm:$0xff]
    %v1004 = vld [vmem:[#allocation4 + $0x410] sm:$0xff]
    %v1005 = vld [vmem:[#allocation4 + $0x418] sm:$0xff]
    %v1006 = vld [vmem:[#allocation4 + $0x420] sm:$0xff]
    %v1007 = vld [vmem:[#allocation4 + $0x428] sm:$0xff]
    %v1008 = vld [vmem:[#allocation4 + $0x430] sm:$0xff]
    %v1009 = vld [vmem:[#allocation4 + $0x438] sm:$0xff]
    %v1010 = vld [vmem:[#allocation4 + $0x440] sm:$0xff]
    %v1011 = vld [vmem:[#allocation4 + $0x448] sm:$0xff]
    %v1012 = vld [vmem:[#allocation4 + $0x450] sm:$0xff]
    %v1013 = vld [vmem:[#allocation4 + $0x458] sm:$0xff]
    %v1014 = vld [vmem:[#allocation4 + $0x460] sm:$0xff]
    %v1015 = vld [vmem:[#allocation4 + $0x468] sm:$0xff]
    %v1016 = vld [vmem:[#allocation4 + $0x470] sm:$0xff]
    %v1017 = vld [vmem:[#allocation4 + $0x478] sm:$0xff]
    %v1018 = vld [vmem:[#allocation4 + $0x480] sm:$0xff]
    %v1019 = vld [vmem:[#allocation4 + $0x488] sm:$0xff]
    %v1020 = vld [vmem:[#allocation4 + $0x490] sm:$0xff]
    %v1021 = vld [vmem:[#allocation4 + $0x498] sm:$0xff]
    %v1022 = vld [vmem:[#allocation4 + $0x4a0] sm:$0xff]
    %v1023 = vld [vmem:[#allocation4 + $0x4a8] sm:$0xff]
    %v1024 = vld [vmem:[#allocation4 + $0x4b0] sm:$0xff]
    %v1025 = vld [vmem:[#allocation4 + $0x4b8] sm:$0xff]
    %v1026 = vld [vmem:[#allocation4 + $0x4c0] sm:$0xff]
    %v1027 = vld [vmem:[#allocation4 + $0x4c8] sm:$0xff]
    %v1028 = vld [vmem:[#allocation4 + $0x4d0] sm:$0xff]
    %v1029 = vld [vmem:[#allocation4 + $0x4d8] sm:$0xff]
    %v1030 = vld [vmem:[#allocation4 + $0x4e0] sm:$0xff]
    %v1031 = vld [vmem:[#allocation4 + $0x4e8] sm:$0xff]
    %v1032 = vld [vmem:[#allocation4 + $0x4f0] sm:$0xff]
    %v1033 = vld [vmem:[#allocation4 + $0x4f8] sm:$0xff]
    %v1034 = vld [vmem:[#allocation4 + $0x500] sm:$0xff]
    %v1035 = vld [vmem:[#allocation4 + $0x508] sm:$0xff]
    %v1036 = vld [vmem:[#allocation4 + $0x510] sm:$0xff]
    %v1037 = vld [vmem:[#allocation4 + $0x518] sm:$0xff]
    %v1038 = vld [vmem:[#allocation4 + $0x520] sm:$0xff]
    %v1039 = vld [vmem:[#allocation4 + $0x528] sm:$0xff]
    %v1040 = vld [vmem:[#allocation4 + $0x530] sm:$0xff]
    %v1041 = vld [vmem:[#allocation4 + $0x538] sm:$0xff]
    %v1042 = vld [vmem:[#allocation4 + $0x540] sm:$0xff]
    %v1043 = vld [vmem:[#allocation4 + $0x548] sm:$0xff]
    %v1044 = vld [vmem:[#allocation4 + $0x550] sm:$0xff]
    %v1045 = vld [vmem:[#allocation4 + $0x558] sm:$0xff]
    %v1046 = vld [vmem:[#allocation4 + $0x560] sm:$0xff]
    %v1047 = vld [vmem:[#allocation4 + $0x568] sm:$0xff]
    %v1048 = vld [vmem:[#allocation4 + $0x570] sm:$0xff]
    %v1049 = vld [vmem:[#allocation4 + $0x578] sm:$0xff]
    %v1050 = vld [vmem:[#allocation4 + $0x580] sm:$0xff]
    %v1051 = vld [vmem:[#allocation4 + $0x588] sm:$0xff]
    %v1052 = vld [vmem:[#allocation4 + $0x590] sm:$0xff]
    %v1053 = vld [vmem:[#allocation4 + $0x598] sm:$0xff]
    %v1054 = vld [vmem:[#allocation4 + $0x5a0] sm:$0xff]
    %v1055 = vld [vmem:[#allocation4 + $0x5a8] sm:$0xff]
    %v1056 = vld [vmem:[#allocation4 + $0x5b0] sm:$0xff]
    %v1057 = vld [vmem:[#allocation4 + $0x5b8] sm:$0xff]
    %v1058 = vld [vmem:[#allocation4 + $0x5c0] sm:$0xff]
    %v1059 = vld [vmem:[#allocation4 + $0x5c8] sm:$0xff]
    %v1060 = vld [vmem:[#allocation4 + $0x5d0] sm:$0xff]
    %v1061 = vld [vmem:[#allocation4 + $0x5d8] sm:$0xff]
    %v1062 = vld [vmem:[#allocation4 + $0x5e0] sm:$0xff]
    %v1063 = vld [vmem:[#allocation4 + $0x5e8] sm:$0xff]
    %v1064 = vld [vmem:[#allocation4 + $0x5f0] sm:$0xff]
    %v1065 = vld [vmem:[#allocation4 + $0x5f8] sm:$0xff]
    %v1066 = vld [vmem:[#allocation4 + $0x600] sm:$0xff]
    %v1067 = vld [vmem:[#allocation4 + $0x608] sm:$0xff]
    %v1068 = vld [vmem:[#allocation4 + $0x610] sm:$0xff]
    %v1069 = vld [vmem:[#allocation4 + $0x618] sm:$0xff]
    %v1070 = vld [vmem:[#allocation4 + $0x620] sm:$0xff]
    %v1071 = vld [vmem:[#allocation4 + $0x628] sm:$0xff]
    %v1072 = vld [vmem:[#allocation4 + $0x630] sm:$0xff]
    %v1073 = vld [vmem:[#allocation4 + $0x638] sm:$0xff]
    %v1074 = vld [vmem:[#allocation4 + $0x640] sm:$0xff]
    %v1075 = vld [vmem:[#allocation4 + $0x648] sm:$0xff]
    %v1076 = vld [vmem:[#allocation4 + $0x650] sm:$0xff]
    %v1077 = vld [vmem:[#allocation4 + $0x658] sm:$0xff]
    %v1078 = vld [vmem:[#allocation4 + $0x660] sm:$0xff]
    %v1079 = vld [vmem:[#allocation4 + $0x668] sm:$0xff]
    %v1080 = vld [vmem:[#allocation4 + $0x670] sm:$0xff]
    %v1081 = vld [vmem:[#allocation4 + $0x678] sm:$0xff]
    %v1082 = vld [vmem:[#allocation4 + $0x680] sm:$0xff]
    %v1083 = vld [vmem:[#allocation4 + $0x688] sm:$0xff]
    %v1084 = vld [vmem:[#allocation4 + $0x690] sm:$0xff]
    %v1085 = vld [vmem:[#allocation4 + $0x698] sm:$0xff]
    %v1086 = vld [vmem:[#allocation4 + $0x6a0] sm:$0xff]
    %v1087 = vld [vmem:[#allocation4 + $0x6a8] sm:$0xff]
    %v1088 = vld [vmem:[#allocation4 + $0x6b0] sm:$0xff]
    %v1089 = vld [vmem:[#allocation4 + $0x6b8] sm:$0xff]
    %v1090 = vld [vmem:[#allocation4 + $0x6c0] sm:$0xff]
    %v1091 = vld [vmem:[#allocation4 + $0x6c8] sm:$0xff]
    %v1092 = vld [vmem:[#allocation4 + $0x6d0] sm:$0xff]
    %v1093 = vld [vmem:[#allocation4 + $0x6d8] sm:$0xff]
    %v1094 = vld [vmem:[#allocation4 + $0x6e0] sm:$0xff]
    %v1095 = vld [vmem:[#allocation4 + $0x6e8] sm:$0xff]
    %v1096 = vld [vmem:[#allocation4 + $0x6f0] sm:$0xff]
    %v1097 = vld [vmem:[#allocation4 + $0x6f8] sm:$0xff]
    %v1098 = vld [vmem:[#allocation4 + $0x700] sm:$0xff]
    %v1099 = vld [vmem:[#allocation4 + $0x708] sm:$0xff]
    %v1100 = vld [vmem:[#allocation4 + $0x710] sm:$0xff]
    %v1101 = vld [vmem:[#allocation4 + $0x718] sm:$0xff]
    %v1102 = vld [vmem:[#allocation4 + $0x720] sm:$0xff]
    %v1103 = vld [vmem:[#allocation4 + $0x728] sm:$0xff]
    %v1104 = vld [vmem:[#allocation4 + $0x730] sm:$0xff]
    %v1105 = vld [vmem:[#allocation4 + $0x738] sm:$0xff]
    %v1106 = vld [vmem:[#allocation4 + $0x740] sm:$0xff]
    %v1107 = vld [vmem:[#allocation4 + $0x748] sm:$0xff]
    %v1108 = vld [vmem:[#allocation4 + $0x750] sm:$0xff]
    %v1109 = vld [vmem:[#allocation4 + $0x758] sm:$0xff]
    %v1110 = vld [vmem:[#allocation4 + $0x760] sm:$0xff]
    %v1111 = vld [vmem:[#allocation4 + $0x768] sm:$0xff]
    %v1112 = vld [vmem:[#allocation4 + $0x770] sm:$0xff]
    %v1113 = vld [vmem:[#allocation4 + $0x778] sm:$0xff]
    %v1114 = vld [vmem:[#allocation4 + $0x780] sm:$0xff]
    %v1115 = vld [vmem:[#allocation4 + $0x788] sm:$0xff]
    %v1116 = vld [vmem:[#allocation4 + $0x790] sm:$0xff]
    %v1117 = vld [vmem:[#allocation4 + $0x798] sm:$0xff]
    %v1118 = vld [vmem:[#allocation4 + $0x7a0] sm:$0xff]
    %v1119 = vld [vmem:[#allocation4 + $0x7a8] sm:$0xff]
    %v1120 = vld [vmem:[#allocation4 + $0x7b0] sm:$0xff]
    %v1121 = vld [vmem:[#allocation4 + $0x7b8] sm:$0xff]
    %v1122 = vld [vmem:[#allocation4 + $0x7c0] sm:$0xff]
    %v1123 = vld [vmem:[#allocation4 + $0x7c8] sm:$0xff]
    %v1124 = vld [vmem:[#allocation4 + $0x7d0] sm:$0xff]
    %v1125 = vld [vmem:[#allocation4 + $0x7d8] sm:$0xff]
    %v1126 = vld [vmem:[#allocation4 + $0x7e0] sm:$0xff]
    %v1127 = vld [vmem:[#allocation4 + $0x7e8] sm:$0xff]
    %v1128 = vld [vmem:[#allocation4 + $0x7f0] sm:$0xff]
    %v1129 = vld [vmem:[#allocation4 + $0x7f8] sm:$0xff]
    %v1130 = vld [vmem:[%s9] sm:$0xf]
    %v1132 = vlaneseq
    %v1133 = vshrl.u32 %v1132, 7
    %v1134 = vsub.s32 0, %v1133
    %v1135 = vrot.slane %v1130, %v1134
    %v1136 = vlaneseq
    %v1137 = vshrl.u32 %v1136, 7
    %v1138 = vsub.s32 1, %v1137
    %v1139 = vrot.slane %v1130, %v1138
    %v1140 = vlaneseq
    %v1141 = vshrl.u32 %v1140, 7
    %v1142 = vsub.s32 2, %v1141
    %v1143 = vrot.slane %v1130, %v1142
    %v1144 = vlaneseq
    %v1145 = vshrl.u32 %v1144, 7
    %v1146 = vsub.s32 3, %v1145
    %v1147 = vrot.slane %v1130, %v1146
    %v1408 = vunpack.c.l.b16 %v874
    %v1409 = vunpack.c.h.b16 %v874
    %v1410 = vunpack.c.l.b16 %v875
    %v1411 = vunpack.c.h.b16 %v875
    %v1412 = vunpack.c.l.b16 %v876
    %v1413 = vunpack.c.h.b16 %v876
    %v1414 = vunpack.c.l.b16 %v877
    %v1415 = vunpack.c.h.b16 %v877
    %v1416 = vunpack.c.l.b16 %v878
    %v1417 = vunpack.c.h.b16 %v878
    %v1418 = vunpack.c.l.b16 %v879
    %v1419 = vunpack.c.h.b16 %v879
    %v1420 = vunpack.c.l.b16 %v880
    %v1421 = vunpack.c.h.b16 %v880
    %v1422 = vunpack.c.l.b16 %v881
    %v1423 = vunpack.c.h.b16 %v881
    %v1424 = vunpack.c.l.b16 %v882
    %v1425 = vunpack.c.h.b16 %v882
    %v1426 = vunpack.c.l.b16 %v883
    %v1427 = vunpack.c.h.b16 %v883
    %v1428 = vunpack.c.l.b16 %v884
    %v1429 = vunpack.c.h.b16 %v884
    %v1430 = vunpack.c.l.b16 %v885
    %v1431 = vunpack.c.h.b16 %v885
    %v1432 = vunpack.c.l.b16 %v886
    %v1433 = vunpack.c.h.b16 %v886
    %v1434 = vunpack.c.l.b16 %v887
    %v1435 = vunpack.c.h.b16 %v887
    %v1436 = vunpack.c.l.b16 %v888
    %v1437 = vunpack.c.h.b16 %v888
    %v1438 = vunpack.c.l.b16 %v889
    %v1439 = vunpack.c.h.b16 %v889
    %v1440 = vunpack.c.l.b16 %v890
    %v1441 = vunpack.c.h.b16 %v890
    %v1442 = vunpack.c.l.b16 %v891
    %v1443 = vunpack.c.h.b16 %v891
    %v1444 = vunpack.c.l.b16 %v892
    %v1445 = vunpack.c.h.b16 %v892
    %v1446 = vunpack.c.l.b16 %v893
    %v1447 = vunpack.c.h.b16 %v893
    %v1448 = vunpack.c.l.b16 %v894
    %v1449 = vunpack.c.h.b16 %v894
    %v1450 = vunpack.c.l.b16 %v895
    %v1451 = vunpack.c.h.b16 %v895
    %v1452 = vunpack.c.l.b16 %v896
    %v1453 = vunpack.c.h.b16 %v896
    %v1454 = vunpack.c.l.b16 %v897
    %v1455 = vunpack.c.h.b16 %v897
    %v1456 = vunpack.c.l.b16 %v898
    %v1457 = vunpack.c.h.b16 %v898
    %v1458 = vunpack.c.l.b16 %v899
    %v1459 = vunpack.c.h.b16 %v899
    %v1460 = vunpack.c.l.b16 %v900
    %v1461 = vunpack.c.h.b16 %v900
    %v1462 = vunpack.c.l.b16 %v901
    %v1463 = vunpack.c.h.b16 %v901
    %v1464 = vunpack.c.l.b16 %v902
    %v1465 = vunpack.c.h.b16 %v902
    %v1466 = vunpack.c.l.b16 %v903
    %v1467 = vunpack.c.h.b16 %v903
    %v1468 = vunpack.c.l.b16 %v904
    %v1469 = vunpack.c.h.b16 %v904
    %v1470 = vunpack.c.l.b16 %v905
    %v1471 = vunpack.c.h.b16 %v905
    %v1472 = vunpack.c.l.b16 %v906
    %v1473 = vunpack.c.h.b16 %v906
    %v1474 = vunpack.c.l.b16 %v907
    %v1475 = vunpack.c.h.b16 %v907
    %v1476 = vunpack.c.l.b16 %v908
    %v1477 = vunpack.c.h.b16 %v908
    %v1478 = vunpack.c.l.b16 %v909
    %v1479 = vunpack.c.h.b16 %v909
    %v1480 = vunpack.c.l.b16 %v910
    %v1481 = vunpack.c.h.b16 %v910
    %v1482 = vunpack.c.l.b16 %v911
    %v1483 = vunpack.c.h.b16 %v911
    %v1484 = vunpack.c.l.b16 %v912
    %v1485 = vunpack.c.h.b16 %v912
    %v1486 = vunpack.c.l.b16 %v913
    %v1487 = vunpack.c.h.b16 %v913
    %v1488 = vunpack.c.l.b16 %v914
    %v1489 = vunpack.c.h.b16 %v914
    %v1490 = vunpack.c.l.b16 %v915
    %v1491 = vunpack.c.h.b16 %v915
    %v1492 = vunpack.c.l.b16 %v916
    %v1493 = vunpack.c.h.b16 %v916
    %v1494 = vunpack.c.l.b16 %v917
    %v1495 = vunpack.c.h.b16 %v917
    %v1496 = vunpack.c.l.b16 %v918
    %v1497 = vunpack.c.h.b16 %v918
    %v1498 = vunpack.c.l.b16 %v919
    %v1499 = vunpack.c.h.b16 %v919
    %v1500 = vunpack.c.l.b16 %v920
    %v1501 = vunpack.c.h.b16 %v920
    %v1502 = vunpack.c.l.b16 %v921
    %v1503 = vunpack.c.h.b16 %v921
    %v1504 = vunpack.c.l.b16 %v922
    %v1505 = vunpack.c.h.b16 %v922
    %v1506 = vunpack.c.l.b16 %v923
    %v1507 = vunpack.c.h.b16 %v923
    %v1508 = vunpack.c.l.b16 %v924
    %v1509 = vunpack.c.h.b16 %v924
    %v1510 = vunpack.c.l.b16 %v925
    %v1511 = vunpack.c.h.b16 %v925
    %v1512 = vunpack.c.l.b16 %v926
    %v1513 = vunpack.c.h.b16 %v926
    %v1514 = vunpack.c.l.b16 %v927
    %v1515 = vunpack.c.h.b16 %v927
    %v1516 = vunpack.c.l.b16 %v928
    %v1517 = vunpack.c.h.b16 %v928
    %v1518 = vunpack.c.l.b16 %v929
    %v1519 = vunpack.c.h.b16 %v929
    %v1520 = vunpack.c.l.b16 %v930
    %v1521 = vunpack.c.h.b16 %v930
    %v1522 = vunpack.c.l.b16 %v931
    %v1523 = vunpack.c.h.b16 %v931
    %v1524 = vunpack.c.l.b16 %v932
    %v1525 = vunpack.c.h.b16 %v932
    %v1526 = vunpack.c.l.b16 %v933
    %v1527 = vunpack.c.h.b16 %v933
    %v1528 = vunpack.c.l.b16 %v934
    %v1529 = vunpack.c.h.b16 %v934
    %v1530 = vunpack.c.l.b16 %v935
    %v1531 = vunpack.c.h.b16 %v935
    %v1532 = vunpack.c.l.b16 %v936
    %v1533 = vunpack.c.h.b16 %v936
    %v1534 = vunpack.c.l.b16 %v937
    %v1535 = vunpack.c.h.b16 %v937
    %v1536 = vunpack.c.l.b16 %v938
    %v1537 = vunpack.c.h.b16 %v938
    %v1538 = vunpack.c.l.b16 %v939
    %v1539 = vunpack.c.h.b16 %v939
    %v1540 = vunpack.c.l.b16 %v940
    %v1541 = vunpack.c.h.b16 %v940
    %v1542 = vunpack.c.l.b16 %v941
    %v1543 = vunpack.c.h.b16 %v941
    %v1544 = vunpack.c.l.b16 %v942
    %v1545 = vunpack.c.h.b16 %v942
    %v1546 = vunpack.c.l.b16 %v943
    %v1547 = vunpack.c.h.b16 %v943
    %v1548 = vunpack.c.l.b16 %v944
    %v1549 = vunpack.c.h.b16 %v944
    %v1550 = vunpack.c.l.b16 %v945
    %v1551 = vunpack.c.h.b16 %v945
    %v1552 = vunpack.c.l.b16 %v946
    %v1553 = vunpack.c.h.b16 %v946
    %v1554 = vunpack.c.l.b16 %v947
    %v1555 = vunpack.c.h.b16 %v947
    %v1556 = vunpack.c.l.b16 %v948
    %v1557 = vunpack.c.h.b16 %v948
    %v1558 = vunpack.c.l.b16 %v949
    %v1559 = vunpack.c.h.b16 %v949
    %v1560 = vunpack.c.l.b16 %v950
    %v1561 = vunpack.c.h.b16 %v950
    %v1562 = vunpack.c.l.b16 %v951
    %v1563 = vunpack.c.h.b16 %v951
    %v1564 = vunpack.c.l.b16 %v952
    %v1565 = vunpack.c.h.b16 %v952
    %v1566 = vunpack.c.l.b16 %v953
    %v1567 = vunpack.c.h.b16 %v953
    %v1568 = vunpack.c.l.b16 %v954
    %v1569 = vunpack.c.h.b16 %v954
    %v1570 = vunpack.c.l.b16 %v955
    %v1571 = vunpack.c.h.b16 %v955
    %v1572 = vunpack.c.l.b16 %v956
    %v1573 = vunpack.c.h.b16 %v956
    %v1574 = vunpack.c.l.b16 %v957
    %v1575 = vunpack.c.h.b16 %v957
    %v1576 = vunpack.c.l.b16 %v958
    %v1577 = vunpack.c.h.b16 %v958
    %v1578 = vunpack.c.l.b16 %v959
    %v1579 = vunpack.c.h.b16 %v959
    %v1580 = vunpack.c.l.b16 %v960
    %v1581 = vunpack.c.h.b16 %v960
    %v1582 = vunpack.c.l.b16 %v961
    %v1583 = vunpack.c.h.b16 %v961
    %v1584 = vunpack.c.l.b16 %v962
    %v1585 = vunpack.c.h.b16 %v962
    %v1586 = vunpack.c.l.b16 %v963
    %v1587 = vunpack.c.h.b16 %v963
    %v1588 = vunpack.c.l.b16 %v964
    %v1589 = vunpack.c.h.b16 %v964
    %v1590 = vunpack.c.l.b16 %v965
    %v1591 = vunpack.c.h.b16 %v965
    %v1592 = vunpack.c.l.b16 %v966
    %v1593 = vunpack.c.h.b16 %v966
    %v1594 = vunpack.c.l.b16 %v967
    %v1595 = vunpack.c.h.b16 %v967
    %v1596 = vunpack.c.l.b16 %v968
    %v1597 = vunpack.c.h.b16 %v968
    %v1598 = vunpack.c.l.b16 %v969
    %v1599 = vunpack.c.h.b16 %v969
    %v1600 = vunpack.c.l.b16 %v970
    %v1601 = vunpack.c.h.b16 %v970
    %v1602 = vunpack.c.l.b16 %v971
    %v1603 = vunpack.c.h.b16 %v971
    %v1604 = vunpack.c.l.b16 %v972
    %v1605 = vunpack.c.h.b16 %v972
    %v1606 = vunpack.c.l.b16 %v973
    %v1607 = vunpack.c.h.b16 %v973
    %v1608 = vunpack.c.l.b16 %v974
    %v1609 = vunpack.c.h.b16 %v974
    %v1610 = vunpack.c.l.b16 %v975
    %v1611 = vunpack.c.h.b16 %v975
    %v1612 = vunpack.c.l.b16 %v976
    %v1613 = vunpack.c.h.b16 %v976
    %v1614 = vunpack.c.l.b16 %v977
    %v1615 = vunpack.c.h.b16 %v977
    %v1616 = vunpack.c.l.b16 %v978
    %v1617 = vunpack.c.h.b16 %v978
    %v1618 = vunpack.c.l.b16 %v979
    %v1619 = vunpack.c.h.b16 %v979
    %v1620 = vunpack.c.l.b16 %v980
    %v1621 = vunpack.c.h.b16 %v980
    %v1622 = vunpack.c.l.b16 %v981
    %v1623 = vunpack.c.h.b16 %v981
    %v1624 = vunpack.c.l.b16 %v982
    %v1625 = vunpack.c.h.b16 %v982
    %v1626 = vunpack.c.l.b16 %v983
    %v1627 = vunpack.c.h.b16 %v983
    %v1628 = vunpack.c.l.b16 %v984
    %v1629 = vunpack.c.h.b16 %v984
    %v1630 = vunpack.c.l.b16 %v985
    %v1631 = vunpack.c.h.b16 %v985
    %v1632 = vunpack.c.l.b16 %v986
    %v1633 = vunpack.c.h.b16 %v986
    %v1634 = vunpack.c.l.b16 %v987
    %v1635 = vunpack.c.h.b16 %v987
    %v1636 = vunpack.c.l.b16 %v988
    %v1637 = vunpack.c.h.b16 %v988
    %v1638 = vunpack.c.l.b16 %v989
    %v1639 = vunpack.c.h.b16 %v989
    %v1640 = vunpack.c.l.b16 %v990
    %v1641 = vunpack.c.h.b16 %v990
    %v1642 = vunpack.c.l.b16 %v991
    %v1643 = vunpack.c.h.b16 %v991
    %v1644 = vunpack.c.l.b16 %v992
    %v1645 = vunpack.c.h.b16 %v992
    %v1646 = vunpack.c.l.b16 %v993
    %v1647 = vunpack.c.h.b16 %v993
    %v1648 = vunpack.c.l.b16 %v994
    %v1649 = vunpack.c.h.b16 %v994
    %v1650 = vunpack.c.l.b16 %v995
    %v1651 = vunpack.c.h.b16 %v995
    %v1652 = vunpack.c.l.b16 %v996
    %v1653 = vunpack.c.h.b16 %v996
    %v1654 = vunpack.c.l.b16 %v997
    %v1655 = vunpack.c.h.b16 %v997
    %v1656 = vunpack.c.l.b16 %v998
    %v1657 = vunpack.c.h.b16 %v998
    %v1658 = vunpack.c.l.b16 %v999
    %v1659 = vunpack.c.h.b16 %v999
    %v1660 = vunpack.c.l.b16 %v1000
    %v1661 = vunpack.c.h.b16 %v1000
    %v1662 = vunpack.c.l.b16 %v1001
    %v1663 = vunpack.c.h.b16 %v1001
    %v1664 = vunpack.c.l.b16 %v1002
    %v1665 = vunpack.c.h.b16 %v1002
    %v1666 = vunpack.c.l.b16 %v1003
    %v1667 = vunpack.c.h.b16 %v1003
    %v1668 = vunpack.c.l.b16 %v1004
    %v1669 = vunpack.c.h.b16 %v1004
    %v1670 = vunpack.c.l.b16 %v1005
    %v1671 = vunpack.c.h.b16 %v1005
    %v1672 = vunpack.c.l.b16 %v1006
    %v1673 = vunpack.c.h.b16 %v1006
    %v1674 = vunpack.c.l.b16 %v1007
    %v1675 = vunpack.c.h.b16 %v1007
    %v1676 = vunpack.c.l.b16 %v1008
    %v1677 = vunpack.c.h.b16 %v1008
    %v1678 = vunpack.c.l.b16 %v1009
    %v1679 = vunpack.c.h.b16 %v1009
    %v1680 = vunpack.c.l.b16 %v1010
    %v1681 = vunpack.c.h.b16 %v1010
    %v1682 = vunpack.c.l.b16 %v1011
    %v1683 = vunpack.c.h.b16 %v1011
    %v1684 = vunpack.c.l.b16 %v1012
    %v1685 = vunpack.c.h.b16 %v1012
    %v1686 = vunpack.c.l.b16 %v1013
    %v1687 = vunpack.c.h.b16 %v1013
    %v1688 = vunpack.c.l.b16 %v1014
    %v1689 = vunpack.c.h.b16 %v1014
    %v1690 = vunpack.c.l.b16 %v1015
    %v1691 = vunpack.c.h.b16 %v1015
    %v1692 = vunpack.c.l.b16 %v1016
    %v1693 = vunpack.c.h.b16 %v1016
    %v1694 = vunpack.c.l.b16 %v1017
    %v1695 = vunpack.c.h.b16 %v1017
    %v1696 = vunpack.c.l.b16 %v1018
    %v1697 = vunpack.c.h.b16 %v1018
    %v1698 = vunpack.c.l.b16 %v1019
    %v1699 = vunpack.c.h.b16 %v1019
    %v1700 = vunpack.c.l.b16 %v1020
    %v1701 = vunpack.c.h.b16 %v1020
    %v1702 = vunpack.c.l.b16 %v1021
    %v1703 = vunpack.c.h.b16 %v1021
    %v1704 = vunpack.c.l.b16 %v1022
    %v1705 = vunpack.c.h.b16 %v1022
    %v1706 = vunpack.c.l.b16 %v1023
    %v1707 = vunpack.c.h.b16 %v1023
    %v1708 = vunpack.c.l.b16 %v1024
    %v1709 = vunpack.c.h.b16 %v1024
    %v1710 = vunpack.c.l.b16 %v1025
    %v1711 = vunpack.c.h.b16 %v1025
    %v1712 = vunpack.c.l.b16 %v1026
    %v1713 = vunpack.c.h.b16 %v1026
    %v1714 = vunpack.c.l.b16 %v1027
    %v1715 = vunpack.c.h.b16 %v1027
    %v1716 = vunpack.c.l.b16 %v1028
    %v1717 = vunpack.c.h.b16 %v1028
    %v1718 = vunpack.c.l.b16 %v1029
    %v1719 = vunpack.c.h.b16 %v1029
    %v1720 = vunpack.c.l.b16 %v1030
    %v1721 = vunpack.c.h.b16 %v1030
    %v1722 = vunpack.c.l.b16 %v1031
    %v1723 = vunpack.c.h.b16 %v1031
    %v1724 = vunpack.c.l.b16 %v1032
    %v1725 = vunpack.c.h.b16 %v1032
    %v1726 = vunpack.c.l.b16 %v1033
    %v1727 = vunpack.c.h.b16 %v1033
    %v1728 = vunpack.c.l.b16 %v1034
    %v1729 = vunpack.c.h.b16 %v1034
    %v1730 = vunpack.c.l.b16 %v1035
    %v1731 = vunpack.c.h.b16 %v1035
    %v1732 = vunpack.c.l.b16 %v1036
    %v1733 = vunpack.c.h.b16 %v1036
    %v1734 = vunpack.c.l.b16 %v1037
    %v1735 = vunpack.c.h.b16 %v1037
    %v1736 = vunpack.c.l.b16 %v1038
    %v1737 = vunpack.c.h.b16 %v1038
    %v1738 = vunpack.c.l.b16 %v1039
    %v1739 = vunpack.c.h.b16 %v1039
    %v1740 = vunpack.c.l.b16 %v1040
    %v1741 = vunpack.c.h.b16 %v1040
    %v1742 = vunpack.c.l.b16 %v1041
    %v1743 = vunpack.c.h.b16 %v1041
    %v1744 = vunpack.c.l.b16 %v1042
    %v1745 = vunpack.c.h.b16 %v1042
    %v1746 = vunpack.c.l.b16 %v1043
    %v1747 = vunpack.c.h.b16 %v1043
    %v1748 = vunpack.c.l.b16 %v1044
    %v1749 = vunpack.c.h.b16 %v1044
    %v1750 = vunpack.c.l.b16 %v1045
    %v1751 = vunpack.c.h.b16 %v1045
    %v1752 = vunpack.c.l.b16 %v1046
    %v1753 = vunpack.c.h.b16 %v1046
    %v1754 = vunpack.c.l.b16 %v1047
    %v1755 = vunpack.c.h.b16 %v1047
    %v1756 = vunpack.c.l.b16 %v1048
    %v1757 = vunpack.c.h.b16 %v1048
    %v1758 = vunpack.c.l.b16 %v1049
    %v1759 = vunpack.c.h.b16 %v1049
    %v1760 = vunpack.c.l.b16 %v1050
    %v1761 = vunpack.c.h.b16 %v1050
    %v1762 = vunpack.c.l.b16 %v1051
    %v1763 = vunpack.c.h.b16 %v1051
    %v1764 = vunpack.c.l.b16 %v1052
    %v1765 = vunpack.c.h.b16 %v1052
    %v1766 = vunpack.c.l.b16 %v1053
    %v1767 = vunpack.c.h.b16 %v1053
    %v1768 = vunpack.c.l.b16 %v1054
    %v1769 = vunpack.c.h.b16 %v1054
    %v1770 = vunpack.c.l.b16 %v1055
    %v1771 = vunpack.c.h.b16 %v1055
    %v1772 = vunpack.c.l.b16 %v1056
    %v1773 = vunpack.c.h.b16 %v1056
    %v1774 = vunpack.c.l.b16 %v1057
    %v1775 = vunpack.c.h.b16 %v1057
    %v1776 = vunpack.c.l.b16 %v1058
    %v1777 = vunpack.c.h.b16 %v1058
    %v1778 = vunpack.c.l.b16 %v1059
    %v1779 = vunpack.c.h.b16 %v1059
    %v1780 = vunpack.c.l.b16 %v1060
    %v1781 = vunpack.c.h.b16 %v1060
    %v1782 = vunpack.c.l.b16 %v1061
    %v1783 = vunpack.c.h.b16 %v1061
    %v1784 = vunpack.c.l.b16 %v1062
    %v1785 = vunpack.c.h.b16 %v1062
    %v1786 = vunpack.c.l.b16 %v1063
    %v1787 = vunpack.c.h.b16 %v1063
    %v1788 = vunpack.c.l.b16 %v1064
    %v1789 = vunpack.c.h.b16 %v1064
    %v1790 = vunpack.c.l.b16 %v1065
    %v1791 = vunpack.c.h.b16 %v1065
    %v1792 = vunpack.c.l.b16 %v1066
    %v1793 = vunpack.c.h.b16 %v1066
    %v1794 = vunpack.c.l.b16 %v1067
    %v1795 = vunpack.c.h.b16 %v1067
    %v1796 = vunpack.c.l.b16 %v1068
    %v1797 = vunpack.c.h.b16 %v1068
    %v1798 = vunpack.c.l.b16 %v1069
    %v1799 = vunpack.c.h.b16 %v1069
    %v1800 = vunpack.c.l.b16 %v1070
    %v1801 = vunpack.c.h.b16 %v1070
    %v1802 = vunpack.c.l.b16 %v1071
    %v1803 = vunpack.c.h.b16 %v1071
    %v1804 = vunpack.c.l.b16 %v1072
    %v1805 = vunpack.c.h.b16 %v1072
    %v1806 = vunpack.c.l.b16 %v1073
    %v1807 = vunpack.c.h.b16 %v1073
    %v1808 = vunpack.c.l.b16 %v1074
    %v1809 = vunpack.c.h.b16 %v1074
    %v1810 = vunpack.c.l.b16 %v1075
    %v1811 = vunpack.c.h.b16 %v1075
    %v1812 = vunpack.c.l.b16 %v1076
    %v1813 = vunpack.c.h.b16 %v1076
    %v1814 = vunpack.c.l.b16 %v1077
    %v1815 = vunpack.c.h.b16 %v1077
    %v1816 = vunpack.c.l.b16 %v1078
    %v1817 = vunpack.c.h.b16 %v1078
    %v1818 = vunpack.c.l.b16 %v1079
    %v1819 = vunpack.c.h.b16 %v1079
    %v1820 = vunpack.c.l.b16 %v1080
    %v1821 = vunpack.c.h.b16 %v1080
    %v1822 = vunpack.c.l.b16 %v1081
    %v1823 = vunpack.c.h.b16 %v1081
    %v1824 = vunpack.c.l.b16 %v1082
    %v1825 = vunpack.c.h.b16 %v1082
    %v1826 = vunpack.c.l.b16 %v1083
    %v1827 = vunpack.c.h.b16 %v1083
    %v1828 = vunpack.c.l.b16 %v1084
    %v1829 = vunpack.c.h.b16 %v1084
    %v1830 = vunpack.c.l.b16 %v1085
    %v1831 = vunpack.c.h.b16 %v1085
    %v1832 = vunpack.c.l.b16 %v1086
    %v1833 = vunpack.c.h.b16 %v1086
    %v1834 = vunpack.c.l.b16 %v1087
    %v1835 = vunpack.c.h.b16 %v1087
    %v1836 = vunpack.c.l.b16 %v1088
    %v1837 = vunpack.c.h.b16 %v1088
    %v1838 = vunpack.c.l.b16 %v1089
    %v1839 = vunpack.c.h.b16 %v1089
    %v1840 = vunpack.c.l.b16 %v1090
    %v1841 = vunpack.c.h.b16 %v1090
    %v1842 = vunpack.c.l.b16 %v1091
    %v1843 = vunpack.c.h.b16 %v1091
    %v1844 = vunpack.c.l.b16 %v1092
    %v1845 = vunpack.c.h.b16 %v1092
    %v1846 = vunpack.c.l.b16 %v1093
    %v1847 = vunpack.c.h.b16 %v1093
    %v1848 = vunpack.c.l.b16 %v1094
    %v1849 = vunpack.c.h.b16 %v1094
    %v1850 = vunpack.c.l.b16 %v1095
    %v1851 = vunpack.c.h.b16 %v1095
    %v1852 = vunpack.c.l.b16 %v1096
    %v1853 = vunpack.c.h.b16 %v1096
    %v1854 = vunpack.c.l.b16 %v1097
    %v1855 = vunpack.c.h.b16 %v1097
    %v1856 = vunpack.c.l.b16 %v1098
    %v1857 = vunpack.c.h.b16 %v1098
    %v1858 = vunpack.c.l.b16 %v1099
    %v1859 = vunpack.c.h.b16 %v1099
    %v1860 = vunpack.c.l.b16 %v1100
    %v1861 = vunpack.c.h.b16 %v1100
    %v1862 = vunpack.c.l.b16 %v1101
    %v1863 = vunpack.c.h.b16 %v1101
    %v1864 = vunpack.c.l.b16 %v1102
    %v1865 = vunpack.c.h.b16 %v1102
    %v1866 = vunpack.c.l.b16 %v1103
    %v1867 = vunpack.c.h.b16 %v1103
    %v1868 = vunpack.c.l.b16 %v1104
    %v1869 = vunpack.c.h.b16 %v1104
    %v1870 = vunpack.c.l.b16 %v1105
    %v1871 = vunpack.c.h.b16 %v1105
    %v1872 = vunpack.c.l.b16 %v1106
    %v1873 = vunpack.c.h.b16 %v1106
    %v1874 = vunpack.c.l.b16 %v1107
    %v1875 = vunpack.c.h.b16 %v1107
    %v1876 = vunpack.c.l.b16 %v1108
    %v1877 = vunpack.c.h.b16 %v1108
    %v1878 = vunpack.c.l.b16 %v1109
    %v1879 = vunpack.c.h.b16 %v1109
    %v1880 = vunpack.c.l.b16 %v1110
    %v1881 = vunpack.c.h.b16 %v1110
    %v1882 = vunpack.c.l.b16 %v1111
    %v1883 = vunpack.c.h.b16 %v1111
    %v1884 = vunpack.c.l.b16 %v1112
    %v1885 = vunpack.c.h.b16 %v1112
    %v1886 = vunpack.c.l.b16 %v1113
    %v1887 = vunpack.c.h.b16 %v1113
    %v1888 = vunpack.c.l.b16 %v1114
    %v1889 = vunpack.c.h.b16 %v1114
    %v1890 = vunpack.c.l.b16 %v1115
    %v1891 = vunpack.c.h.b16 %v1115
    %v1892 = vunpack.c.l.b16 %v1116
    %v1893 = vunpack.c.h.b16 %v1116
    %v1894 = vunpack.c.l.b16 %v1117
    %v1895 = vunpack.c.h.b16 %v1117
    %v1896 = vunpack.c.l.b16 %v1118
    %v1897 = vunpack.c.h.b16 %v1118
    %v1898 = vunpack.c.l.b16 %v1119
    %v1899 = vunpack.c.h.b16 %v1119
    %v1900 = vunpack.c.l.b16 %v1120
    %v1901 = vunpack.c.h.b16 %v1120
    %v1902 = vunpack.c.l.b16 %v1121
    %v1903 = vunpack.c.h.b16 %v1121
    %v1904 = vunpack.c.l.b16 %v1122
    %v1905 = vunpack.c.h.b16 %v1122
    %v1906 = vunpack.c.l.b16 %v1123
    %v1907 = vunpack.c.h.b16 %v1123
    %v1908 = vunpack.c.l.b16 %v1124
    %v1909 = vunpack.c.h.b16 %v1124
    %v1910 = vunpack.c.l.b16 %v1125
    %v1911 = vunpack.c.h.b16 %v1125
    %v1912 = vunpack.c.l.b16 %v1126
    %v1913 = vunpack.c.h.b16 %v1126
    %v1914 = vunpack.c.l.b16 %v1127
    %v1915 = vunpack.c.h.b16 %v1127
    %v1916 = vunpack.c.l.b16 %v1128
    %v1917 = vunpack.c.h.b16 %v1128
    %v1918 = vunpack.c.l.b16 %v1129
    %v1919 = vunpack.c.h.b16 %v1129
    %v1920 = vpack.c.b16 %v1412, %v1408
    %v1921 = vpack.c.b16 %v1413, %v1409
    %v1922 = vpack.c.b16 %v1414, %v1410
    %v1923 = vpack.c.b16 %v1415, %v1411
    %v1924 = vpack.c.b16 %v1420, %v1416
    %v1925 = vpack.c.b16 %v1421, %v1417
    %v1926 = vpack.c.b16 %v1422, %v1418
    %v1927 = vpack.c.b16 %v1423, %v1419
    %v1928 = vpack.c.b16 %v1428, %v1424
    %v1929 = vpack.c.b16 %v1429, %v1425
    %v1930 = vpack.c.b16 %v1430, %v1426
    %v1931 = vpack.c.b16 %v1431, %v1427
    %v1932 = vpack.c.b16 %v1436, %v1432
    %v1933 = vpack.c.b16 %v1437, %v1433
    %v1934 = vpack.c.b16 %v1438, %v1434
    %v1935 = vpack.c.b16 %v1439, %v1435
    %v1936 = vpack.c.b16 %v1444, %v1440
    %v1937 = vpack.c.b16 %v1445, %v1441
    %v1938 = vpack.c.b16 %v1446, %v1442
    %v1939 = vpack.c.b16 %v1447, %v1443
    %v1940 = vpack.c.b16 %v1452, %v1448
    %v1941 = vpack.c.b16 %v1453, %v1449
    %v1942 = vpack.c.b16 %v1454, %v1450
    %v1943 = vpack.c.b16 %v1455, %v1451
    %v1944 = vpack.c.b16 %v1460, %v1456
    %v1945 = vpack.c.b16 %v1461, %v1457
    %v1946 = vpack.c.b16 %v1462, %v1458
    %v1947 = vpack.c.b16 %v1463, %v1459
    %v1948 = vpack.c.b16 %v1468, %v1464
    %v1949 = vpack.c.b16 %v1469, %v1465
    %v1950 = vpack.c.b16 %v1470, %v1466
    %v1951 = vpack.c.b16 %v1471, %v1467
    %v1952 = vpack.c.b16 %v1476, %v1472
    %v1953 = vpack.c.b16 %v1477, %v1473
    %v1954 = vpack.c.b16 %v1478, %v1474
    %v1955 = vpack.c.b16 %v1479, %v1475
    %v1956 = vpack.c.b16 %v1484, %v1480
    %v1957 = vpack.c.b16 %v1485, %v1481
    %v1958 = vpack.c.b16 %v1486, %v1482
    %v1959 = vpack.c.b16 %v1487, %v1483
    %v1960 = vpack.c.b16 %v1492, %v1488
    %v1961 = vpack.c.b16 %v1493, %v1489
    %v1962 = vpack.c.b16 %v1494, %v1490
    %v1963 = vpack.c.b16 %v1495, %v1491
    %v1964 = vpack.c.b16 %v1500, %v1496
    %v1965 = vpack.c.b16 %v1501, %v1497
    %v1966 = vpack.c.b16 %v1502, %v1498
    %v1967 = vpack.c.b16 %v1503, %v1499
    %v1968 = vpack.c.b16 %v1508, %v1504
    %v1969 = vpack.c.b16 %v1509, %v1505
    %v1970 = vpack.c.b16 %v1510, %v1506
    %v1971 = vpack.c.b16 %v1511, %v1507
    %v1972 = vpack.c.b16 %v1516, %v1512
    %v1973 = vpack.c.b16 %v1517, %v1513
    %v1974 = vpack.c.b16 %v1518, %v1514
    %v1975 = vpack.c.b16 %v1519, %v1515
    %v1976 = vpack.c.b16 %v1524, %v1520
    %v1977 = vpack.c.b16 %v1525, %v1521
    %v1978 = vpack.c.b16 %v1526, %v1522
    %v1979 = vpack.c.b16 %v1527, %v1523
    %v1980 = vpack.c.b16 %v1532, %v1528
    %v1981 = vpack.c.b16 %v1533, %v1529
    %v1982 = vpack.c.b16 %v1534, %v1530
    %v1983 = vpack.c.b16 %v1535, %v1531
    %v1984 = vpack.c.b16 %v1540, %v1536
    %v1985 = vpack.c.b16 %v1541, %v1537
    %v1986 = vpack.c.b16 %v1542, %v1538
    %v1987 = vpack.c.b16 %v1543, %v1539
    %v1988 = vpack.c.b16 %v1548, %v1544
    %v1989 = vpack.c.b16 %v1549, %v1545
    %v1990 = vpack.c.b16 %v1550, %v1546
    %v1991 = vpack.c.b16 %v1551, %v1547
    %v1992 = vpack.c.b16 %v1556, %v1552
    %v1993 = vpack.c.b16 %v1557, %v1553
    %v1994 = vpack.c.b16 %v1558, %v1554
    %v1995 = vpack.c.b16 %v1559, %v1555
    %v1996 = vpack.c.b16 %v1564, %v1560
    %v1997 = vpack.c.b16 %v1565, %v1561
    %v1998 = vpack.c.b16 %v1566, %v1562
    %v1999 = vpack.c.b16 %v1567, %v1563
    %v2000 = vpack.c.b16 %v1572, %v1568
    %v2001 = vpack.c.b16 %v1573, %v1569
    %v2002 = vpack.c.b16 %v1574, %v1570
    %v2003 = vpack.c.b16 %v1575, %v1571
    %v2004 = vpack.c.b16 %v1580, %v1576
    %v2005 = vpack.c.b16 %v1581, %v1577
    %v2006 = vpack.c.b16 %v1582, %v1578
    %v2007 = vpack.c.b16 %v1583, %v1579
    %v2008 = vpack.c.b16 %v1588, %v1584
    %v2009 = vpack.c.b16 %v1589, %v1585
    %v2010 = vpack.c.b16 %v1590, %v1586
    %v2011 = vpack.c.b16 %v1591, %v1587
    %v2012 = vpack.c.b16 %v1596, %v1592
    %v2013 = vpack.c.b16 %v1597, %v1593
    %v2014 = vpack.c.b16 %v1598, %v1594
    %v2015 = vpack.c.b16 %v1599, %v1595
    %v2016 = vpack.c.b16 %v1604, %v1600
    %v2017 = vpack.c.b16 %v1605, %v1601
    %v2018 = vpack.c.b16 %v1606, %v1602
    %v2019 = vpack.c.b16 %v1607, %v1603
    %v2020 = vpack.c.b16 %v1612, %v1608
    %v2021 = vpack.c.b16 %v1613, %v1609
    %v2022 = vpack.c.b16 %v1614, %v1610
    %v2023 = vpack.c.b16 %v1615, %v1611
    %v2024 = vpack.c.b16 %v1620, %v1616
    %v2025 = vpack.c.b16 %v1621, %v1617
    %v2026 = vpack.c.b16 %v1622, %v1618
    %v2027 = vpack.c.b16 %v1623, %v1619
    %v2028 = vpack.c.b16 %v1628, %v1624
    %v2029 = vpack.c.b16 %v1629, %v1625
    %v2030 = vpack.c.b16 %v1630, %v1626
    %v2031 = vpack.c.b16 %v1631, %v1627
    %v2032 = vpack.c.b16 %v1636, %v1632
    %v2033 = vpack.c.b16 %v1637, %v1633
    %v2034 = vpack.c.b16 %v1638, %v1634
    %v2035 = vpack.c.b16 %v1639, %v1635
    %v2036 = vpack.c.b16 %v1644, %v1640
    %v2037 = vpack.c.b16 %v1645, %v1641
    %v2038 = vpack.c.b16 %v1646, %v1642
    %v2039 = vpack.c.b16 %v1647, %v1643
    %v2040 = vpack.c.b16 %v1652, %v1648
    %v2041 = vpack.c.b16 %v1653, %v1649
    %v2042 = vpack.c.b16 %v1654, %v1650
    %v2043 = vpack.c.b16 %v1655, %v1651
    %v2044 = vpack.c.b16 %v1660, %v1656
    %v2045 = vpack.c.b16 %v1661, %v1657
    %v2046 = vpack.c.b16 %v1662, %v1658
    %v2047 = vpack.c.b16 %v1663, %v1659
    %v2048 = vpack.c.b16 %v1668, %v1664
    %v2049 = vpack.c.b16 %v1669, %v1665
    %v2050 = vpack.c.b16 %v1670, %v1666
    %v2051 = vpack.c.b16 %v1671, %v1667
    %v2052 = vpack.c.b16 %v1676, %v1672
    %v2053 = vpack.c.b16 %v1677, %v1673
    %v2054 = vpack.c.b16 %v1678, %v1674
    %v2055 = vpack.c.b16 %v1679, %v1675
    %v2056 = vpack.c.b16 %v1684, %v1680
    %v2057 = vpack.c.b16 %v1685, %v1681
    %v2058 = vpack.c.b16 %v1686, %v1682
    %v2059 = vpack.c.b16 %v1687, %v1683
    %v2060 = vpack.c.b16 %v1692, %v1688
    %v2061 = vpack.c.b16 %v1693, %v1689
    %v2062 = vpack.c.b16 %v1694, %v1690
    %v2063 = vpack.c.b16 %v1695, %v1691
    %v2064 = vpack.c.b16 %v1700, %v1696
    %v2065 = vpack.c.b16 %v1701, %v1697
    %v2066 = vpack.c.b16 %v1702, %v1698
    %v2067 = vpack.c.b16 %v1703, %v1699
    %v2068 = vpack.c.b16 %v1708, %v1704
    %v2069 = vpack.c.b16 %v1709, %v1705
    %v2070 = vpack.c.b16 %v1710, %v1706
    %v2071 = vpack.c.b16 %v1711, %v1707
    %v2072 = vpack.c.b16 %v1716, %v1712
    %v2073 = vpack.c.b16 %v1717, %v1713
    %v2074 = vpack.c.b16 %v1718, %v1714
    %v2075 = vpack.c.b16 %v1719, %v1715
    %v2076 = vpack.c.b16 %v1724, %v1720
    %v2077 = vpack.c.b16 %v1725, %v1721
    %v2078 = vpack.c.b16 %v1726, %v1722
    %v2079 = vpack.c.b16 %v1727, %v1723
    %v2080 = vpack.c.b16 %v1732, %v1728
    %v2081 = vpack.c.b16 %v1733, %v1729
    %v2082 = vpack.c.b16 %v1734, %v1730
    %v2083 = vpack.c.b16 %v1735, %v1731
    %v2084 = vpack.c.b16 %v1740, %v1736
    %v2085 = vpack.c.b16 %v1741, %v1737
    %v2086 = vpack.c.b16 %v1742, %v1738
    %v2087 = vpack.c.b16 %v1743, %v1739
    %v2088 = vpack.c.b16 %v1748, %v1744
    %v2089 = vpack.c.b16 %v1749, %v1745
    %v2090 = vpack.c.b16 %v1750, %v1746
    %v2091 = vpack.c.b16 %v1751, %v1747
    %v2092 = vpack.c.b16 %v1756, %v1752
    %v2093 = vpack.c.b16 %v1757, %v1753
    %v2094 = vpack.c.b16 %v1758, %v1754
    %v2095 = vpack.c.b16 %v1759, %v1755
    %v2096 = vpack.c.b16 %v1764, %v1760
    %v2097 = vpack.c.b16 %v1765, %v1761
    %v2098 = vpack.c.b16 %v1766, %v1762
    %v2099 = vpack.c.b16 %v1767, %v1763
    %v2100 = vpack.c.b16 %v1772, %v1768
    %v2101 = vpack.c.b16 %v1773, %v1769
    %v2102 = vpack.c.b16 %v1774, %v1770
    %v2103 = vpack.c.b16 %v1775, %v1771
    %v2104 = vpack.c.b16 %v1780, %v1776
    %v2105 = vpack.c.b16 %v1781, %v1777
    %v2106 = vpack.c.b16 %v1782, %v1778
    %v2107 = vpack.c.b16 %v1783, %v1779
    %v2108 = vpack.c.b16 %v1788, %v1784
    %v2109 = vpack.c.b16 %v1789, %v1785
    %v2110 = vpack.c.b16 %v1790, %v1786
    %v2111 = vpack.c.b16 %v1791, %v1787
    %v2112 = vpack.c.b16 %v1796, %v1792
    %v2113 = vpack.c.b16 %v1797, %v1793
    %v2114 = vpack.c.b16 %v1798, %v1794
    %v2115 = vpack.c.b16 %v1799, %v1795
    %v2116 = vpack.c.b16 %v1804, %v1800
    %v2117 = vpack.c.b16 %v1805, %v1801
    %v2118 = vpack.c.b16 %v1806, %v1802
    %v2119 = vpack.c.b16 %v1807, %v1803
    %v2120 = vpack.c.b16 %v1812, %v1808
    %v2121 = vpack.c.b16 %v1813, %v1809
    %v2122 = vpack.c.b16 %v1814, %v1810
    %v2123 = vpack.c.b16 %v1815, %v1811
    %v2124 = vpack.c.b16 %v1820, %v1816
    %v2125 = vpack.c.b16 %v1821, %v1817
    %v2126 = vpack.c.b16 %v1822, %v1818
    %v2127 = vpack.c.b16 %v1823, %v1819
    %v2128 = vpack.c.b16 %v1828, %v1824
    %v2129 = vpack.c.b16 %v1829, %v1825
    %v2130 = vpack.c.b16 %v1830, %v1826
    %v2131 = vpack.c.b16 %v1831, %v1827
    %v2132 = vpack.c.b16 %v1836, %v1832
    %v2133 = vpack.c.b16 %v1837, %v1833
    %v2134 = vpack.c.b16 %v1838, %v1834
    %v2135 = vpack.c.b16 %v1839, %v1835
    %v2136 = vpack.c.b16 %v1844, %v1840
    %v2137 = vpack.c.b16 %v1845, %v1841
    %v2138 = vpack.c.b16 %v1846, %v1842
    %v2139 = vpack.c.b16 %v1847, %v1843
    %v2140 = vpack.c.b16 %v1852, %v1848
    %v2141 = vpack.c.b16 %v1853, %v1849
    %v2142 = vpack.c.b16 %v1854, %v1850
    %v2143 = vpack.c.b16 %v1855, %v1851
    %v2144 = vpack.c.b16 %v1860, %v1856
    %v2145 = vpack.c.b16 %v1861, %v1857
    %v2146 = vpack.c.b16 %v1862, %v1858
    %v2147 = vpack.c.b16 %v1863, %v1859
    %v2148 = vpack.c.b16 %v1868, %v1864
    %v2149 = vpack.c.b16 %v1869, %v1865
    %v2150 = vpack.c.b16 %v1870, %v1866
    %v2151 = vpack.c.b16 %v1871, %v1867
    %v2152 = vpack.c.b16 %v1876, %v1872
    %v2153 = vpack.c.b16 %v1877, %v1873
    %v2154 = vpack.c.b16 %v1878, %v1874
    %v2155 = vpack.c.b16 %v1879, %v1875
    %v2156 = vpack.c.b16 %v1884, %v1880
    %v2157 = vpack.c.b16 %v1885, %v1881
    %v2158 = vpack.c.b16 %v1886, %v1882
    %v2159 = vpack.c.b16 %v1887, %v1883
    %v2160 = vpack.c.b16 %v1892, %v1888
    %v2161 = vpack.c.b16 %v1893, %v1889
    %v2162 = vpack.c.b16 %v1894, %v1890
    %v2163 = vpack.c.b16 %v1895, %v1891
    %v2164 = vpack.c.b16 %v1900, %v1896
    %v2165 = vpack.c.b16 %v1901, %v1897
    %v2166 = vpack.c.b16 %v1902, %v1898
    %v2167 = vpack.c.b16 %v1903, %v1899
    %v2168 = vpack.c.b16 %v1908, %v1904
    %v2169 = vpack.c.b16 %v1909, %v1905
    %v2170 = vpack.c.b16 %v1910, %v1906
    %v2171 = vpack.c.b16 %v1911, %v1907
    %v2172 = vpack.c.b16 %v1916, %v1912
    %v2173 = vpack.c.b16 %v1917, %v1913
    %v2174 = vpack.c.b16 %v1918, %v1914
    %v2175 = vpack.c.b16 %v1919, %v1915
    %2432 = vmatprep.subr.bf16.mxu0 %v1921
    %2433 = vmatpush1.bf16.msra.mxu0 %v1920
    %2434 = vmatprep.subr.bf16.mxu0 %v1925
    %2435 = vmatpush1.bf16.msra.mxu0 %v1924
    %2436 = vmatprep.subr.bf16.mxu0 %v1929
    %2437 = vmatpush1.bf16.msra.mxu0 %v1928
    %2438 = vmatprep.subr.bf16.mxu0 %v1933
    %2439 = vmatpush1.bf16.msra.mxu0 %v1932
    %2440 = vmatprep.subr.bf16.mxu0 %v1937
    %2441 = vmatpush1.bf16.msra.mxu0 %v1936
    %2442 = vmatprep.subr.bf16.mxu0 %v1941
    %2443 = vmatpush1.bf16.msra.mxu0 %v1940
    %2444 = vmatprep.subr.bf16.mxu0 %v1945
    %2445 = vmatpush1.bf16.msra.mxu0 %v1944
    %2446 = vmatprep.subr.bf16.mxu0 %v1949
    %2447 = vmatpush1.bf16.msra.mxu0 %v1948
    %2448 = vmatprep.subr.bf16.mxu0 %v1953
    %2449 = vmatpush1.bf16.msra.mxu0 %v1952
    %2450 = vmatprep.subr.bf16.mxu0 %v1957
    %2451 = vmatpush1.bf16.msra.mxu0 %v1956
    %2452 = vmatprep.subr.bf16.mxu0 %v1961
    %2453 = vmatpush1.bf16.msra.mxu0 %v1960
    %2454 = vmatprep.subr.bf16.mxu0 %v1965
    %2455 = vmatpush1.bf16.msra.mxu0 %v1964
    %2456 = vmatprep.subr.bf16.mxu0 %v1969
    %2457 = vmatpush1.bf16.msra.mxu0 %v1968
    %2458 = vmatprep.subr.bf16.mxu0 %v1973
    %2459 = vmatpush1.bf16.msra.mxu0 %v1972
    %2460 = vmatprep.subr.bf16.mxu0 %v1977
    %2461 = vmatpush1.bf16.msra.mxu0 %v1976
    %2462 = vmatprep.subr.bf16.mxu0 %v1981
    %2463 = vmatpush1.bf16.msra.mxu0 %v1980
    %2464 = vmatprep.mubr.bf16.mxu0 %v867
    %2465 = vmatmul.mubr.bf16.gmra.mrb[0].mxu0 %v866
    %v2466 = vpop.f32.mrb[0].mxu0
    %v2467 = vadd.f32 %v1135, %v2466
    %v2468 = vpop.f32.mrb[0].mxu0
    %v2469 = vadd.f32 %v1139, %v2468
    %v2470 = vpop.f32.mrb[0].mxu0
    %v2471 = vadd.f32 %v1135, %v2470
    %v2472 = vpop.f32.mrb[0].mxu0
    %v2473 = vadd.f32 %v1139, %v2472
    %2474 = vdwg.mxu0
    %2475 = vmatprep.subr.bf16.mxu0 %v1985
    %2476 = vmatpush1.bf16.msra.mxu0 %v1984
    %2477 = vmatprep.subr.bf16.mxu0 %v1989
    %2478 = vmatpush1.bf16.msra.mxu0 %v1988
    %2479 = vmatprep.subr.bf16.mxu0 %v1993
    %2480 = vmatpush1.bf16.msra.mxu0 %v1992
    %2481 = vmatprep.subr.bf16.mxu0 %v1997
    %2482 = vmatpush1.bf16.msra.mxu0 %v1996
    %2483 = vmatprep.subr.bf16.mxu0 %v2001
    %2484 = vmatpush1.bf16.msra.mxu0 %v2000
    %2485 = vmatprep.subr.bf16.mxu0 %v2005
    %2486 = vmatpush1.bf16.msra.mxu0 %v2004
    %2487 = vmatprep.subr.bf16.mxu0 %v2009
    %2488 = vmatpush1.bf16.msra.mxu0 %v2008
    %2489 = vmatprep.subr.bf16.mxu0 %v2013
    %2490 = vmatpush1.bf16.msra.mxu0 %v2012
    %2491 = vmatprep.subr.bf16.mxu0 %v2017
    %2492 = vmatpush1.bf16.msra.mxu0 %v2016
    %2493 = vmatprep.subr.bf16.mxu0 %v2021
    %2494 = vmatpush1.bf16.msra.mxu0 %v2020
    %2495 = vmatprep.subr.bf16.mxu0 %v2025
    %2496 = vmatpush1.bf16.msra.mxu0 %v2024
    %2497 = vmatprep.subr.bf16.mxu0 %v2029
    %2498 = vmatpush1.bf16.msra.mxu0 %v2028
    %2499 = vmatprep.subr.bf16.mxu0 %v2033
    %2500 = vmatpush1.bf16.msra.mxu0 %v2032
    %2501 = vmatprep.subr.bf16.mxu0 %v2037
    %2502 = vmatpush1.bf16.msra.mxu0 %v2036
    %2503 = vmatprep.subr.bf16.mxu0 %v2041
    %2504 = vmatpush1.bf16.msra.mxu0 %v2040
    %2505 = vmatprep.subr.bf16.mxu0 %v2045
    %2506 = vmatpush1.bf16.msra.mxu0 %v2044
    %2507 = vmatprep.mubr.bf16.mxu0 %v869
    %2508 = vmatmul.mubr.bf16.gmra.mrb[0].mxu0 %v868
    %v2509 = vpop.f32.mrb[0].mxu0
    %v2510 = vadd.f32 %v2467, %v2509
    %v2511 = vpop.f32.mrb[0].mxu0
    %v2512 = vadd.f32 %v2469, %v2511
    %v2513 = vpop.f32.mrb[0].mxu0
    %v2514 = vadd.f32 %v2471, %v2513
    %v2515 = vpop.f32.mrb[0].mxu0
    %v2516 = vadd.f32 %v2473, %v2515
    %2517 = vdwg.mxu0
    %2518 = vmatprep.subr.bf16.mxu0 %v2049
    %2519 = vmatpush1.bf16.msra.mxu0 %v2048
    %2520 = vmatprep.subr.bf16.mxu0 %v2053
    %2521 = vmatpush1.bf16.msra.mxu0 %v2052
    %2522 = vmatprep.subr.bf16.mxu0 %v2057
    %2523 = vmatpush1.bf16.msra.mxu0 %v2056
    %2524 = vmatprep.subr.bf16.mxu0 %v2061
    %2525 = vmatpush1.bf16.msra.mxu0 %v2060
    %2526 = vmatprep.subr.bf16.mxu0 %v2065
    %2527 = vmatpush1.bf16.msra.mxu0 %v2064
    %2528 = vmatprep.subr.bf16.mxu0 %v2069
    %2529 = vmatpush1.bf16.msra.mxu0 %v2068
    %2530 = vmatprep.subr.bf16.mxu0 %v2073
    %2531 = vmatpush1.bf16.msra.mxu0 %v2072
    %2532 = vmatprep.subr.bf16.mxu0 %v2077
    %2533 = vmatpush1.bf16.msra.mxu0 %v2076
    %2534 = vmatprep.subr.bf16.mxu0 %v2081
    %2535 = vmatpush1.bf16.msra.mxu0 %v2080
    %2536 = vmatprep.subr.bf16.mxu0 %v2085
    %2537 = vmatpush1.bf16.msra.mxu0 %v2084
    %2538 = vmatprep.subr.bf16.mxu0 %v2089
    %2539 = vmatpush1.bf16.msra.mxu0 %v2088
    %2540 = vmatprep.subr.bf16.mxu0 %v2093
    %2541 = vmatpush1.bf16.msra.mxu0 %v2092
    %2542 = vmatprep.subr.bf16.mxu0 %v2097
    %2543 = vmatpush1.bf16.msra.mxu0 %v2096
    %2544 = vmatprep.subr.bf16.mxu0 %v2101
    %2545 = vmatpush1.bf16.msra.mxu0 %v2100
    %2546 = vmatprep.subr.bf16.mxu0 %v2105
    %2547 = vmatpush1.bf16.msra.mxu0 %v2104
    %2548 = vmatprep.subr.bf16.mxu0 %v2109
    %2549 = vmatpush1.bf16.msra.mxu0 %v2108
    %2550 = vmatprep.mubr.bf16.mxu0 %v871
    %2551 = vmatmul.mubr.bf16.gmra.mrb[0].mxu0 %v870
    %v2552 = vpop.f32.mrb[0].mxu0
    %v2553 = vadd.f32 %v2510, %v2552
    %v2554 = vpop.f32.mrb[0].mxu0
    %v2555 = vadd.f32 %v2512, %v2554
    %v2556 = vpop.f32.mrb[0].mxu0
    %v2557 = vadd.f32 %v2514, %v2556
    %v2558 = vpop.f32.mrb[0].mxu0
    %v2559 = vadd.f32 %v2516, %v2558
    %2560 = vdwg.mxu0
    %2561 = vmatprep.subr.bf16.mxu0 %v2113
    %2562 = vmatpush1.bf16.msra.mxu0 %v2112
    %2563 = vmatprep.subr.bf16.mxu0 %v2117
    %2564 = vmatpush1.bf16.msra.mxu0 %v2116
    %2565 = vmatprep.subr.bf16.mxu0 %v2121
    %2566 = vmatpush1.bf16.msra.mxu0 %v2120
    %2567 = vmatprep.subr.bf16.mxu0 %v2125
    %2568 = vmatpush1.bf16.msra.mxu0 %v2124
    %2569 = vmatprep.subr.bf16.mxu0 %v2129
    %2570 = vmatpush1.bf16.msra.mxu0 %v2128
    %2571 = vmatprep.subr.bf16.mxu0 %v2133
    %2572 = vmatpush1.bf16.msra.mxu0 %v2132
    %2573 = vmatprep.subr.bf16.mxu0 %v2137
    %2574 = vmatpush1.bf16.msra.mxu0 %v2136
    %2575 = vmatprep.subr.bf16.mxu0 %v2141
    %2576 = vmatpush1.bf16.msra.mxu0 %v2140
    %2577 = vmatprep.subr.bf16.mxu0 %v2145
    %2578 = vmatpush1.bf16.msra.mxu0 %v2144
    %2579 = vmatprep.subr.bf16.mxu0 %v2149
    %2580 = vmatpush1.bf16.msra.mxu0 %v2148
    %2581 = vmatprep.subr.bf16.mxu0 %v2153
    %2582 = vmatpush1.bf16.msra.mxu0 %v2152
    %2583 = vmatprep.subr.bf16.mxu0 %v2157
    %2584 = vmatpush1.bf16.msra.mxu0 %v2156
    %2585 = vmatprep.subr.bf16.mxu0 %v2161
    %2586 = vmatpush1.bf16.msra.mxu0 %v2160
    %2587 = vmatprep.subr.bf16.mxu0 %v2165
    %2588 = vmatpush1.bf16.msra.mxu0 %v2164
    %2589 = vmatprep.subr.bf16.mxu0 %v2169
    %2590 = vmatpush1.bf16.msra.mxu0 %v2168
    %2591 = vmatprep.subr.bf16.mxu0 %v2173
    %2592 = vmatpush1.bf16.msra.mxu0 %v2172
    %2593 = vmatprep.mubr.bf16.mxu0 %v873
    %2594 = vmatmul.mubr.bf16.gmra.mrb[0].mxu0 %v872
    %v2595 = vpop.f32.mrb[0].mxu0
    %v2596 = vadd.f32 %v2553, %v2595
    %v2597 = vpop.f32.mrb[0].mxu0
    %v2598 = vadd.f32 %v2555, %v2597
    %v2599 = vpop.f32.mrb[0].mxu0
    %v2600 = vadd.f32 %v2557, %v2599
    %v2601 = vpop.f32.mrb[0].mxu0
    %v2602 = vadd.f32 %v2559, %v2601
    %2603 = vdwg.mxu0
    %2604 = vmatprep.subr.bf16.mxu0 %v1923
    %2605 = vmatpush1.bf16.msra.mxu0 %v1922
    %2606 = vmatprep.subr.bf16.mxu0 %v1927
    %2607 = vmatpush1.bf16.msra.mxu0 %v1926
    %2608 = vmatprep.subr.bf16.mxu0 %v1931
    %2609 = vmatpush1.bf16.msra.mxu0 %v1930
    %2610 = vmatprep.subr.bf16.mxu0 %v1935
    %2611 = vmatpush1.bf16.msra.mxu0 %v1934
    %2612 = vmatprep.subr.bf16.mxu0 %v1939
    %2613 = vmatpush1.bf16.msra.mxu0 %v1938
    %2614 = vmatprep.subr.bf16.mxu0 %v1943
    %2615 = vmatpush1.bf16.msra.mxu0 %v1942
    %2616 = vmatprep.subr.bf16.mxu0 %v1947
    %2617 = vmatpush1.bf16.msra.mxu0 %v1946
    %2618 = vmatprep.subr.bf16.mxu0 %v1951
    %2619 = vmatpush1.bf16.msra.mxu0 %v1950
    %2620 = vmatprep.subr.bf16.mxu0 %v1955
    %2621 = vmatpush1.bf16.msra.mxu0 %v1954
    %2622 = vmatprep.subr.bf16.mxu0 %v1959
    %2623 = vmatpush1.bf16.msra.mxu0 %v1958
    %2624 = vmatprep.subr.bf16.mxu0 %v1963
    %2625 = vmatpush1.bf16.msra.mxu0 %v1962
    %2626 = vmatprep.subr.bf16.mxu0 %v1967
    %2627 = vmatpush1.bf16.msra.mxu0 %v1966
    %2628 = vmatprep.subr.bf16.mxu0 %v1971
    %2629 = vmatpush1.bf16.msra.mxu0 %v1970
    %2630 = vmatprep.subr.bf16.mxu0 %v1975
    %2631 = vmatpush1.bf16.msra.mxu0 %v1974
    %2632 = vmatprep.subr.bf16.mxu0 %v1979
    %2633 = vmatpush1.bf16.msra.mxu0 %v1978
    %2634 = vmatprep.subr.bf16.mxu0 %v1983
    %2635 = vmatpush1.bf16.msra.mxu0 %v1982
    %2636 = vmatprep.mubr.bf16.mxu0 %v867
    %2637 = vmatmul.mubr.bf16.gmra.mrb[0].mxu0 %v866
    %v2638 = vpop.f32.mrb[0].mxu0
    %v2639 = vadd.f32 %v1143, %v2638
    %v2640 = vpop.f32.mrb[0].mxu0
    %v2641 = vadd.f32 %v1147, %v2640
    %v2642 = vpop.f32.mrb[0].mxu0
    %v2643 = vadd.f32 %v1143, %v2642
    %v2644 = vpop.f32.mrb[0].mxu0
    %v2645 = vadd.f32 %v1147, %v2644
    %2646 = vdwg.mxu0
    %2647 = vmatprep.subr.bf16.mxu0 %v1987
    %2648 = vmatpush1.bf16.msra.mxu0 %v1986
    %2649 = vmatprep.subr.bf16.mxu0 %v1991
    %2650 = vmatpush1.bf16.msra.mxu0 %v1990
    %2651 = vmatprep.subr.bf16.mxu0 %v1995
    %2652 = vmatpush1.bf16.msra.mxu0 %v1994
    %2653 = vmatprep.subr.bf16.mxu0 %v1999
    %2654 = vmatpush1.bf16.msra.mxu0 %v1998
    %2655 = vmatprep.subr.bf16.mxu0 %v2003
    %2656 = vmatpush1.bf16.msra.mxu0 %v2002
    %2657 = vmatprep.subr.bf16.mxu0 %v2007
    %2658 = vmatpush1.bf16.msra.mxu0 %v2006
    %2659 = vmatprep.subr.bf16.mxu0 %v2011
    %2660 = vmatpush1.bf16.msra.mxu0 %v2010
    %2661 = vmatprep.subr.bf16.mxu0 %v2015
    %2662 = vmatpush1.bf16.msra.mxu0 %v2014
    %2663 = vmatprep.subr.bf16.mxu0 %v2019
    %2664 = vmatpush1.bf16.msra.mxu0 %v2018
    %2665 = vmatprep.subr.bf16.mxu0 %v2023
    %2666 = vmatpush1.bf16.msra.mxu0 %v2022
    %2667 = vmatprep.subr.bf16.mxu0 %v2027
    %2668 = vmatpush1.bf16.msra.mxu0 %v2026
    %2669 = vmatprep.subr.bf16.mxu0 %v2031
    %2670 = vmatpush1.bf16.msra.mxu0 %v2030
    %2671 = vmatprep.subr.bf16.mxu0 %v2035
    %2672 = vmatpush1.bf16.msra.mxu0 %v2034
    %2673 = vmatprep.subr.bf16.mxu0 %v2039
    %2674 = vmatpush1.bf16.msra.mxu0 %v2038
    %2675 = vmatprep.subr.bf16.mxu0 %v2043
    %2676 = vmatpush1.bf16.msra.mxu0 %v2042
    %2677 = vmatprep.subr.bf16.mxu0 %v2047
    %2678 = vmatpush1.bf16.msra.mxu0 %v2046
    %2679 = vmatprep.mubr.bf16.mxu0 %v869
    %2680 = vmatmul.mubr.bf16.gmra.mrb[0].mxu0 %v868
    %v2681 = vpop.f32.mrb[0].mxu0
    %v2682 = vadd.f32 %v2639, %v2681
    %v2683 = vpop.f32.mrb[0].mxu0
    %v2684 = vadd.f32 %v2641, %v2683
    %v2685 = vpop.f32.mrb[0].mxu0
    %v2686 = vadd.f32 %v2643, %v2685
    %v2687 = vpop.f32.mrb[0].mxu0
    %v2688 = vadd.f32 %v2645, %v2687
    %2689 = vdwg.mxu0
    %2690 = vmatprep.subr.bf16.mxu0 %v2051
    %2691 = vmatpush1.bf16.msra.mxu0 %v2050
    %2692 = vmatprep.subr.bf16.mxu0 %v2055
    %2693 = vmatpush1.bf16.msra.mxu0 %v2054
    %2694 = vmatprep.subr.bf16.mxu0 %v2059
    %2695 = vmatpush1.bf16.msra.mxu0 %v2058
    %2696 = vmatprep.subr.bf16.mxu0 %v2063
    %2697 = vmatpush1.bf16.msra.mxu0 %v2062
    %2698 = vmatprep.subr.bf16.mxu0 %v2067
    %2699 = vmatpush1.bf16.msra.mxu0 %v2066
    %2700 = vmatprep.subr.bf16.mxu0 %v2071
    %2701 = vmatpush1.bf16.msra.mxu0 %v2070
    %2702 = vmatprep.subr.bf16.mxu0 %v2075
    %2703 = vmatpush1.bf16.msra.mxu0 %v2074
    %2704 = vmatprep.subr.bf16.mxu0 %v2079
    %2705 = vmatpush1.bf16.msra.mxu0 %v2078
    %2706 = vmatprep.subr.bf16.mxu0 %v2083
    %2707 = vmatpush1.bf16.msra.mxu0 %v2082
    %2708 = vmatprep.subr.bf16.mxu0 %v2087
    %2709 = vmatpush1.bf16.msra.mxu0 %v2086
    %2710 = vmatprep.subr.bf16.mxu0 %v2091
    %2711 = vmatpush1.bf16.msra.mxu0 %v2090
    %2712 = vmatprep.subr.bf16.mxu0 %v2095
    %2713 = vmatpush1.bf16.msra.mxu0 %v2094
    %2714 = vmatprep.subr.bf16.mxu0 %v2099
    %2715 = vmatpush1.bf16.msra.mxu0 %v2098
    %2716 = vmatprep.subr.bf16.mxu0 %v2103
    %2717 = vmatpush1.bf16.msra.mxu0 %v2102
    %2718 = vmatprep.subr.bf16.mxu0 %v2107
    %2719 = vmatpush1.bf16.msra.mxu0 %v2106
    %2720 = vmatprep.subr.bf16.mxu0 %v2111
    %2721 = vmatpush1.bf16.msra.mxu0 %v2110
    %2722 = vmatprep.mubr.bf16.mxu0 %v871
    %2723 = vmatmul.mubr.bf16.gmra.mrb[0].mxu0 %v870
    %v2724 = vpop.f32.mrb[0].mxu0
    %v2725 = vadd.f32 %v2682, %v2724
    %v2726 = vpop.f32.mrb[0].mxu0
    %v2727 = vadd.f32 %v2684, %v2726
    %v2728 = vpop.f32.mrb[0].mxu0
    %v2729 = vadd.f32 %v2686, %v2728
    %v2730 = vpop.f32.mrb[0].mxu0
    %v2731 = vadd.f32 %v2688, %v2730
    %2732 = vdwg.mxu0
    %2733 = vmatprep.subr.bf16.mxu0 %v2115
    %2734 = vmatpush1.bf16.msra.mxu0 %v2114
    %2735 = vmatprep.subr.bf16.mxu0 %v2119
    %2736 = vmatpush1.bf16.msra.mxu0 %v2118
    %2737 = vmatprep.subr.bf16.mxu0 %v2123
    %2738 = vmatpush1.bf16.msra.mxu0 %v2122
    %2739 = vmatprep.subr.bf16.mxu0 %v2127
    %2740 = vmatpush1.bf16.msra.mxu0 %v2126
    %2741 = vmatprep.subr.bf16.mxu0 %v2131
    %2742 = vmatpush1.bf16.msra.mxu0 %v2130
    %2743 = vmatprep.subr.bf16.mxu0 %v2135
    %2744 = vmatpush1.bf16.msra.mxu0 %v2134
    %2745 = vmatprep.subr.bf16.mxu0 %v2139
    %2746 = vmatpush1.bf16.msra.mxu0 %v2138
    %2747 = vmatprep.subr.bf16.mxu0 %v2143
    %2748 = vmatpush1.bf16.msra.mxu0 %v2142
    %2749 = vmatprep.subr.bf16.mxu0 %v2147
    %2750 = vmatpush1.bf16.msra.mxu0 %v2146
    %2751 = vmatprep.subr.bf16.mxu0 %v2151
    %2752 = vmatpush1.bf16.msra.mxu0 %v2150
    %2753 = vmatprep.subr.bf16.mxu0 %v2155
    %2754 = vmatpush1.bf16.msra.mxu0 %v2154
    %2755 = vmatprep.subr.bf16.mxu0 %v2159
    %2756 = vmatpush1.bf16.msra.mxu0 %v2158
    %2757 = vmatprep.subr.bf16.mxu0 %v2163
    %2758 = vmatpush1.bf16.msra.mxu0 %v2162
    %2759 = vmatprep.subr.bf16.mxu0 %v2167
    %2760 = vmatpush1.bf16.msra.mxu0 %v2166
    %2761 = vmatprep.subr.bf16.mxu0 %v2171
    %2762 = vmatpush1.bf16.msra.mxu0 %v2170
    %2763 = vmatprep.subr.bf16.mxu0 %v2175
    %2764 = vmatpush1.bf16.msra.mxu0 %v2174
    %2765 = vmatprep.mubr.bf16.mxu0 %v873
    %2766 = vmatmul.mubr.bf16.gmra.mrb[0].mxu0 %v872
    %v2767 = vpop.f32.mrb[0].mxu0
    %v2768 = vadd.f32 %v2725, %v2767
    %v2769 = vpop.f32.mrb[0].mxu0
    %v2770 = vadd.f32 %v2727, %v2769
    %v2771 = vpop.f32.mrb[0].mxu0
    %v2772 = vadd.f32 %v2729, %v2771
    %v2773 = vpop.f32.mrb[0].mxu0
    %v2774 = vadd.f32 %v2731, %v2773
    %2775 = vdwg.mxu0
    %v2776 = vmax.f32 %v2596, 0.0
    %v2777 = vmax.f32 %v2598, 0.0
    %v2778 = vmax.f32 %v2768, 0.0
    %v2779 = vmax.f32 %v2770, 0.0
    %v2780 = vmax.f32 %v2600, 0.0
    %v2781 = vmax.f32 %v2602, 0.0
    %v2782 = vmax.f32 %v2772, 0.0
    %v2783 = vmax.f32 %v2774, 0.0
    %v2784 = vpack.c.bf16 %v2780, %v2776
    %v2785 = vpack.c.bf16 %v2781, %v2777
    %v2786 = vpack.c.bf16 %v2782, %v2778
    %v2787 = vpack.c.bf16 %v2783, %v2779
    %v2788 = vld [vmem:[%s10] sm:$0xff]
    %v2789 = vld [vmem:[%s10 + $0x8] sm:$0xff]
    %v2790 = vld [vmem:[%s10 + $0x10] sm:$0xff]
    %v2791 = vld [vmem:[%s10 + $0x18] sm:$0xff]
    %v2792 = vld [vmem:[%s10 + $0x20] sm:$0xff]
    %v2793 = vld [vmem:[%s10 + $0x28] sm:$0xff]
    %v2794 = vld [vmem:[%s10 + $0x30] sm:$0xff]
    %v2795 = vld [vmem:[%s10 + $0x38] sm:$0xff]
    %v2796 = vld [vmem:[%s10 + $0x40] sm:$0xff]
    %v2797 = vld [vmem:[%s10 + $0x48] sm:$0xff]
    %v2798 = vld [vmem:[%s10 + $0x50] sm:$0xff]
    %v2799 = vld [vmem:[%s10 + $0x58] sm:$0xff]
    %v2800 = vld [vmem:[%s10 + $0x60] sm:$0xff]
    %v2801 = vld [vmem:[%s10 + $0x68] sm:$0xff]
    %v2802 = vld [vmem:[%s10 + $0x70] sm:$0xff]
    %v2803 = vld [vmem:[%s10 + $0x78] sm:$0xff]
    %v2804 = vld [vmem:[%s10 + $0x80] sm:$0xff]
    %v2805 = vld [vmem:[%s10 + $0x88] sm:$0xff]
    %v2806 = vld [vmem:[%s10 + $0x90] sm:$0xff]
    %v2807 = vld [vmem:[%s10 + $0x98] sm:$0xff]
    %v2808 = vld [vmem:[%s10 + $0xa0] sm:$0xff]
    %v2809 = vld [vmem:[%s10 + $0xa8] sm:$0xff]
    %v2810 = vld [vmem:[%s10 + $0xb0] sm:$0xff]
    %v2811 = vld [vmem:[%s10 + $0xb8] sm:$0xff]
    %v2812 = vld [vmem:[%s10 + $0xc0] sm:$0xff]
    %v2813 = vld [vmem:[%s10 + $0xc8] sm:$0xff]
    %v2814 = vld [vmem:[%s10 + $0xd0] sm:$0xff]
    %v2815 = vld [vmem:[%s10 + $0xd8] sm:$0xff]
    %v2816 = vld [vmem:[%s10 + $0xe0] sm:$0xff]
    %v2817 = vld [vmem:[%s10 + $0xe8] sm:$0xff]
    %v2818 = vld [vmem:[%s10 + $0xf0] sm:$0xff]
    %v2819 = vld [vmem:[%s10 + $0xf8] sm:$0xff]
    %v2820 = vld [vmem:[%s10 + $0x100] sm:$0xff]
    %v2821 = vld [vmem:[%s10 + $0x108] sm:$0xff]
    %v2822 = vld [vmem:[%s10 + $0x110] sm:$0xff]
    %v2823 = vld [vmem:[%s10 + $0x118] sm:$0xff]
    %v2824 = vld [vmem:[%s10 + $0x120] sm:$0xff]
    %v2825 = vld [vmem:[%s10 + $0x128] sm:$0xff]
    %v2826 = vld [vmem:[%s10 + $0x130] sm:$0xff]
    %v2827 = vld [vmem:[%s10 + $0x138] sm:$0xff]
    %v2828 = vld [vmem:[%s10 + $0x140] sm:$0xff]
    %v2829 = vld [vmem:[%s10 + $0x148] sm:$0xff]
    %v2830 = vld [vmem:[%s10 + $0x150] sm:$0xff]
    %v2831 = vld [vmem:[%s10 + $0x158] sm:$0xff]
    %v2832 = vld [vmem:[%s10 + $0x160] sm:$0xff]
    %v2833 = vld [vmem:[%s10 + $0x168] sm:$0xff]
    %v2834 = vld [vmem:[%s10 + $0x170] sm:$0xff]
    %v2835 = vld [vmem:[%s10 + $0x178] sm:$0xff]
    %v2836 = vld [vmem:[%s10 + $0x180] sm:$0xff]
    %v2837 = vld [vmem:[%s10 + $0x188] sm:$0xff]
    %v2838 = vld [vmem:[%s10 + $0x190] sm:$0xff]
    %v2839 = vld [vmem:[%s10 + $0x198] sm:$0xff]
    %v2840 = vld [vmem:[%s10 + $0x1a0] sm:$0xff]
    %v2841 = vld [vmem:[%s10 + $0x1a8] sm:$0xff]
    %v2842 = vld [vmem:[%s10 + $0x1b0] sm:$0xff]
    %v2843 = vld [vmem:[%s10 + $0x1b8] sm:$0xff]
    %v2844 = vld [vmem:[%s10 + $0x1c0] sm:$0xff]
    %v2845 = vld [vmem:[%s10 + $0x1c8] sm:$0xff]
    %v2846 = vld [vmem:[%s10 + $0x1d0] sm:$0xff]
    %v2847 = vld [vmem:[%s10 + $0x1d8] sm:$0xff]
    %v2848 = vld [vmem:[%s10 + $0x1e0] sm:$0xff]
    %v2849 = vld [vmem:[%s10 + $0x1e8] sm:$0xff]
    %v2850 = vld [vmem:[%s10 + $0x1f0] sm:$0xff]
    %v2851 = vld [vmem:[%s10 + $0x1f8] sm:$0xff]
    %v2852 = vld [vmem:[%s11] sm:$0x3]
    %v2854 = vlaneseq
    %v2855 = vshrl.u32 %v2854, 7
    %v2856 = vsub.s32 0, %v2855
    %v2857 = vrot.slane %v2852, %v2856
    %v2858 = vlaneseq
    %v2859 = vshrl.u32 %v2858, 7
    %v2860 = vsub.s32 1, %v2859
    %v2861 = vrot.slane %v2852, %v2860
    %v2928 = vunpack.c.l.b16 %v2788
    %v2929 = vunpack.c.h.b16 %v2788
    %v2930 = vunpack.c.l.b16 %v2789
    %v2931 = vunpack.c.h.b16 %v2789
    %v2932 = vunpack.c.l.b16 %v2790
    %v2933 = vunpack.c.h.b16 %v2790
    %v2934 = vunpack.c.l.b16 %v2791
    %v2935 = vunpack.c.h.b16 %v2791
    %v2936 = vunpack.c.l.b16 %v2792
    %v2937 = vunpack.c.h.b16 %v2792
    %v2938 = vunpack.c.l.b16 %v2793
    %v2939 = vunpack.c.h.b16 %v2793
    %v2940 = vunpack.c.l.b16 %v2794
    %v2941 = vunpack.c.h.b16 %v2794
    %v2942 = vunpack.c.l.b16 %v2795
    %v2943 = vunpack.c.h.b16 %v2795
    %v2944 = vunpack.c.l.b16 %v2796
    %v2945 = vunpack.c.h.b16 %v2796
    %v2946 = vunpack.c.l.b16 %v2797
    %v2947 = vunpack.c.h.b16 %v2797
    %v2948 = vunpack.c.l.b16 %v2798
    %v2949 = vunpack.c.h.b16 %v2798
    %v2950 = vunpack.c.l.b16 %v2799
    %v2951 = vunpack.c.h.b16 %v2799
    %v2952 = vunpack.c.l.b16 %v2800
    %v2953 = vunpack.c.h.b16 %v2800
    %v2954 = vunpack.c.l.b16 %v2801
    %v2955 = vunpack.c.h.b16 %v2801
    %v2956 = vunpack.c.l.b16 %v2802
    %v2957 = vunpack.c.h.b16 %v2802
    %v2958 = vunpack.c.l.b16 %v2803
    %v2959 = vunpack.c.h.b16 %v2803
    %v2960 = vunpack.c.l.b16 %v2804
    %v2961 = vunpack.c.h.b16 %v2804
    %v2962 = vunpack.c.l.b16 %v2805
    %v2963 = vunpack.c.h.b16 %v2805
    %v2964 = vunpack.c.l.b16 %v2806
    %v2965 = vunpack.c.h.b16 %v2806
    %v2966 = vunpack.c.l.b16 %v2807
    %v2967 = vunpack.c.h.b16 %v2807
    %v2968 = vunpack.c.l.b16 %v2808
    %v2969 = vunpack.c.h.b16 %v2808
    %v2970 = vunpack.c.l.b16 %v2809
    %v2971 = vunpack.c.h.b16 %v2809
    %v2972 = vunpack.c.l.b16 %v2810
    %v2973 = vunpack.c.h.b16 %v2810
    %v2974 = vunpack.c.l.b16 %v2811
    %v2975 = vunpack.c.h.b16 %v2811
    %v2976 = vunpack.c.l.b16 %v2812
    %v2977 = vunpack.c.h.b16 %v2812
    %v2978 = vunpack.c.l.b16 %v2813
    %v2979 = vunpack.c.h.b16 %v2813
    %v2980 = vunpack.c.l.b16 %v2814
    %v2981 = vunpack.c.h.b16 %v2814
    %v2982 = vunpack.c.l.b16 %v2815
    %v2983 = vunpack.c.h.b16 %v2815
    %v2984 = vunpack.c.l.b16 %v2816
    %v2985 = vunpack.c.h.b16 %v2816
    %v2986 = vunpack.c.l.b16 %v2817
    %v2987 = vunpack.c.h.b16 %v2817
    %v2988 = vunpack.c.l.b16 %v2818
    %v2989 = vunpack.c.h.b16 %v2818
    %v2990 = vunpack.c.l.b16 %v2819
    %v2991 = vunpack.c.h.b16 %v2819
    %v2992 = vunpack.c.l.b16 %v2820
    %v2993 = vunpack.c.h.b16 %v2820
    %v2994 = vunpack.c.l.b16 %v2821
    %v2995 = vunpack.c.h.b16 %v2821
    %v2996 = vunpack.c.l.b16 %v2822
    %v2997 = vunpack.c.h.b16 %v2822
    %v2998 = vunpack.c.l.b16 %v2823
    %v2999 = vunpack.c.h.b16 %v2823
    %v3000 = vunpack.c.l.b16 %v2824
    %v3001 = vunpack.c.h.b16 %v2824
    %v3002 = vunpack.c.l.b16 %v2825
    %v3003 = vunpack.c.h.b16 %v2825
    %v3004 = vunpack.c.l.b16 %v2826
    %v3005 = vunpack.c.h.b16 %v2826
    %v3006 = vunpack.c.l.b16 %v2827
    %v3007 = vunpack.c.h.b16 %v2827
    %v3008 = vunpack.c.l.b16 %v2828
    %v3009 = vunpack.c.h.b16 %v2828
    %v3010 = vunpack.c.l.b16 %v2829
    %v3011 = vunpack.c.h.b16 %v2829
    %v3012 = vunpack.c.l.b16 %v2830
    %v3013 = vunpack.c.h.b16 %v2830
    %v3014 = vunpack.c.l.b16 %v2831
    %v3015 = vunpack.c.h.b16 %v2831
    %v3016 = vunpack.c.l.b16 %v2832
    %v3017 = vunpack.c.h.b16 %v2832
    %v3018 = vunpack.c.l.b16 %v2833
    %v3019 = vunpack.c.h.b16 %v2833
    %v3020 = vunpack.c.l.b16 %v2834
    %v3021 = vunpack.c.h.b16 %v2834
    %v3022 = vunpack.c.l.b16 %v2835
    %v3023 = vunpack.c.h.b16 %v2835
    %v3024 = vunpack.c.l.b16 %v2836
    %v3025 = vunpack.c.h.b16 %v2836
    %v3026 = vunpack.c.l.b16 %v2837
    %v3027 = vunpack.c.h.b16 %v2837
    %v3028 = vunpack.c.l.b16 %v2838
    %v3029 = vunpack.c.h.b16 %v2838
    %v3030 = vunpack.c.l.b16 %v2839
    %v3031 = vunpack.c.h.b16 %v2839
    %v3032 = vunpack.c.l.b16 %v2840
    %v3033 = vunpack.c.h.b16 %v2840
    %v3034 = vunpack.c.l.b16 %v2841
    %v3035 = vunpack.c.h.b16 %v2841
    %v3036 = vunpack.c.l.b16 %v2842
    %v3037 = vunpack.c.h.b16 %v2842
    %v3038 = vunpack.c.l.b16 %v2843
    %v3039 = vunpack.c.h.b16 %v2843
    %v3040 = vunpack.c.l.b16 %v2844
    %v3041 = vunpack.c.h.b16 %v2844
    %v3042 = vunpack.c.l.b16 %v2845
    %v3043 = vunpack.c.h.b16 %v2845
    %v3044 = vunpack.c.l.b16 %v2846
    %v3045 = vunpack.c.h.b16 %v2846
    %v3046 = vunpack.c.l.b16 %v2847
    %v3047 = vunpack.c.h.b16 %v2847
    %v3048 = vunpack.c.l.b16 %v2848
    %v3049 = vunpack.c.h.b16 %v2848
    %v3050 = vunpack.c.l.b16 %v2849
    %v3051 = vunpack.c.h.b16 %v2849
    %v3052 = vunpack.c.l.b16 %v2850
    %v3053 = vunpack.c.h.b16 %v2850
    %v3054 = vunpack.c.l.b16 %v2851
    %v3055 = vunpack.c.h.b16 %v2851
    %v3056 = vpack.c.b16 %v2930, %v2928
    %v3057 = vpack.c.b16 %v2931, %v2929
    %v3058 = vpack.c.b16 %v2934, %v2932
    %v3059 = vpack.c.b16 %v2935, %v2933
    %v3060 = vpack.c.b16 %v2938, %v2936
    %v3061 = vpack.c.b16 %v2939, %v2937
    %v3062 = vpack.c.b16 %v2942, %v2940
    %v3063 = vpack.c.b16 %v2943, %v2941
    %v3064 = vpack.c.b16 %v2946, %v2944
    %v3065 = vpack.c.b16 %v2947, %v2945
    %v3066 = vpack.c.b16 %v2950, %v2948
    %v3067 = vpack.c.b16 %v2951, %v2949
    %v3068 = vpack.c.b16 %v2954, %v2952
    %v3069 = vpack.c.b16 %v2955, %v2953
    %v3070 = vpack.c.b16 %v2958, %v2956
    %v3071 = vpack.c.b16 %v2959, %v2957
    %v3072 = vpack.c.b16 %v2962, %v2960
    %v3073 = vpack.c.b16 %v2963, %v2961
    %v3074 = vpack.c.b16 %v2966, %v2964
    %v3075 = vpack.c.b16 %v2967, %v2965
    %v3076 = vpack.c.b16 %v2970, %v2968
    %v3077 = vpack.c.b16 %v2971, %v2969
    %v3078 = vpack.c.b16 %v2974, %v2972
    %v3079 = vpack.c.b16 %v2975, %v2973
    %v3080 = vpack.c.b16 %v2978, %v2976
    %v3081 = vpack.c.b16 %v2979, %v2977
    %v3082 = vpack.c.b16 %v2982, %v2980
    %v3083 = vpack.c.b16 %v2983, %v2981
    %v3084 = vpack.c.b16 %v2986, %v2984
    %v3085 = vpack.c.b16 %v2987, %v2985
    %v3086 = vpack.c.b16 %v2990, %v2988
    %v3087 = vpack.c.b16 %v2991, %v2989
    %v3088 = vpack.c.b16 %v2994, %v2992
    %v3089 = vpack.c.b16 %v2995, %v2993
    %v3090 = vpack.c.b16 %v2998, %v2996
    %v3091 = vpack.c.b16 %v2999, %v2997
    %v3092 = vpack.c.b16 %v3002, %v3000
    %v3093 = vpack.c.b16 %v3003, %v3001
    %v3094 = vpack.c.b16 %v3006, %v3004
    %v3095 = vpack.c.b16 %v3007, %v3005
    %v3096 = vpack.c.b16 %v3010, %v3008
    %v3097 = vpack.c.b16 %v3011, %v3009
    %v3098 = vpack.c.b16 %v3014, %v3012
    %v3099 = vpack.c.b16 %v3015, %v3013
    %v3100 = vpack.c.b16 %v3018, %v3016
    %v3101 = vpack.c.b16 %v3019, %v3017
    %v3102 = vpack.c.b16 %v3022, %v3020
    %v3103 = vpack.c.b16 %v3023, %v3021
    %v3104 = vpack.c.b16 %v3026, %v3024
    %v3105 = vpack.c.b16 %v3027, %v3025
    %v3106 = vpack.c.b16 %v3030, %v3028
    %v3107 = vpack.c.b16 %v3031, %v3029
    %v3108 = vpack.c.b16 %v3034, %v3032
    %v3109 = vpack.c.b16 %v3035, %v3033
    %v3110 = vpack.c.b16 %v3038, %v3036
    %v3111 = vpack.c.b16 %v3039, %v3037
    %v3112 = vpack.c.b16 %v3042, %v3040
    %v3113 = vpack.c.b16 %v3043, %v3041
    %v3114 = vpack.c.b16 %v3046, %v3044
    %v3115 = vpack.c.b16 %v3047, %v3045
    %v3116 = vpack.c.b16 %v3050, %v3048
    %v3117 = vpack.c.b16 %v3051, %v3049
    %v3118 = vpack.c.b16 %v3054, %v3052
    %v3119 = vpack.c.b16 %v3055, %v3053
    %3184 = vmatprep.subr.bf16.mxu0 %v3057
    %3185 = vmatpush1.bf16.msra.mxu0 %v3056
    %3186 = vmatprep.subr.bf16.mxu0 %v3059
    %3187 = vmatpush1.bf16.msra.mxu0 %v3058
    %3188 = vmatprep.subr.bf16.mxu0 %v3061
    %3189 = vmatpush1.bf16.msra.mxu0 %v3060
    %3190 = vmatprep.subr.bf16.mxu0 %v3063
    %3191 = vmatpush1.bf16.msra.mxu0 %v3062
    %3192 = vmatprep.subr.bf16.mxu0 %v3065
    %3193 = vmatpush1.bf16.msra.mxu0 %v3064
    %3194 = vmatprep.subr.bf16.mxu0 %v3067
    %3195 = vmatpush1.bf16.msra.mxu0 %v3066
    %3196 = vmatprep.subr.bf16.mxu0 %v3069
    %3197 = vmatpush1.bf16.msra.mxu0 %v3068
    %3198 = vmatprep.subr.bf16.mxu0 %v3071
    %3199 = vmatpush1.bf16.msra.mxu0 %v3070
    %3200 = vmatprep.subr.bf16.mxu0 %v3073
    %3201 = vmatpush1.bf16.msra.mxu0 %v3072
    %3202 = vmatprep.subr.bf16.mxu0 %v3075
    %3203 = vmatpush1.bf16.msra.mxu0 %v3074
    %3204 = vmatprep.subr.bf16.mxu0 %v3077
    %3205 = vmatpush1.bf16.msra.mxu0 %v3076
    %3206 = vmatprep.subr.bf16.mxu0 %v3079
    %3207 = vmatpush1.bf16.msra.mxu0 %v3078
    %3208 = vmatprep.subr.bf16.mxu0 %v3081
    %3209 = vmatpush1.bf16.msra.mxu0 %v3080
    %3210 = vmatprep.subr.bf16.mxu0 %v3083
    %3211 = vmatpush1.bf16.msra.mxu0 %v3082
    %3212 = vmatprep.subr.bf16.mxu0 %v3085
    %3213 = vmatpush1.bf16.msra.mxu0 %v3084
    %3214 = vmatprep.subr.bf16.mxu0 %v3087
    %3215 = vmatpush1.bf16.msra.mxu0 %v3086
    %3216 = vmatprep.mubr.bf16.mxu0 %v2785
    %3217 = vmatmul.mubr.bf16.gmra.mrb[0].mxu0 %v2784
    %v3218 = vpop.f32.mrb[0].mxu0
    %v3219 = vadd.f32 %v2857, %v3218
    %v3220 = vpop.f32.mrb[0].mxu0
    %v3221 = vadd.f32 %v2861, %v3220
    %v3222 = vpop.f32.mrb[0].mxu0
    %v3223 = vadd.f32 %v2857, %v3222
    %v3224 = vpop.f32.mrb[0].mxu0
    %v3225 = vadd.f32 %v2861, %v3224
    %3226 = vdwg.mxu0
    %3227 = vmatprep.subr.bf16.mxu0 %v3089
    %3228 = vmatpush1.bf16.msra.mxu0 %v3088
    %3229 = vmatprep.subr.bf16.mxu0 %v3091
    %3230 = vmatpush1.bf16.msra.mxu0 %v3090
    %3231 = vmatprep.subr.bf16.mxu0 %v3093
    %3232 = vmatpush1.bf16.msra.mxu0 %v3092
    %3233 = vmatprep.subr.bf16.mxu0 %v3095
    %3234 = vmatpush1.bf16.msra.mxu0 %v3094
    %3235 = vmatprep.subr.bf16.mxu0 %v3097
    %3236 = vmatpush1.bf16.msra.mxu0 %v3096
    %3237 = vmatprep.subr.bf16.mxu0 %v3099
    %3238 = vmatpush1.bf16.msra.mxu0 %v3098
    %3239 = vmatprep.subr.bf16.mxu0 %v3101
    %3240 = vmatpush1.bf16.msra.mxu0 %v3100
    %3241 = vmatprep.subr.bf16.mxu0 %v3103
    %3242 = vmatpush1.bf16.msra.mxu0 %v3102
    %3243 = vmatprep.subr.bf16.mxu0 %v3105
    %3244 = vmatpush1.bf16.msra.mxu0 %v3104
    %3245 = vmatprep.subr.bf16.mxu0 %v3107
    %3246 = vmatpush1.bf16.msra.mxu0 %v3106
    %3247 = vmatprep.subr.bf16.mxu0 %v3109
    %3248 = vmatpush1.bf16.msra.mxu0 %v3108
    %3249 = vmatprep.subr.bf16.mxu0 %v3111
    %3250 = vmatpush1.bf16.msra.mxu0 %v3110
    %3251 = vmatprep.subr.bf16.mxu0 %v3113
    %3252 = vmatpush1.bf16.msra.mxu0 %v3112
    %3253 = vmatprep.subr.bf16.mxu0 %v3115
    %3254 = vmatpush1.bf16.msra.mxu0 %v3114
    %3255 = vmatprep.subr.bf16.mxu0 %v3117
    %3256 = vmatpush1.bf16.msra.mxu0 %v3116
    %3257 = vmatprep.subr.bf16.mxu0 %v3119
    %3258 = vmatpush1.bf16.msra.mxu0 %v3118
    %3259 = vmatprep.mubr.bf16.mxu0 %v2787
    %3260 = vmatmul.mubr.bf16.gmra.mrb[0].mxu0 %v2786
    %v3261 = vpop.f32.mrb[0].mxu0
    %v3262 = vadd.f32 %v3219, %v3261
    %v3263 = vpop.f32.mrb[0].mxu0
    %v3264 = vadd.f32 %v3221, %v3263
    %v3265 = vpop.f32.mrb[0].mxu0
    %v3266 = vadd.f32 %v3223, %v3265
    %v3267 = vpop.f32.mrb[0].mxu0
    %v3268 = vadd.f32 %v3225, %v3267
    %3269 = vdwg.mxu0
    %v3270 = vmax.f32 %v3262, 0.0
    %v3271 = vmax.f32 %v3264, 0.0
    %v3272 = vmax.f32 %v3266, 0.0
    %v3273 = vmax.f32 %v3268, 0.0
    %v3274 = vpack.c.bf16 %v3272, %v3270
    %v3275 = vpack.c.bf16 %v3273, %v3271
    %v3276 = vld [vmem:[%s12] sm:$0xf]
    %v3277 = vld [vmem:[%s12 + $0x4] sm:$0xf]
    %v3278 = vld [vmem:[%s12 + $0x8] sm:$0xf]
    %v3279 = vld [vmem:[%s12 + $0xc] sm:$0xf]
    %v3280 = vld [vmem:[%s12 + $0x10] sm:$0xf]
    %v3281 = vld [vmem:[%s12 + $0x14] sm:$0xf]
    %v3282 = vld [vmem:[%s12 + $0x18] sm:$0xf]
    %v3283 = vld [vmem:[%s12 + $0x1c] sm:$0xf]
    %v3284 = vld [vmem:[%s12 + $0x20] sm:$0xf]
    %v3285 = vld [vmem:[%s12 + $0x24] sm:$0xf]
    %v3286 = vld [vmem:[%s12 + $0x28] sm:$0xf]
    %v3287 = vld [vmem:[%s12 + $0x2c] sm:$0xf]
    %v3288 = vld [vmem:[%s12 + $0x30] sm:$0xf]
    %v3289 = vld [vmem:[%s12 + $0x34] sm:$0xf]
    %v3290 = vld [vmem:[%s12 + $0x38] sm:$0xf]
    %v3291 = vld [vmem:[%s12 + $0x3c] sm:$0xf]
    %v3292 = vld [vmem:[%s12 + $0x40] sm:$0xf]
    %v3293 = vld [vmem:[%s12 + $0x44] sm:$0xf]
    %v3294 = vld [vmem:[%s12 + $0x48] sm:$0xf]
    %v3295 = vld [vmem:[%s12 + $0x4c] sm:$0xf]
    %v3296 = vld [vmem:[%s12 + $0x50] sm:$0xf]
    %v3297 = vld [vmem:[%s12 + $0x54] sm:$0xf]
    %v3298 = vld [vmem:[%s12 + $0x58] sm:$0xf]
    %v3299 = vld [vmem:[%s12 + $0x5c] sm:$0xf]
    %v3300 = vld [vmem:[%s12 + $0x60] sm:$0xf]
    %v3301 = vld [vmem:[%s12 + $0x64] sm:$0xf]
    %v3302 = vld [vmem:[%s12 + $0x68] sm:$0xf]
    %v3303 = vld [vmem:[%s12 + $0x6c] sm:$0xf]
    %v3304 = vld [vmem:[%s12 + $0x70] sm:$0xf]
    %v3305 = vld [vmem:[%s12 + $0x74] sm:$0xf]
    %v3306 = vld [vmem:[%s12 + $0x78] sm:$0xf]
    %v3307 = vld [vmem:[%s12 + $0x7c] sm:$0xf]
    %v3308 = vld [vmem:[%s2] sm:$0xff]
    %v3309 = vld [vmem:[%s2 + $0x8] sm:$0xff]
    %v3310 = vld [vmem:[%s13] sm:$0xf]
    %v3311 = vld [vmem:[%s13 + $0x4] sm:$0xf]
    %v3312 = vld [vmem:[%s13 + $0x8] sm:$0xf]
    %v3313 = vld [vmem:[%s13 + $0xc] sm:$0xf]
    %v3314 = vld [vmem:[%s13 + $0x10] sm:$0xf]
    %v3315 = vld [vmem:[%s13 + $0x14] sm:$0xf]
    %v3316 = vld [vmem:[%s13 + $0x18] sm:$0xf]
    %v3317 = vld [vmem:[%s13 + $0x1c] sm:$0xf]
    %v3318 = vld [vmem:[%s13 + $0x20] sm:$0xf]
    %v3319 = vld [vmem:[%s13 + $0x24] sm:$0xf]
    %v3320 = vld [vmem:[%s13 + $0x28] sm:$0xf]
    %v3321 = vld [vmem:[%s13 + $0x2c] sm:$0xf]
    %v3322 = vld [vmem:[%s13 + $0x30] sm:$0xf]
    %v3323 = vld [vmem:[%s13 + $0x34] sm:$0xf]
    %v3324 = vld [vmem:[%s13 + $0x38] sm:$0xf]
    %v3325 = vld [vmem:[%s13 + $0x3c] sm:$0xf]
    %v3326 = vld [vmem:[%s13 + $0x40] sm:$0xf]
    %v3327 = vld [vmem:[%s13 + $0x44] sm:$0xf]
    %v3328 = vld [vmem:[%s13 + $0x48] sm:$0xf]
    %v3329 = vld [vmem:[%s13 + $0x4c] sm:$0xf]
    %v3330 = vld [vmem:[%s13 + $0x50] sm:$0xf]
    %v3331 = vld [vmem:[%s13 + $0x54] sm:$0xf]
    %v3332 = vld [vmem:[%s13 + $0x58] sm:$0xf]
    %v3333 = vld [vmem:[%s13 + $0x5c] sm:$0xf]
    %v3334 = vld [vmem:[%s13 + $0x60] sm:$0xf]
    %v3335 = vld [vmem:[%s13 + $0x64] sm:$0xf]
    %v3336 = vld [vmem:[%s13 + $0x68] sm:$0xf]
    %v3337 = vld [vmem:[%s13 + $0x6c] sm:$0xf]
    %v3338 = vld [vmem:[%s13 + $0x70] sm:$0xf]
    %v3339 = vld [vmem:[%s13 + $0x74] sm:$0xf]
    %v3340 = vld [vmem:[%s13 + $0x78] sm:$0xf]
    %v3341 = vld [vmem:[%s13 + $0x7c] sm:$0xf]
    %v3344 = vunpack.c.l.b16 %v3308
    %v3345 = vunpack.c.h.b16 %v3308
    %v3346 = vunpack.c.l.b16 %v3309
    %v3347 = vunpack.c.h.b16 %v3309
    %v3348 = vpack.c.b16 %v3346, %v3344
    %v3349 = vpack.c.b16 %v3347, %v3345
    %v3384 = vunpack.c.l.b16 %v3310
    %v3385 = vunpack.c.l.b16 %v3311
    %v3386 = vunpack.c.l.b16 %v3312
    %v3387 = vunpack.c.l.b16 %v3313
    %v3388 = vunpack.c.l.b16 %v3314
    %v3389 = vunpack.c.l.b16 %v3315
    %v3390 = vunpack.c.l.b16 %v3316
    %v3391 = vunpack.c.l.b16 %v3317
    %v3392 = vunpack.c.l.b16 %v3318
    %v3393 = vunpack.c.l.b16 %v3319
    %v3394 = vunpack.c.l.b16 %v3320
    %v3395 = vunpack.c.l.b16 %v3321
    %v3396 = vunpack.c.l.b16 %v3322
    %v3397 = vunpack.c.l.b16 %v3323
    %v3398 = vunpack.c.l.b16 %v3324
    %v3399 = vunpack.c.l.b16 %v3325
    %v3400 = vunpack.c.l.b16 %v3326
    %v3401 = vunpack.c.l.b16 %v3327
    %v3402 = vunpack.c.l.b16 %v3328
    %v3403 = vunpack.c.l.b16 %v3329
    %v3404 = vunpack.c.l.b16 %v3330
    %v3405 = vunpack.c.l.b16 %v3331
    %v3406 = vunpack.c.l.b16 %v3332
    %v3407 = vunpack.c.l.b16 %v3333
    %v3408 = vunpack.c.l.b16 %v3334
    %v3409 = vunpack.c.l.b16 %v3335
    %v3410 = vunpack.c.l.b16 %v3336
    %v3411 = vunpack.c.l.b16 %v3337
    %v3412 = vunpack.c.l.b16 %v3338
    %v3413 = vunpack.c.l.b16 %v3339
    %v3414 = vunpack.c.l.b16 %v3340
    %v3415 = vunpack.c.l.b16 %v3341
    %v3416 = vpack.c.b16 %v3385, %v3384
    %v3417 = vpack.c.b16 %v3387, %v3386
    %v3418 = vpack.c.b16 %v3389, %v3388
    %v3419 = vpack.c.b16 %v3391, %v3390
    %v3420 = vpack.c.b16 %v3393, %v3392
    %v3421 = vpack.c.b16 %v3395, %v3394
    %v3422 = vpack.c.b16 %v3397, %v3396
    %v3423 = vpack.c.b16 %v3399, %v3398
    %v3424 = vpack.c.b16 %v3401, %v3400
    %v3425 = vpack.c.b16 %v3403, %v3402
    %v3426 = vpack.c.b16 %v3405, %v3404
    %v3427 = vpack.c.b16 %v3407, %v3406
    %v3428 = vpack.c.b16 %v3409, %v3408
    %v3429 = vpack.c.b16 %v3411, %v3410
    %v3430 = vpack.c.b16 %v3413, %v3412
    %v3431 = vpack.c.b16 %v3415, %v3414
    %3448 = vmatprep.subr.bf16.mxu0 0
    %3449 = vmatpush1.bf16.msra.mxu0 %v3416
    %3450 = vmatprep.subr.bf16.mxu0 0
    %3451 = vmatpush1.bf16.msra.mxu0 %v3417
    %3452 = vmatprep.subr.bf16.mxu0 0
    %3453 = vmatpush1.bf16.msra.mxu0 %v3418
    %3454 = vmatprep.subr.bf16.mxu0 0
    %3455 = vmatpush1.bf16.msra.mxu0 %v3419
    %3456 = vmatprep.subr.bf16.mxu0 0
    %3457 = vmatpush1.bf16.msra.mxu0 %v3420
    %3458 = vmatprep.subr.bf16.mxu0 0
    %3459 = vmatpush1.bf16.msra.mxu0 %v3421
    %3460 = vmatprep.subr.bf16.mxu0 0
    %3461 = vmatpush1.bf16.msra.mxu0 %v3422
    %3462 = vmatprep.subr.bf16.mxu0 0
    %3463 = vmatpush1.bf16.msra.mxu0 %v3423
    %3464 = vmatprep.subr.bf16.mxu0 0
    %3465 = vmatpush1.bf16.msra.mxu0 %v3424
    %3466 = vmatprep.subr.bf16.mxu0 0
    %3467 = vmatpush1.bf16.msra.mxu0 %v3425
    %3468 = vmatprep.subr.bf16.mxu0 0
    %3469 = vmatpush1.bf16.msra.mxu0 %v3426
    %3470 = vmatprep.subr.bf16.mxu0 0
    %3471 = vmatpush1.bf16.msra.mxu0 %v3427
    %3472 = vmatprep.subr.bf16.mxu0 0
    %3473 = vmatpush1.bf16.msra.mxu0 %v3428
    %3474 = vmatprep.subr.bf16.mxu0 0
    %3475 = vmatpush1.bf16.msra.mxu0 %v3429
    %3476 = vmatprep.subr.bf16.mxu0 0
    %3477 = vmatpush1.bf16.msra.mxu0 %v3430
    %3478 = vmatprep.subr.bf16.mxu0 0
    %3479 = vmatpush1.bf16.msra.mxu0 %v3431
    %3480 = vmatprep.mubr.bf16.mxu0 %v3349
    %3481 = vmatmul.mubr.bf16.gmra.mrb[0].mxu0 %v3348
    %v3482 = vpop.f32.mrb[0].mxu0
    %v3483 = vadd.f32 0.0, %v3482
    %v3484 = vpop.f32.mrb[0].mxu0
    %v3485 = vpop.f32.mrb[0].mxu0
    %v3486 = vadd.f32 0.0, %v3485
    %v3487 = vpop.f32.mrb[0].mxu0
    %3488 = vdwg.mxu0
    %v3521 = vunpack.c.l.b16 %v3276
    %v3522 = vunpack.c.l.b16 %v3277
    %v3523 = vunpack.c.l.b16 %v3278
    %v3524 = vunpack.c.l.b16 %v3279
    %v3525 = vunpack.c.l.b16 %v3280
    %v3526 = vunpack.c.l.b16 %v3281
    %v3527 = vunpack.c.l.b16 %v3282
    %v3528 = vunpack.c.l.b16 %v3283
    %v3529 = vunpack.c.l.b16 %v3284
    %v3530 = vunpack.c.l.b16 %v3285
    %v3531 = vunpack.c.l.b16 %v3286
    %v3532 = vunpack.c.l.b16 %v3287
    %v3533 = vunpack.c.l.b16 %v3288
    %v3534 = vunpack.c.l.b16 %v3289
    %v3535 = vunpack.c.l.b16 %v3290
    %v3536 = vunpack.c.l.b16 %v3291
    %v3537 = vunpack.c.l.b16 %v3292
    %v3538 = vunpack.c.l.b16 %v3293
    %v3539 = vunpack.c.l.b16 %v3294
    %v3540 = vunpack.c.l.b16 %v3295
    %v3541 = vunpack.c.l.b16 %v3296
    %v3542 = vunpack.c.l.b16 %v3297
    %v3543 = vunpack.c.l.b16 %v3298
    %v3544 = vunpack.c.l.b16 %v3299
    %v3545 = vunpack.c.l.b16 %v3300
    %v3546 = vunpack.c.l.b16 %v3301
    %v3547 = vunpack.c.l.b16 %v3302
    %v3548 = vunpack.c.l.b16 %v3303
    %v3549 = vunpack.c.l.b16 %v3304
    %v3550 = vunpack.c.l.b16 %v3305
    %v3551 = vunpack.c.l.b16 %v3306
    %v3552 = vunpack.c.l.b16 %v3307
    %v3553 = vpack.c.b16 %v3522, %v3521
    %v3554 = vpack.c.b16 %v3524, %v3523
    %v3555 = vpack.c.b16 %v3526, %v3525
    %v3556 = vpack.c.b16 %v3528, %v3527
    %v3557 = vpack.c.b16 %v3530, %v3529
    %v3558 = vpack.c.b16 %v3532, %v3531
    %v3559 = vpack.c.b16 %v3534, %v3533
    %v3560 = vpack.c.b16 %v3536, %v3535
    %v3561 = vpack.c.b16 %v3538, %v3537
    %v3562 = vpack.c.b16 %v3540, %v3539
    %v3563 = vpack.c.b16 %v3542, %v3541
    %v3564 = vpack.c.b16 %v3544, %v3543
    %v3565 = vpack.c.b16 %v3546, %v3545
    %v3566 = vpack.c.b16 %v3548, %v3547
    %v3567 = vpack.c.b16 %v3550, %v3549
    %v3568 = vpack.c.b16 %v3552, %v3551
    %3585 = vmatprep.subr.bf16.mxu0 0
    %3586 = vmatpush1.bf16.msra.mxu0 %v3553
    %3587 = vmatprep.subr.bf16.mxu0 0
    %3588 = vmatpush1.bf16.msra.mxu0 %v3554
    %3589 = vmatprep.subr.bf16.mxu0 0
    %3590 = vmatpush1.bf16.msra.mxu0 %v3555
    %3591 = vmatprep.subr.bf16.mxu0 0
    %3592 = vmatpush1.bf16.msra.mxu0 %v3556
    %3593 = vmatprep.subr.bf16.mxu0 0
    %3594 = vmatpush1.bf16.msra.mxu0 %v3557
    %3595 = vmatprep.subr.bf16.mxu0 0
    %3596 = vmatpush1.bf16.msra.mxu0 %v3558
    %3597 = vmatprep.subr.bf16.mxu0 0
    %3598 = vmatpush1.bf16.msra.mxu0 %v3559
    %3599 = vmatprep.subr.bf16.mxu0 0
    %3600 = vmatpush1.bf16.msra.mxu0 %v3560
    %3601 = vmatprep.subr.bf16.mxu0 0
    %3602 = vmatpush1.bf16.msra.mxu0 %v3561
    %3603 = vmatprep.subr.bf16.mxu0 0
    %3604 = vmatpush1.bf16.msra.mxu0 %v3562
    %3605 = vmatprep.subr.bf16.mxu0 0
    %3606 = vmatpush1.bf16.msra.mxu0 %v3563
    %3607 = vmatprep.subr.bf16.mxu0 0
    %3608 = vmatpush1.bf16.msra.mxu0 %v3564
    %3609 = vmatprep.subr.bf16.mxu0 0
    %3610 = vmatpush1.bf16.msra.mxu0 %v3565
    %3611 = vmatprep.subr.bf16.mxu0 0
    %3612 = vmatpush1.bf16.msra.mxu0 %v3566
    %3613 = vmatprep.subr.bf16.mxu0 0
    %3614 = vmatpush1.bf16.msra.mxu0 %v3567
    %3615 = vmatprep.subr.bf16.mxu0 0
    %3616 = vmatpush1.bf16.msra.mxu0 %v3568
    %3617 = vmatprep.mubr.bf16.mxu0 %v3275
    %3618 = vmatmul.mubr.bf16.gmra.mrb[0].mxu0 %v3274
    %v3619 = vpop.f32.mrb[0].mxu0
    %v3620 = vadd.f32 %v3483, %v3619
    %v3621 = vpop.f32.mrb[0].mxu0
    %v3622 = vpop.f32.mrb[0].mxu0
    %v3623 = vadd.f32 %v3486, %v3622
    %v3624 = vpop.f32.mrb[0].mxu0
    %3625 = vdwg.mxu0
    %v3626 = vld [vmem:[%s14] sm:$0x1]
    %v3628 = vlaneseq
    %v3629 = vshrl.u32 %v3628, 7
    %v3630 = vsub.s32 0, %v3629
    %v3631 = vrot.slane %v3626, %v3630
    %v3633 = vadd.f32 %v3620, %v3631
    %v3634 = vadd.f32 %v3623, %v3631
    %3635 = vst [vmem:[%s15] sm:$0xff] %v3633
    %3636 = vst [vmem:[%s15 + $0x8] sm:$0xff] %v3634
    // Predicated region
    $region70: #{wd_forward.1} parent=1 // pred_check
      _
    $region71: #{wd_forward.1} parent=1 // pred_check_branch
      %3638 = sbr.rel (0) target = $region73
    $region72: #{wd_forward.1} parent=1 // pred_region
      _
    $region73: #{wd_forward.1} parent=1 // pred_fallthru
      _
    // Predicated region
    $region74: #{wd_forward.1} parent=1 // pred_check
      _
    $region75: #{wd_forward.1} parent=1 // pred_check_branch
      %3640 = sbr.rel (0) target = $region77
    $region76: #{wd_forward.1} parent=1 // pred_region
      _
    $region77: #{wd_forward.1} parent=1 // pred_fallthru
      _
    %3641 = vsyncpa [#allocation3], 1
    %3642 = vsyncpa [#allocation5], 1

</llo_original>
